<compile_context>
chip_gen: v7x
topology: tpu7x:2x2x1
jax: 0.10.0
libtpu: 0.0.40
codegen_flags: <defaults>
</compile_context>

<pallas_src>
import functools

import numpy as np

import jax
import jax.numpy as jnp
from jax.experimental import pallas as pl
from jax.experimental.pallas import tpu as pltpu


# ---------------------------------------------------------------------------
# Fused Pallas kernel
# ---------------------------------------------------------------------------
def _residual_block_kernel(x_ref, w1_ref, b1_ref, alpha_ref, w2_ref, b2_ref,
                           m_ref, out_ref, *, C, H, W):
    """One image: conv3x3(reflect) -> PReLU -> conv3x3(reflect)*0.1 + x."""
    f32 = jnp.float32
    HW = H * W

    # Reflection boundary masks (1.0 where the fix-up applies), each (1, HW).
    m_c0 = m_ref[0:1, :]        # col == 0
    m_cL = m_ref[1:2, :]        # col == W-1
    m_r0 = m_ref[2:3, :]        # row == 0
    m_rL = m_ref[3:4, :]        # row == H-1

    def blend(raw, fix, m):     # m in {0,1}: raw where m==0, fix where m==1
        return raw + m * (fix - raw)

    def shift(v, s):            # out[p] = v[(p - s) mod HW]   (jnp.roll semantics)
        return pltpu.roll(v, shift=s % HW, axis=1)

    def taps(v):
        """Nine 3x3 taps of a (1, HW) plane with reflection padding.

        Returns grid[kw][kh] with
          grid[kw][kh][0, h*W + w] = v[0, reflect(h+kh-1)*W + reflect(w+kw-1)]
        built from XLU rolls + boundary blends (no halo scratch, no offset
        slices).
        """
        cm = shift(v, 1)                 # [p] = v[p-1]   (dw = -1)
        cp = shift(v, -1)                # [p] = v[p+1]   (dw = +1)
        cmf = blend(cm, cp, m_c0)        # col 0   -> reflect to col 1
        cpf = blend(cp, cm, m_cL)        # col W-1 -> reflect to col W-2
        grid = []
        for c in (cmf, v, cpf):          # kw = 0, 1, 2
            rm = shift(c, W)             # [p] = c[p-W]   (dh = -1)
            rp = shift(c, -W)            # [p] = c[p+W]   (dh = +1)
            rmf = blend(rm, rp, m_r0)    # row 0   -> reflect to row 1
            rpf = blend(rp, rm, m_rL)    # row H-1 -> reflect to row H-2
            grid.append((rmf, c, rpf))   # kh = 0, 1, 2
        return grid

    def conv3x3(get_plane, w_ref, b_ref):
        # Scalar-weight VPU broadcast-MACs (weights flat OIHW in SMEM);
        # bias folded into the accumulator init.  Loop order keeps only the
        # current channel's 9 taps + C accumulators live (low vreg pressure).
        accs = [jnp.full((1, HW), b_ref[co], f32) for co in range(C)]
        for ci in range(C):
            g = taps(get_plane(ci))
            for kh in range(3):
                for kw in range(3):
                    patch = g[kw][kh]
                    for co in range(C):
                        wv = w_ref[(co * C + ci) * 9 + kh * 3 + kw]
                        accs[co] = accs[co] + patch * wv
        return accs

    # ---- conv1 + PReLU (y1 stays in vregs: no scratch / HBM round trip) ----
    alpha = alpha_ref[0]                 # single-parameter nn.PReLU()
    y1 = conv3x3(lambda ci: x_ref[0, ci:ci + 1, :].astype(f32), w1_ref, b1_ref)
    y1 = [jnp.where(y > 0, y, alpha * y) for y in y1]

    # ---- conv2 * 0.1 + residual (x re-read from the ref, lane-dense store) --
    y2 = conv3x3(lambda ci: y1[ci], w2_ref, b2_ref)
    for co in range(C):
        res = x_ref[0, co:co + 1, :].astype(f32)
        out_ref[0, co:co + 1, :] = (y2[co] * f32(0.1) + res).astype(out_ref.dtype)


# ---------------------------------------------------------------------------
# Wrapper
# ---------------------------------------------------------------------------
def residual_block(x, w1, b1, alpha, w2, b2):
    """x: (B, C, H, W).  w1, w2: (C, C, 3, 3) PyTorch OIHW.  b1, b2: (C,).

    alpha: scalar PReLU parameter (nn.PReLU() default: num_parameters=1).
    """
    B, C, H, W = x.shape
    assert H >= 2 and W >= 2, "ReflectionPad2d(1) requires H, W >= 2"
    HW = H * W

    x2 = x.reshape(B, C, HW)                         # free contiguous reshape
    alpha_arr = jnp.asarray(alpha, jnp.float32).reshape(-1)[:1]   # (1,)

    # Reflection boundary masks, built host-side (any H, W >= 2).
    pos = np.arange(HW)
    col, row = pos % W, pos // W
    masks = jnp.asarray(
        np.stack([col == 0, col == W - 1, row == 0, row == H - 1])
        .astype(np.float32))                          # (4, HW)

    smem = pl.BlockSpec(memory_space=pltpu.SMEM)

    out = pl.pallas_call(
        functools.partial(_residual_block_kernel, C=C, H=H, W=W),
        out_shape=jax.ShapeDtypeStruct((B, C, HW), x.dtype),
        grid_spec=pltpu.PrefetchScalarGridSpec(
            num_scalar_prefetch=0,
            grid=(B,),
            in_specs=[
                pl.BlockSpec((1, C, HW), lambda b: (b, 0, 0)),   # x (lane-dense)
                smem,                                            # w1 (flat OIHW)
                smem,                                            # b1
                smem,                                            # alpha
                smem,                                            # w2
                smem,                                            # b2
                pl.BlockSpec((4, HW), lambda b: (0, 0)),         # boundary masks
            ],
            out_specs=pl.BlockSpec((1, C, HW), lambda b: (b, 0, 0)),
        ),
        compiler_params=pltpu.CompilerParams(
            dimension_semantics=("parallel",)),
    )(x2,
      w1.reshape(-1).astype(jnp.float32),
      b1.astype(jnp.float32),
      alpha_arr,
      w2.reshape(-1).astype(jnp.float32),
      b2.astype(jnp.float32),
      masks)
    return out.reshape(B, C, H, W)


# ---------------------------------------------------------------------------
# Pure-JAX reference (independent: XLA conv)
# ---------------------------------------------------------------------------
def _conv_ref_nchw(x, w, b):
    xpad = jnp.pad(x, ((0, 0), (0, 0), (1, 1), (1, 1)), mode="reflect")
    out = jax.lax.conv_general_dilated(
        xpad, w, window_strides=(1, 1), padding="VALID",
        dimension_numbers=("NCHW", "OIHW", "NCHW"))
    return out + b[None, :, None, None]


def residual_block_ref(x, w1, b1, alpha, w2, b2):
    y1 = _conv_ref_nchw(x, w1, b1)
    y1 = jnp.where(y1 > 0, y1, alpha * y1)
    return _conv_ref_nchw(y1, w2, b2) * 0.1 + x


# ---------------------------------------------------------------------------
if __name__ == "__main__":
    B, C, H, W = 2, 4, 16, 16

    key = jax.random.PRNGKey(0)
    kx, kw1, kb1, kw2, kb2 = jax.random.split(key, 5)

    x = jax.random.normal(kx, (B, C, H, W), jnp.float32)
    # Conv weights in PyTorch OIHW layout (Cout, Cin, kh, kw).
    w1 = jax.random.normal(kw1, (C, C, 3, 3), jnp.float32) * 0.1
    b1 = jax.random.normal(kb1, (C,), jnp.float32) * 0.1
    w2 = jax.random.normal(kw2, (C, C, 3, 3), jnp.float32) * 0.1
    b2 = jax.random.normal(kb2, (C,), jnp.float32) * 0.1
    alpha = 0.25  # nn.PReLU() default single parameter

    out = jax.block_until_ready(residual_block(x, w1, b1, alpha, w2, b2))
    ref = residual_block_ref(x, w1, b1, alpha, w2, b2)

    assert out.shape == (B, C, H, W)
    assert jnp.allclose(out, ref, atol=2e-4, rtol=2e-4), "mismatch vs reference"

    print("KERNEL_OK")
</pallas_src>

<mosaic_0001>
module attributes {stable_mosaic.version = 11 : i64} {
  func.func @_residual_block_kernel(%arg0: i32, %arg1: memref<1x4x256xf32, #tpu.memory_space<vmem>>, %arg2: memref<144xf32, #tpu.memory_space<smem>>, %arg3: memref<4xf32, #tpu.memory_space<smem>>, %arg4: memref<1xf32, #tpu.memory_space<smem>>, %arg5: memref<144xf32, #tpu.memory_space<smem>>, %arg6: memref<4xf32, #tpu.memory_space<smem>>, %arg7: memref<4x256xf32, #tpu.memory_space<vmem>>, %arg8: memref<1x4x256xf32, #tpu.memory_space<vmem>>) attributes {dimension_semantics = [#tpu.dimension_semantics<parallel>], iteration_bounds = array<i64: 2>, scalar_prefetch = 0 : i64, scratch_operands = 0 : i64, tpu.core_type = #tpu.core_type<tc>, window_params = [{transform_indices = @transform_0, window_bounds = array<i64: 1, 4, 256>}, {transform_indices = @transform_1, window_bounds = array<i64: 144>}, {transform_indices = @transform_2, window_bounds = array<i64: 4>}, {transform_indices = @transform_3, window_bounds = array<i64: 1>}, {transform_indices = @transform_4, window_bounds = array<i64: 144>}, {transform_indices = @transform_5, window_bounds = array<i64: 4>}, {pipeline_mode = #tpu.pipeline_mode<synchronous>, transform_indices = @transform_6, window_bounds = array<i64: 4, 256>}, {transform_indices = @transform_7, window_bounds = array<i64: 1, 4, 256>}]} {
    %c0 = arith.constant 0 : index
    %c0_0 = arith.constant 0 : index
    %0 = vector.load %arg7[%c0, %c0_0] : memref<4x256xf32, #tpu.memory_space<vmem>>, vector<1x256xf32>
    %c1 = arith.constant 1 : index
    %c0_1 = arith.constant 0 : index
    %1 = vector.load %arg7[%c1, %c0_1] : memref<4x256xf32, #tpu.memory_space<vmem>>, vector<1x256xf32>
    %c2 = arith.constant 2 : index
    %c0_2 = arith.constant 0 : index
    %2 = vector.load %arg7[%c2, %c0_2] : memref<4x256xf32, #tpu.memory_space<vmem>>, vector<1x256xf32>
    %c3 = arith.constant 3 : index
    %c0_3 = arith.constant 0 : index
    %3 = vector.load %arg7[%c3, %c0_3] : memref<4x256xf32, #tpu.memory_space<vmem>>, vector<1x256xf32>
    %c0_4 = arith.constant 0 : index
    %4 = memref.load %arg4[%c0_4] : memref<1xf32, #tpu.memory_space<smem>>
    %c0_5 = arith.constant 0 : index
    %5 = memref.load %arg3[%c0_5] : memref<4xf32, #tpu.memory_space<smem>>
    %6 = vector.broadcast %5 : f32 to vector<1x256xf32>
    %c1_6 = arith.constant 1 : index
    %7 = memref.load %arg3[%c1_6] : memref<4xf32, #tpu.memory_space<smem>>
    %8 = vector.broadcast %7 : f32 to vector<1x256xf32>
    %c2_7 = arith.constant 2 : index
    %9 = memref.load %arg3[%c2_7] : memref<4xf32, #tpu.memory_space<smem>>
    %10 = vector.broadcast %9 : f32 to vector<1x256xf32>
    %c3_8 = arith.constant 3 : index
    %11 = memref.load %arg3[%c3_8] : memref<4xf32, #tpu.memory_space<smem>>
    %12 = vector.broadcast %11 : f32 to vector<1x256xf32>
    %c0_9 = arith.constant 0 : index
    %c0_10 = arith.constant 0 : index
    %c0_11 = arith.constant 0 : index
    %13 = vector.load %arg1[%c0_9, %c0_10, %c0_11] : memref<1x4x256xf32, #tpu.memory_space<vmem>>, vector<1x1x256xf32>
    %14 = vector.shape_cast %13 : vector<1x1x256xf32> to vector<1x256xf32>
    %c1_i32 = arith.constant 1 : i32
    %15 = tpu.dynamic_rotate %14 by %c1_i32 dim 1 : vector<1x256xf32>, i32 -> vector<1x256xf32>
    %c255_i32 = arith.constant 255 : i32
    %16 = tpu.dynamic_rotate %14 by %c255_i32 dim 1 : vector<1x256xf32>, i32 -> vector<1x256xf32>
    %17 = arith.subf %16, %15 : vector<1x256xf32>
    %18 = arith.mulf %0, %17 : vector<1x256xf32>
    %19 = arith.addf %15, %18 : vector<1x256xf32>
    %20 = arith.subf %15, %16 : vector<1x256xf32>
    %21 = arith.mulf %1, %20 : vector<1x256xf32>
    %22 = arith.addf %16, %21 : vector<1x256xf32>
    %c16_i32 = arith.constant 16 : i32
    %23 = tpu.dynamic_rotate %19 by %c16_i32 dim 1 : vector<1x256xf32>, i32 -> vector<1x256xf32>
    %c240_i32 = arith.constant 240 : i32
    %24 = tpu.dynamic_rotate %19 by %c240_i32 dim 1 : vector<1x256xf32>, i32 -> vector<1x256xf32>
    %25 = arith.subf %24, %23 : vector<1x256xf32>
    %26 = arith.mulf %2, %25 : vector<1x256xf32>
    %27 = arith.addf %23, %26 : vector<1x256xf32>
    %28 = arith.subf %23, %24 : vector<1x256xf32>
    %29 = arith.mulf %3, %28 : vector<1x256xf32>
    %30 = arith.addf %24, %29 : vector<1x256xf32>
    %c16_i32_12 = arith.constant 16 : i32
    %31 = tpu.dynamic_rotate %14 by %c16_i32_12 dim 1 : vector<1x256xf32>, i32 -> vector<1x256xf32>
    %c240_i32_13 = arith.constant 240 : i32
    %32 = tpu.dynamic_rotate %14 by %c240_i32_13 dim 1 : vector<1x256xf32>, i32 -> vector<1x256xf32>
    %33 = arith.subf %32, %31 : vector<1x256xf32>
    %34 = arith.mulf %2, %33 : vector<1x256xf32>
    %35 = arith.addf %31, %34 : vector<1x256xf32>
    %36 = arith.subf %31, %32 : vector<1x256xf32>
    %37 = arith.mulf %3, %36 : vector<1x256xf32>
    %38 = arith.addf %32, %37 : vector<1x256xf32>
    %c16_i32_14 = arith.constant 16 : i32
    %39 = tpu.dynamic_rotate %22 by %c16_i32_14 dim 1 : vector<1x256xf32>, i32 -> vector<1x256xf32>
    %c240_i32_15 = arith.constant 240 : i32
    %40 = tpu.dynamic_rotate %22 by %c240_i32_15 dim 1 : vector<1x256xf32>, i32 -> vector<1x256xf32>
    %41 = arith.subf %40, %39 : vector<1x256xf32>
    %42 = arith.mulf %2, %41 : vector<1x256xf32>
    %43 = arith.addf %39, %42 : vector<1x256xf32>
    %44 = arith.subf %39, %40 : vector<1x256xf32>
    %45 = arith.mulf %3, %44 : vector<1x256xf32>
    %46 = arith.addf %40, %45 : vector<1x256xf32>
    %c0_16 = arith.constant 0 : index
    %47 = memref.load %arg2[%c0_16] : memref<144xf32, #tpu.memory_space<smem>>
    %48 = vector.broadcast %47 : f32 to vector<1x256xf32>
    %49 = arith.mulf %27, %48 : vector<1x256xf32>
    %50 = arith.addf %6, %49 : vector<1x256xf32>
    %c36 = arith.constant 36 : index
    %51 = memref.load %arg2[%c36] : memref<144xf32, #tpu.memory_space<smem>>
    %52 = vector.broadcast %51 : f32 to vector<1x256xf32>
    %53 = arith.mulf %27, %52 : vector<1x256xf32>
    %54 = arith.addf %8, %53 : vector<1x256xf32>
    %c72 = arith.constant 72 : index
    %55 = memref.load %arg2[%c72] : memref<144xf32, #tpu.memory_space<smem>>
    %56 = vector.broadcast %55 : f32 to vector<1x256xf32>
    %57 = arith.mulf %27, %56 : vector<1x256xf32>
    %58 = arith.addf %10, %57 : vector<1x256xf32>
    %c108 = arith.constant 108 : index
    %59 = memref.load %arg2[%c108] : memref<144xf32, #tpu.memory_space<smem>>
    %60 = vector.broadcast %59 : f32 to vector<1x256xf32>
    %61 = arith.mulf %27, %60 : vector<1x256xf32>
    %62 = arith.addf %12, %61 : vector<1x256xf32>
    %c1_17 = arith.constant 1 : index
    %63 = memref.load %arg2[%c1_17] : memref<144xf32, #tpu.memory_space<smem>>
    %64 = vector.broadcast %63 : f32 to vector<1x256xf32>
    %65 = arith.mulf %35, %64 : vector<1x256xf32>
    %66 = arith.addf %50, %65 : vector<1x256xf32>
    %c37 = arith.constant 37 : index
    %67 = memref.load %arg2[%c37] : memref<144xf32, #tpu.memory_space<smem>>
    %68 = vector.broadcast %67 : f32 to vector<1x256xf32>
    %69 = arith.mulf %35, %68 : vector<1x256xf32>
    %70 = arith.addf %54, %69 : vector<1x256xf32>
    %c73 = arith.constant 73 : index
    %71 = memref.load %arg2[%c73] : memref<144xf32, #tpu.memory_space<smem>>
    %72 = vector.broadcast %71 : f32 to vector<1x256xf32>
    %73 = arith.mulf %35, %72 : vector<1x256xf32>
    %74 = arith.addf %58, %73 : vector<1x256xf32>
    %c109 = arith.constant 109 : index
    %75 = memref.load %arg2[%c109] : memref<144xf32, #tpu.memory_space<smem>>
    %76 = vector.broadcast %75 : f32 to vector<1x256xf32>
    %77 = arith.mulf %35, %76 : vector<1x256xf32>
    %78 = arith.addf %62, %77 : vector<1x256xf32>
    %c2_18 = arith.constant 2 : index
    %79 = memref.load %arg2[%c2_18] : memref<144xf32, #tpu.memory_space<smem>>
    %80 = vector.broadcast %79 : f32 to vector<1x256xf32>
    %81 = arith.mulf %43, %80 : vector<1x256xf32>
    %82 = arith.addf %66, %81 : vector<1x256xf32>
    %c38 = arith.constant 38 : index
    %83 = memref.load %arg2[%c38] : memref<144xf32, #tpu.memory_space<smem>>
    %84 = vector.broadcast %83 : f32 to vector<1x256xf32>
    %85 = arith.mulf %43, %84 : vector<1x256xf32>
    %86 = arith.addf %70, %85 : vector<1x256xf32>
    %c74 = arith.constant 74 : index
    %87 = memref.load %arg2[%c74] : memref<144xf32, #tpu.memory_space<smem>>
    %88 = vector.broadcast %87 : f32 to vector<1x256xf32>
    %89 = arith.mulf %43, %88 : vector<1x256xf32>
    %90 = arith.addf %74, %89 : vector<1x256xf32>
    %c110 = arith.constant 110 : index
    %91 = memref.load %arg2[%c110] : memref<144xf32, #tpu.memory_space<smem>>
    %92 = vector.broadcast %91 : f32 to vector<1x256xf32>
    %93 = arith.mulf %43, %92 : vector<1x256xf32>
    %94 = arith.addf %78, %93 : vector<1x256xf32>
    %c3_19 = arith.constant 3 : index
    %95 = memref.load %arg2[%c3_19] : memref<144xf32, #tpu.memory_space<smem>>
    %96 = vector.broadcast %95 : f32 to vector<1x256xf32>
    %97 = arith.mulf %19, %96 : vector<1x256xf32>
    %98 = arith.addf %82, %97 : vector<1x256xf32>
    %c39 = arith.constant 39 : index
    %99 = memref.load %arg2[%c39] : memref<144xf32, #tpu.memory_space<smem>>
    %100 = vector.broadcast %99 : f32 to vector<1x256xf32>
    %101 = arith.mulf %19, %100 : vector<1x256xf32>
    %102 = arith.addf %86, %101 : vector<1x256xf32>
    %c75 = arith.constant 75 : index
    %103 = memref.load %arg2[%c75] : memref<144xf32, #tpu.memory_space<smem>>
    %104 = vector.broadcast %103 : f32 to vector<1x256xf32>
    %105 = arith.mulf %19, %104 : vector<1x256xf32>
    %106 = arith.addf %90, %105 : vector<1x256xf32>
    %c111 = arith.constant 111 : index
    %107 = memref.load %arg2[%c111] : memref<144xf32, #tpu.memory_space<smem>>
    %108 = vector.broadcast %107 : f32 to vector<1x256xf32>
    %109 = arith.mulf %19, %108 : vector<1x256xf32>
    %110 = arith.addf %94, %109 : vector<1x256xf32>
    %c4 = arith.constant 4 : index
    %111 = memref.load %arg2[%c4] : memref<144xf32, #tpu.memory_space<smem>>
    %112 = vector.broadcast %111 : f32 to vector<1x256xf32>
    %113 = arith.mulf %14, %112 : vector<1x256xf32>
    %114 = arith.addf %98, %113 : vector<1x256xf32>
    %c40 = arith.constant 40 : index
    %115 = memref.load %arg2[%c40] : memref<144xf32, #tpu.memory_space<smem>>
    %116 = vector.broadcast %115 : f32 to vector<1x256xf32>
    %117 = arith.mulf %14, %116 : vector<1x256xf32>
    %118 = arith.addf %102, %117 : vector<1x256xf32>
    %c76 = arith.constant 76 : index
    %119 = memref.load %arg2[%c76] : memref<144xf32, #tpu.memory_space<smem>>
    %120 = vector.broadcast %119 : f32 to vector<1x256xf32>
    %121 = arith.mulf %14, %120 : vector<1x256xf32>
    %122 = arith.addf %106, %121 : vector<1x256xf32>
    %c112 = arith.constant 112 : index
    %123 = memref.load %arg2[%c112] : memref<144xf32, #tpu.memory_space<smem>>
    %124 = vector.broadcast %123 : f32 to vector<1x256xf32>
    %125 = arith.mulf %14, %124 : vector<1x256xf32>
    %126 = arith.addf %110, %125 : vector<1x256xf32>
    %c5 = arith.constant 5 : index
    %127 = memref.load %arg2[%c5] : memref<144xf32, #tpu.memory_space<smem>>
    %128 = vector.broadcast %127 : f32 to vector<1x256xf32>
    %129 = arith.mulf %22, %128 : vector<1x256xf32>
    %130 = arith.addf %114, %129 : vector<1x256xf32>
    %c41 = arith.constant 41 : index
    %131 = memref.load %arg2[%c41] : memref<144xf32, #tpu.memory_space<smem>>
    %132 = vector.broadcast %131 : f32 to vector<1x256xf32>
    %133 = arith.mulf %22, %132 : vector<1x256xf32>
    %134 = arith.addf %118, %133 : vector<1x256xf32>
    %c77 = arith.constant 77 : index
    %135 = memref.load %arg2[%c77] : memref<144xf32, #tpu.memory_space<smem>>
    %136 = vector.broadcast %135 : f32 to vector<1x256xf32>
    %137 = arith.mulf %22, %136 : vector<1x256xf32>
    %138 = arith.addf %122, %137 : vector<1x256xf32>
    %c113 = arith.constant 113 : index
    %139 = memref.load %arg2[%c113] : memref<144xf32, #tpu.memory_space<smem>>
    %140 = vector.broadcast %139 : f32 to vector<1x256xf32>
    %141 = arith.mulf %22, %140 : vector<1x256xf32>
    %142 = arith.addf %126, %141 : vector<1x256xf32>
    %c6 = arith.constant 6 : index
    %143 = memref.load %arg2[%c6] : memref<144xf32, #tpu.memory_space<smem>>
    %144 = vector.broadcast %143 : f32 to vector<1x256xf32>
    %145 = arith.mulf %30, %144 : vector<1x256xf32>
    %146 = arith.addf %130, %145 : vector<1x256xf32>
    %c42 = arith.constant 42 : index
    %147 = memref.load %arg2[%c42] : memref<144xf32, #tpu.memory_space<smem>>
    %148 = vector.broadcast %147 : f32 to vector<1x256xf32>
    %149 = arith.mulf %30, %148 : vector<1x256xf32>
    %150 = arith.addf %134, %149 : vector<1x256xf32>
    %c78 = arith.constant 78 : index
    %151 = memref.load %arg2[%c78] : memref<144xf32, #tpu.memory_space<smem>>
    %152 = vector.broadcast %151 : f32 to vector<1x256xf32>
    %153 = arith.mulf %30, %152 : vector<1x256xf32>
    %154 = arith.addf %138, %153 : vector<1x256xf32>
    %c114 = arith.constant 114 : index
    %155 = memref.load %arg2[%c114] : memref<144xf32, #tpu.memory_space<smem>>
    %156 = vector.broadcast %155 : f32 to vector<1x256xf32>
    %157 = arith.mulf %30, %156 : vector<1x256xf32>
    %158 = arith.addf %142, %157 : vector<1x256xf32>
    %c7 = arith.constant 7 : index
    %159 = memref.load %arg2[%c7] : memref<144xf32, #tpu.memory_space<smem>>
    %160 = vector.broadcast %159 : f32 to vector<1x256xf32>
    %161 = arith.mulf %38, %160 : vector<1x256xf32>
    %162 = arith.addf %146, %161 : vector<1x256xf32>
    %c43 = arith.constant 43 : index
    %163 = memref.load %arg2[%c43] : memref<144xf32, #tpu.memory_space<smem>>
    %164 = vector.broadcast %163 : f32 to vector<1x256xf32>
    %165 = arith.mulf %38, %164 : vector<1x256xf32>
    %166 = arith.addf %150, %165 : vector<1x256xf32>
    %c79 = arith.constant 79 : index
    %167 = memref.load %arg2[%c79] : memref<144xf32, #tpu.memory_space<smem>>
    %168 = vector.broadcast %167 : f32 to vector<1x256xf32>
    %169 = arith.mulf %38, %168 : vector<1x256xf32>
    %170 = arith.addf %154, %169 : vector<1x256xf32>
    %c115 = arith.constant 115 : index
    %171 = memref.load %arg2[%c115] : memref<144xf32, #tpu.memory_space<smem>>
    %172 = vector.broadcast %171 : f32 to vector<1x256xf32>
    %173 = arith.mulf %38, %172 : vector<1x256xf32>
    %174 = arith.addf %158, %173 : vector<1x256xf32>
    %c8 = arith.constant 8 : index
    %175 = memref.load %arg2[%c8] : memref<144xf32, #tpu.memory_space<smem>>
    %176 = vector.broadcast %175 : f32 to vector<1x256xf32>
    %177 = arith.mulf %46, %176 : vector<1x256xf32>
    %178 = arith.addf %162, %177 : vector<1x256xf32>
    %c44 = arith.constant 44 : index
    %179 = memref.load %arg2[%c44] : memref<144xf32, #tpu.memory_space<smem>>
    %180 = vector.broadcast %179 : f32 to vector<1x256xf32>
    %181 = arith.mulf %46, %180 : vector<1x256xf32>
    %182 = arith.addf %166, %181 : vector<1x256xf32>
    %c80 = arith.constant 80 : index
    %183 = memref.load %arg2[%c80] : memref<144xf32, #tpu.memory_space<smem>>
    %184 = vector.broadcast %183 : f32 to vector<1x256xf32>
    %185 = arith.mulf %46, %184 : vector<1x256xf32>
    %186 = arith.addf %170, %185 : vector<1x256xf32>
    %c116 = arith.constant 116 : index
    %187 = memref.load %arg2[%c116] : memref<144xf32, #tpu.memory_space<smem>>
    %188 = vector.broadcast %187 : f32 to vector<1x256xf32>
    %189 = arith.mulf %46, %188 : vector<1x256xf32>
    %190 = arith.addf %174, %189 : vector<1x256xf32>
    %c0_20 = arith.constant 0 : index
    %c1_21 = arith.constant 1 : index
    %c0_22 = arith.constant 0 : index
    %191 = vector.load %arg1[%c0_20, %c1_21, %c0_22] : memref<1x4x256xf32, #tpu.memory_space<vmem>>, vector<1x1x256xf32>
    %192 = vector.shape_cast %191 : vector<1x1x256xf32> to vector<1x256xf32>
    %c1_i32_23 = arith.constant 1 : i32
    %193 = tpu.dynamic_rotate %192 by %c1_i32_23 dim 1 : vector<1x256xf32>, i32 -> vector<1x256xf32>
    %c255_i32_24 = arith.constant 255 : i32
    %194 = tpu.dynamic_rotate %192 by %c255_i32_24 dim 1 : vector<1x256xf32>, i32 -> vector<1x256xf32>
    %195 = arith.subf %194, %193 : vector<1x256xf32>
    %196 = arith.mulf %0, %195 : vector<1x256xf32>
    %197 = arith.addf %193, %196 : vector<1x256xf32>
    %198 = arith.subf %193, %194 : vector<1x256xf32>
    %199 = arith.mulf %1, %198 : vector<1x256xf32>
    %200 = arith.addf %194, %199 : vector<1x256xf32>
    %c16_i32_25 = arith.constant 16 : i32
    %201 = tpu.dynamic_rotate %197 by %c16_i32_25 dim 1 : vector<1x256xf32>, i32 -> vector<1x256xf32>
    %c240_i32_26 = arith.constant 240 : i32
    %202 = tpu.dynamic_rotate %197 by %c240_i32_26 dim 1 : vector<1x256xf32>, i32 -> vector<1x256xf32>
    %203 = arith.subf %202, %201 : vector<1x256xf32>
    %204 = arith.mulf %2, %203 : vector<1x256xf32>
    %205 = arith.addf %201, %204 : vector<1x256xf32>
    %206 = arith.subf %201, %202 : vector<1x256xf32>
    %207 = arith.mulf %3, %206 : vector<1x256xf32>
    %208 = arith.addf %202, %207 : vector<1x256xf32>
    %c16_i32_27 = arith.constant 16 : i32
    %209 = tpu.dynamic_rotate %192 by %c16_i32_27 dim 1 : vector<1x256xf32>, i32 -> vector<1x256xf32>
    %c240_i32_28 = arith.constant 240 : i32
    %210 = tpu.dynamic_rotate %192 by %c240_i32_28 dim 1 : vector<1x256xf32>, i32 -> vector<1x256xf32>
    %211 = arith.subf %210, %209 : vector<1x256xf32>
    %212 = arith.mulf %2, %211 : vector<1x256xf32>
    %213 = arith.addf %209, %212 : vector<1x256xf32>
    %214 = arith.subf %209, %210 : vector<1x256xf32>
    %215 = arith.mulf %3, %214 : vector<1x256xf32>
    %216 = arith.addf %210, %215 : vector<1x256xf32>
    %c16_i32_29 = arith.constant 16 : i32
    %217 = tpu.dynamic_rotate %200 by %c16_i32_29 dim 1 : vector<1x256xf32>, i32 -> vector<1x256xf32>
    %c240_i32_30 = arith.constant 240 : i32
    %218 = tpu.dynamic_rotate %200 by %c240_i32_30 dim 1 : vector<1x256xf32>, i32 -> vector<1x256xf32>
    %219 = arith.subf %218, %217 : vector<1x256xf32>
    %220 = arith.mulf %2, %219 : vector<1x256xf32>
    %221 = arith.addf %217, %220 : vector<1x256xf32>
    %222 = arith.subf %217, %218 : vector<1x256xf32>
    %223 = arith.mulf %3, %222 : vector<1x256xf32>
    %224 = arith.addf %218, %223 : vector<1x256xf32>
    %c9 = arith.constant 9 : index
    %225 = memref.load %arg2[%c9] : memref<144xf32, #tpu.memory_space<smem>>
    %226 = vector.broadcast %225 : f32 to vector<1x256xf32>
    %227 = arith.mulf %205, %226 : vector<1x256xf32>
    %228 = arith.addf %178, %227 : vector<1x256xf32>
    %c45 = arith.constant 45 : index
    %229 = memref.load %arg2[%c45] : memref<144xf32, #tpu.memory_space<smem>>
    %230 = vector.broadcast %229 : f32 to vector<1x256xf32>
    %231 = arith.mulf %205, %230 : vector<1x256xf32>
    %232 = arith.addf %182, %231 : vector<1x256xf32>
    %c81 = arith.constant 81 : index
    %233 = memref.load %arg2[%c81] : memref<144xf32, #tpu.memory_space<smem>>
    %234 = vector.broadcast %233 : f32 to vector<1x256xf32>
    %235 = arith.mulf %205, %234 : vector<1x256xf32>
    %236 = arith.addf %186, %235 : vector<1x256xf32>
    %c117 = arith.constant 117 : index
    %237 = memref.load %arg2[%c117] : memref<144xf32, #tpu.memory_space<smem>>
    %238 = vector.broadcast %237 : f32 to vector<1x256xf32>
    %239 = arith.mulf %205, %238 : vector<1x256xf32>
    %240 = arith.addf %190, %239 : vector<1x256xf32>
    %c10 = arith.constant 10 : index
    %241 = memref.load %arg2[%c10] : memref<144xf32, #tpu.memory_space<smem>>
    %242 = vector.broadcast %241 : f32 to vector<1x256xf32>
    %243 = arith.mulf %213, %242 : vector<1x256xf32>
    %244 = arith.addf %228, %243 : vector<1x256xf32>
    %c46 = arith.constant 46 : index
    %245 = memref.load %arg2[%c46] : memref<144xf32, #tpu.memory_space<smem>>
    %246 = vector.broadcast %245 : f32 to vector<1x256xf32>
    %247 = arith.mulf %213, %246 : vector<1x256xf32>
    %248 = arith.addf %232, %247 : vector<1x256xf32>
    %c82 = arith.constant 82 : index
    %249 = memref.load %arg2[%c82] : memref<144xf32, #tpu.memory_space<smem>>
    %250 = vector.broadcast %249 : f32 to vector<1x256xf32>
    %251 = arith.mulf %213, %250 : vector<1x256xf32>
    %252 = arith.addf %236, %251 : vector<1x256xf32>
    %c118 = arith.constant 118 : index
    %253 = memref.load %arg2[%c118] : memref<144xf32, #tpu.memory_space<smem>>
    %254 = vector.broadcast %253 : f32 to vector<1x256xf32>
    %255 = arith.mulf %213, %254 : vector<1x256xf32>
    %256 = arith.addf %240, %255 : vector<1x256xf32>
    %c11 = arith.constant 11 : index
    %257 = memref.load %arg2[%c11] : memref<144xf32, #tpu.memory_space<smem>>
    %258 = vector.broadcast %257 : f32 to vector<1x256xf32>
    %259 = arith.mulf %221, %258 : vector<1x256xf32>
    %260 = arith.addf %244, %259 : vector<1x256xf32>
    %c47 = arith.constant 47 : index
    %261 = memref.load %arg2[%c47] : memref<144xf32, #tpu.memory_space<smem>>
    %262 = vector.broadcast %261 : f32 to vector<1x256xf32>
    %263 = arith.mulf %221, %262 : vector<1x256xf32>
    %264 = arith.addf %248, %263 : vector<1x256xf32>
    %c83 = arith.constant 83 : index
    %265 = memref.load %arg2[%c83] : memref<144xf32, #tpu.memory_space<smem>>
    %266 = vector.broadcast %265 : f32 to vector<1x256xf32>
    %267 = arith.mulf %221, %266 : vector<1x256xf32>
    %268 = arith.addf %252, %267 : vector<1x256xf32>
    %c119 = arith.constant 119 : index
    %269 = memref.load %arg2[%c119] : memref<144xf32, #tpu.memory_space<smem>>
    %270 = vector.broadcast %269 : f32 to vector<1x256xf32>
    %271 = arith.mulf %221, %270 : vector<1x256xf32>
    %272 = arith.addf %256, %271 : vector<1x256xf32>
    %c12 = arith.constant 12 : index
    %273 = memref.load %arg2[%c12] : memref<144xf32, #tpu.memory_space<smem>>
    %274 = vector.broadcast %273 : f32 to vector<1x256xf32>
    %275 = arith.mulf %197, %274 : vector<1x256xf32>
    %276 = arith.addf %260, %275 : vector<1x256xf32>
    %c48 = arith.constant 48 : index
    %277 = memref.load %arg2[%c48] : memref<144xf32, #tpu.memory_space<smem>>
    %278 = vector.broadcast %277 : f32 to vector<1x256xf32>
    %279 = arith.mulf %197, %278 : vector<1x256xf32>
    %280 = arith.addf %264, %279 : vector<1x256xf32>
    %c84 = arith.constant 84 : index
    %281 = memref.load %arg2[%c84] : memref<144xf32, #tpu.memory_space<smem>>
    %282 = vector.broadcast %281 : f32 to vector<1x256xf32>
    %283 = arith.mulf %197, %282 : vector<1x256xf32>
    %284 = arith.addf %268, %283 : vector<1x256xf32>
    %c120 = arith.constant 120 : index
    %285 = memref.load %arg2[%c120] : memref<144xf32, #tpu.memory_space<smem>>
    %286 = vector.broadcast %285 : f32 to vector<1x256xf32>
    %287 = arith.mulf %197, %286 : vector<1x256xf32>
    %288 = arith.addf %272, %287 : vector<1x256xf32>
    %c13 = arith.constant 13 : index
    %289 = memref.load %arg2[%c13] : memref<144xf32, #tpu.memory_space<smem>>
    %290 = vector.broadcast %289 : f32 to vector<1x256xf32>
    %291 = arith.mulf %192, %290 : vector<1x256xf32>
    %292 = arith.addf %276, %291 : vector<1x256xf32>
    %c49 = arith.constant 49 : index
    %293 = memref.load %arg2[%c49] : memref<144xf32, #tpu.memory_space<smem>>
    %294 = vector.broadcast %293 : f32 to vector<1x256xf32>
    %295 = arith.mulf %192, %294 : vector<1x256xf32>
    %296 = arith.addf %280, %295 : vector<1x256xf32>
    %c85 = arith.constant 85 : index
    %297 = memref.load %arg2[%c85] : memref<144xf32, #tpu.memory_space<smem>>
    %298 = vector.broadcast %297 : f32 to vector<1x256xf32>
    %299 = arith.mulf %192, %298 : vector<1x256xf32>
    %300 = arith.addf %284, %299 : vector<1x256xf32>
    %c121 = arith.constant 121 : index
    %301 = memref.load %arg2[%c121] : memref<144xf32, #tpu.memory_space<smem>>
    %302 = vector.broadcast %301 : f32 to vector<1x256xf32>
    %303 = arith.mulf %192, %302 : vector<1x256xf32>
    %304 = arith.addf %288, %303 : vector<1x256xf32>
    %c14 = arith.constant 14 : index
    %305 = memref.load %arg2[%c14] : memref<144xf32, #tpu.memory_space<smem>>
    %306 = vector.broadcast %305 : f32 to vector<1x256xf32>
    %307 = arith.mulf %200, %306 : vector<1x256xf32>
    %308 = arith.addf %292, %307 : vector<1x256xf32>
    %c50 = arith.constant 50 : index
    %309 = memref.load %arg2[%c50] : memref<144xf32, #tpu.memory_space<smem>>
    %310 = vector.broadcast %309 : f32 to vector<1x256xf32>
    %311 = arith.mulf %200, %310 : vector<1x256xf32>
    %312 = arith.addf %296, %311 : vector<1x256xf32>
    %c86 = arith.constant 86 : index
    %313 = memref.load %arg2[%c86] : memref<144xf32, #tpu.memory_space<smem>>
    %314 = vector.broadcast %313 : f32 to vector<1x256xf32>
    %315 = arith.mulf %200, %314 : vector<1x256xf32>
    %316 = arith.addf %300, %315 : vector<1x256xf32>
    %c122 = arith.constant 122 : index
    %317 = memref.load %arg2[%c122] : memref<144xf32, #tpu.memory_space<smem>>
    %318 = vector.broadcast %317 : f32 to vector<1x256xf32>
    %319 = arith.mulf %200, %318 : vector<1x256xf32>
    %320 = arith.addf %304, %319 : vector<1x256xf32>
    %c15 = arith.constant 15 : index
    %321 = memref.load %arg2[%c15] : memref<144xf32, #tpu.memory_space<smem>>
    %322 = vector.broadcast %321 : f32 to vector<1x256xf32>
    %323 = arith.mulf %208, %322 : vector<1x256xf32>
    %324 = arith.addf %308, %323 : vector<1x256xf32>
    %c51 = arith.constant 51 : index
    %325 = memref.load %arg2[%c51] : memref<144xf32, #tpu.memory_space<smem>>
    %326 = vector.broadcast %325 : f32 to vector<1x256xf32>
    %327 = arith.mulf %208, %326 : vector<1x256xf32>
    %328 = arith.addf %312, %327 : vector<1x256xf32>
    %c87 = arith.constant 87 : index
    %329 = memref.load %arg2[%c87] : memref<144xf32, #tpu.memory_space<smem>>
    %330 = vector.broadcast %329 : f32 to vector<1x256xf32>
    %331 = arith.mulf %208, %330 : vector<1x256xf32>
    %332 = arith.addf %316, %331 : vector<1x256xf32>
    %c123 = arith.constant 123 : index
    %333 = memref.load %arg2[%c123] : memref<144xf32, #tpu.memory_space<smem>>
    %334 = vector.broadcast %333 : f32 to vector<1x256xf32>
    %335 = arith.mulf %208, %334 : vector<1x256xf32>
    %336 = arith.addf %320, %335 : vector<1x256xf32>
    %c16 = arith.constant 16 : index
    %337 = memref.load %arg2[%c16] : memref<144xf32, #tpu.memory_space<smem>>
    %338 = vector.broadcast %337 : f32 to vector<1x256xf32>
    %339 = arith.mulf %216, %338 : vector<1x256xf32>
    %340 = arith.addf %324, %339 : vector<1x256xf32>
    %c52 = arith.constant 52 : index
    %341 = memref.load %arg2[%c52] : memref<144xf32, #tpu.memory_space<smem>>
    %342 = vector.broadcast %341 : f32 to vector<1x256xf32>
    %343 = arith.mulf %216, %342 : vector<1x256xf32>
    %344 = arith.addf %328, %343 : vector<1x256xf32>
    %c88 = arith.constant 88 : index
    %345 = memref.load %arg2[%c88] : memref<144xf32, #tpu.memory_space<smem>>
    %346 = vector.broadcast %345 : f32 to vector<1x256xf32>
    %347 = arith.mulf %216, %346 : vector<1x256xf32>
    %348 = arith.addf %332, %347 : vector<1x256xf32>
    %c124 = arith.constant 124 : index
    %349 = memref.load %arg2[%c124] : memref<144xf32, #tpu.memory_space<smem>>
    %350 = vector.broadcast %349 : f32 to vector<1x256xf32>
    %351 = arith.mulf %216, %350 : vector<1x256xf32>
    %352 = arith.addf %336, %351 : vector<1x256xf32>
    %c17 = arith.constant 17 : index
    %353 = memref.load %arg2[%c17] : memref<144xf32, #tpu.memory_space<smem>>
    %354 = vector.broadcast %353 : f32 to vector<1x256xf32>
    %355 = arith.mulf %224, %354 : vector<1x256xf32>
    %356 = arith.addf %340, %355 : vector<1x256xf32>
    %c53 = arith.constant 53 : index
    %357 = memref.load %arg2[%c53] : memref<144xf32, #tpu.memory_space<smem>>
    %358 = vector.broadcast %357 : f32 to vector<1x256xf32>
    %359 = arith.mulf %224, %358 : vector<1x256xf32>
    %360 = arith.addf %344, %359 : vector<1x256xf32>
    %c89 = arith.constant 89 : index
    %361 = memref.load %arg2[%c89] : memref<144xf32, #tpu.memory_space<smem>>
    %362 = vector.broadcast %361 : f32 to vector<1x256xf32>
    %363 = arith.mulf %224, %362 : vector<1x256xf32>
    %364 = arith.addf %348, %363 : vector<1x256xf32>
    %c125 = arith.constant 125 : index
    %365 = memref.load %arg2[%c125] : memref<144xf32, #tpu.memory_space<smem>>
    %366 = vector.broadcast %365 : f32 to vector<1x256xf32>
    %367 = arith.mulf %224, %366 : vector<1x256xf32>
    %368 = arith.addf %352, %367 : vector<1x256xf32>
    %c0_31 = arith.constant 0 : index
    %c2_32 = arith.constant 2 : index
    %c0_33 = arith.constant 0 : index
    %369 = vector.load %arg1[%c0_31, %c2_32, %c0_33] : memref<1x4x256xf32, #tpu.memory_space<vmem>>, vector<1x1x256xf32>
    %370 = vector.shape_cast %369 : vector<1x1x256xf32> to vector<1x256xf32>
    %c1_i32_34 = arith.constant 1 : i32
    %371 = tpu.dynamic_rotate %370 by %c1_i32_34 dim 1 : vector<1x256xf32>, i32 -> vector<1x256xf32>
    %c255_i32_35 = arith.constant 255 : i32
    %372 = tpu.dynamic_rotate %370 by %c255_i32_35 dim 1 : vector<1x256xf32>, i32 -> vector<1x256xf32>
    %373 = arith.subf %372, %371 : vector<1x256xf32>
    %374 = arith.mulf %0, %373 : vector<1x256xf32>
    %375 = arith.addf %371, %374 : vector<1x256xf32>
    %376 = arith.subf %371, %372 : vector<1x256xf32>
    %377 = arith.mulf %1, %376 : vector<1x256xf32>
    %378 = arith.addf %372, %377 : vector<1x256xf32>
    %c16_i32_36 = arith.constant 16 : i32
    %379 = tpu.dynamic_rotate %375 by %c16_i32_36 dim 1 : vector<1x256xf32>, i32 -> vector<1x256xf32>
    %c240_i32_37 = arith.constant 240 : i32
    %380 = tpu.dynamic_rotate %375 by %c240_i32_37 dim 1 : vector<1x256xf32>, i32 -> vector<1x256xf32>
    %381 = arith.subf %380, %379 : vector<1x256xf32>
    %382 = arith.mulf %2, %381 : vector<1x256xf32>
    %383 = arith.addf %379, %382 : vector<1x256xf32>
    %384 = arith.subf %379, %380 : vector<1x256xf32>
    %385 = arith.mulf %3, %384 : vector<1x256xf32>
    %386 = arith.addf %380, %385 : vector<1x256xf32>
    %c16_i32_38 = arith.constant 16 : i32
    %387 = tpu.dynamic_rotate %370 by %c16_i32_38 dim 1 : vector<1x256xf32>, i32 -> vector<1x256xf32>
    %c240_i32_39 = arith.constant 240 : i32
    %388 = tpu.dynamic_rotate %370 by %c240_i32_39 dim 1 : vector<1x256xf32>, i32 -> vector<1x256xf32>
    %389 = arith.subf %388, %387 : vector<1x256xf32>
    %390 = arith.mulf %2, %389 : vector<1x256xf32>
    %391 = arith.addf %387, %390 : vector<1x256xf32>
    %392 = arith.subf %387, %388 : vector<1x256xf32>
    %393 = arith.mulf %3, %392 : vector<1x256xf32>
    %394 = arith.addf %388, %393 : vector<1x256xf32>
    %c16_i32_40 = arith.constant 16 : i32
    %395 = tpu.dynamic_rotate %378 by %c16_i32_40 dim 1 : vector<1x256xf32>, i32 -> vector<1x256xf32>
    %c240_i32_41 = arith.constant 240 : i32
    %396 = tpu.dynamic_rotate %378 by %c240_i32_41 dim 1 : vector<1x256xf32>, i32 -> vector<1x256xf32>
    %397 = arith.subf %396, %395 : vector<1x256xf32>
    %398 = arith.mulf %2, %397 : vector<1x256xf32>
    %399 = arith.addf %395, %398 : vector<1x256xf32>
    %400 = arith.subf %395, %396 : vector<1x256xf32>
    %401 = arith.mulf %3, %400 : vector<1x256xf32>
    %402 = arith.addf %396, %401 : vector<1x256xf32>
    %c18 = arith.constant 18 : index
    %403 = memref.load %arg2[%c18] : memref<144xf32, #tpu.memory_space<smem>>
    %404 = vector.broadcast %403 : f32 to vector<1x256xf32>
    %405 = arith.mulf %383, %404 : vector<1x256xf32>
    %406 = arith.addf %356, %405 : vector<1x256xf32>
    %c54 = arith.constant 54 : index
    %407 = memref.load %arg2[%c54] : memref<144xf32, #tpu.memory_space<smem>>
    %408 = vector.broadcast %407 : f32 to vector<1x256xf32>
    %409 = arith.mulf %383, %408 : vector<1x256xf32>
    %410 = arith.addf %360, %409 : vector<1x256xf32>
    %c90 = arith.constant 90 : index
    %411 = memref.load %arg2[%c90] : memref<144xf32, #tpu.memory_space<smem>>
    %412 = vector.broadcast %411 : f32 to vector<1x256xf32>
    %413 = arith.mulf %383, %412 : vector<1x256xf32>
    %414 = arith.addf %364, %413 : vector<1x256xf32>
    %c126 = arith.constant 126 : index
    %415 = memref.load %arg2[%c126] : memref<144xf32, #tpu.memory_space<smem>>
    %416 = vector.broadcast %415 : f32 to vector<1x256xf32>
    %417 = arith.mulf %383, %416 : vector<1x256xf32>
    %418 = arith.addf %368, %417 : vector<1x256xf32>
    %c19 = arith.constant 19 : index
    %419 = memref.load %arg2[%c19] : memref<144xf32, #tpu.memory_space<smem>>
    %420 = vector.broadcast %419 : f32 to vector<1x256xf32>
    %421 = arith.mulf %391, %420 : vector<1x256xf32>
    %422 = arith.addf %406, %421 : vector<1x256xf32>
    %c55 = arith.constant 55 : index
    %423 = memref.load %arg2[%c55] : memref<144xf32, #tpu.memory_space<smem>>
    %424 = vector.broadcast %423 : f32 to vector<1x256xf32>
    %425 = arith.mulf %391, %424 : vector<1x256xf32>
    %426 = arith.addf %410, %425 : vector<1x256xf32>
    %c91 = arith.constant 91 : index
    %427 = memref.load %arg2[%c91] : memref<144xf32, #tpu.memory_space<smem>>
    %428 = vector.broadcast %427 : f32 to vector<1x256xf32>
    %429 = arith.mulf %391, %428 : vector<1x256xf32>
    %430 = arith.addf %414, %429 : vector<1x256xf32>
    %c127 = arith.constant 127 : index
    %431 = memref.load %arg2[%c127] : memref<144xf32, #tpu.memory_space<smem>>
    %432 = vector.broadcast %431 : f32 to vector<1x256xf32>
    %433 = arith.mulf %391, %432 : vector<1x256xf32>
    %434 = arith.addf %418, %433 : vector<1x256xf32>
    %c20 = arith.constant 20 : index
    %435 = memref.load %arg2[%c20] : memref<144xf32, #tpu.memory_space<smem>>
    %436 = vector.broadcast %435 : f32 to vector<1x256xf32>
    %437 = arith.mulf %399, %436 : vector<1x256xf32>
    %438 = arith.addf %422, %437 : vector<1x256xf32>
    %c56 = arith.constant 56 : index
    %439 = memref.load %arg2[%c56] : memref<144xf32, #tpu.memory_space<smem>>
    %440 = vector.broadcast %439 : f32 to vector<1x256xf32>
    %441 = arith.mulf %399, %440 : vector<1x256xf32>
    %442 = arith.addf %426, %441 : vector<1x256xf32>
    %c92 = arith.constant 92 : index
    %443 = memref.load %arg2[%c92] : memref<144xf32, #tpu.memory_space<smem>>
    %444 = vector.broadcast %443 : f32 to vector<1x256xf32>
    %445 = arith.mulf %399, %444 : vector<1x256xf32>
    %446 = arith.addf %430, %445 : vector<1x256xf32>
    %c128 = arith.constant 128 : index
    %447 = memref.load %arg2[%c128] : memref<144xf32, #tpu.memory_space<smem>>
    %448 = vector.broadcast %447 : f32 to vector<1x256xf32>
    %449 = arith.mulf %399, %448 : vector<1x256xf32>
    %450 = arith.addf %434, %449 : vector<1x256xf32>
    %c21 = arith.constant 21 : index
    %451 = memref.load %arg2[%c21] : memref<144xf32, #tpu.memory_space<smem>>
    %452 = vector.broadcast %451 : f32 to vector<1x256xf32>
    %453 = arith.mulf %375, %452 : vector<1x256xf32>
    %454 = arith.addf %438, %453 : vector<1x256xf32>
    %c57 = arith.constant 57 : index
    %455 = memref.load %arg2[%c57] : memref<144xf32, #tpu.memory_space<smem>>
    %456 = vector.broadcast %455 : f32 to vector<1x256xf32>
    %457 = arith.mulf %375, %456 : vector<1x256xf32>
    %458 = arith.addf %442, %457 : vector<1x256xf32>
    %c93 = arith.constant 93 : index
    %459 = memref.load %arg2[%c93] : memref<144xf32, #tpu.memory_space<smem>>
    %460 = vector.broadcast %459 : f32 to vector<1x256xf32>
    %461 = arith.mulf %375, %460 : vector<1x256xf32>
    %462 = arith.addf %446, %461 : vector<1x256xf32>
    %c129 = arith.constant 129 : index
    %463 = memref.load %arg2[%c129] : memref<144xf32, #tpu.memory_space<smem>>
    %464 = vector.broadcast %463 : f32 to vector<1x256xf32>
    %465 = arith.mulf %375, %464 : vector<1x256xf32>
    %466 = arith.addf %450, %465 : vector<1x256xf32>
    %c22 = arith.constant 22 : index
    %467 = memref.load %arg2[%c22] : memref<144xf32, #tpu.memory_space<smem>>
    %468 = vector.broadcast %467 : f32 to vector<1x256xf32>
    %469 = arith.mulf %370, %468 : vector<1x256xf32>
    %470 = arith.addf %454, %469 : vector<1x256xf32>
    %c58 = arith.constant 58 : index
    %471 = memref.load %arg2[%c58] : memref<144xf32, #tpu.memory_space<smem>>
    %472 = vector.broadcast %471 : f32 to vector<1x256xf32>
    %473 = arith.mulf %370, %472 : vector<1x256xf32>
    %474 = arith.addf %458, %473 : vector<1x256xf32>
    %c94 = arith.constant 94 : index
    %475 = memref.load %arg2[%c94] : memref<144xf32, #tpu.memory_space<smem>>
    %476 = vector.broadcast %475 : f32 to vector<1x256xf32>
    %477 = arith.mulf %370, %476 : vector<1x256xf32>
    %478 = arith.addf %462, %477 : vector<1x256xf32>
    %c130 = arith.constant 130 : index
    %479 = memref.load %arg2[%c130] : memref<144xf32, #tpu.memory_space<smem>>
    %480 = vector.broadcast %479 : f32 to vector<1x256xf32>
    %481 = arith.mulf %370, %480 : vector<1x256xf32>
    %482 = arith.addf %466, %481 : vector<1x256xf32>
    %c23 = arith.constant 23 : index
    %483 = memref.load %arg2[%c23] : memref<144xf32, #tpu.memory_space<smem>>
    %484 = vector.broadcast %483 : f32 to vector<1x256xf32>
    %485 = arith.mulf %378, %484 : vector<1x256xf32>
    %486 = arith.addf %470, %485 : vector<1x256xf32>
    %c59 = arith.constant 59 : index
    %487 = memref.load %arg2[%c59] : memref<144xf32, #tpu.memory_space<smem>>
    %488 = vector.broadcast %487 : f32 to vector<1x256xf32>
    %489 = arith.mulf %378, %488 : vector<1x256xf32>
    %490 = arith.addf %474, %489 : vector<1x256xf32>
    %c95 = arith.constant 95 : index
    %491 = memref.load %arg2[%c95] : memref<144xf32, #tpu.memory_space<smem>>
    %492 = vector.broadcast %491 : f32 to vector<1x256xf32>
    %493 = arith.mulf %378, %492 : vector<1x256xf32>
    %494 = arith.addf %478, %493 : vector<1x256xf32>
    %c131 = arith.constant 131 : index
    %495 = memref.load %arg2[%c131] : memref<144xf32, #tpu.memory_space<smem>>
    %496 = vector.broadcast %495 : f32 to vector<1x256xf32>
    %497 = arith.mulf %378, %496 : vector<1x256xf32>
    %498 = arith.addf %482, %497 : vector<1x256xf32>
    %c24 = arith.constant 24 : index
    %499 = memref.load %arg2[%c24] : memref<144xf32, #tpu.memory_space<smem>>
    %500 = vector.broadcast %499 : f32 to vector<1x256xf32>
    %501 = arith.mulf %386, %500 : vector<1x256xf32>
    %502 = arith.addf %486, %501 : vector<1x256xf32>
    %c60 = arith.constant 60 : index
    %503 = memref.load %arg2[%c60] : memref<144xf32, #tpu.memory_space<smem>>
    %504 = vector.broadcast %503 : f32 to vector<1x256xf32>
    %505 = arith.mulf %386, %504 : vector<1x256xf32>
    %506 = arith.addf %490, %505 : vector<1x256xf32>
    %c96 = arith.constant 96 : index
    %507 = memref.load %arg2[%c96] : memref<144xf32, #tpu.memory_space<smem>>
    %508 = vector.broadcast %507 : f32 to vector<1x256xf32>
    %509 = arith.mulf %386, %508 : vector<1x256xf32>
    %510 = arith.addf %494, %509 : vector<1x256xf32>
    %c132 = arith.constant 132 : index
    %511 = memref.load %arg2[%c132] : memref<144xf32, #tpu.memory_space<smem>>
    %512 = vector.broadcast %511 : f32 to vector<1x256xf32>
    %513 = arith.mulf %386, %512 : vector<1x256xf32>
    %514 = arith.addf %498, %513 : vector<1x256xf32>
    %c25 = arith.constant 25 : index
    %515 = memref.load %arg2[%c25] : memref<144xf32, #tpu.memory_space<smem>>
    %516 = vector.broadcast %515 : f32 to vector<1x256xf32>
    %517 = arith.mulf %394, %516 : vector<1x256xf32>
    %518 = arith.addf %502, %517 : vector<1x256xf32>
    %c61 = arith.constant 61 : index
    %519 = memref.load %arg2[%c61] : memref<144xf32, #tpu.memory_space<smem>>
    %520 = vector.broadcast %519 : f32 to vector<1x256xf32>
    %521 = arith.mulf %394, %520 : vector<1x256xf32>
    %522 = arith.addf %506, %521 : vector<1x256xf32>
    %c97 = arith.constant 97 : index
    %523 = memref.load %arg2[%c97] : memref<144xf32, #tpu.memory_space<smem>>
    %524 = vector.broadcast %523 : f32 to vector<1x256xf32>
    %525 = arith.mulf %394, %524 : vector<1x256xf32>
    %526 = arith.addf %510, %525 : vector<1x256xf32>
    %c133 = arith.constant 133 : index
    %527 = memref.load %arg2[%c133] : memref<144xf32, #tpu.memory_space<smem>>
    %528 = vector.broadcast %527 : f32 to vector<1x256xf32>
    %529 = arith.mulf %394, %528 : vector<1x256xf32>
    %530 = arith.addf %514, %529 : vector<1x256xf32>
    %c26 = arith.constant 26 : index
    %531 = memref.load %arg2[%c26] : memref<144xf32, #tpu.memory_space<smem>>
    %532 = vector.broadcast %531 : f32 to vector<1x256xf32>
    %533 = arith.mulf %402, %532 : vector<1x256xf32>
    %534 = arith.addf %518, %533 : vector<1x256xf32>
    %c62 = arith.constant 62 : index
    %535 = memref.load %arg2[%c62] : memref<144xf32, #tpu.memory_space<smem>>
    %536 = vector.broadcast %535 : f32 to vector<1x256xf32>
    %537 = arith.mulf %402, %536 : vector<1x256xf32>
    %538 = arith.addf %522, %537 : vector<1x256xf32>
    %c98 = arith.constant 98 : index
    %539 = memref.load %arg2[%c98] : memref<144xf32, #tpu.memory_space<smem>>
    %540 = vector.broadcast %539 : f32 to vector<1x256xf32>
    %541 = arith.mulf %402, %540 : vector<1x256xf32>
    %542 = arith.addf %526, %541 : vector<1x256xf32>
    %c134 = arith.constant 134 : index
    %543 = memref.load %arg2[%c134] : memref<144xf32, #tpu.memory_space<smem>>
    %544 = vector.broadcast %543 : f32 to vector<1x256xf32>
    %545 = arith.mulf %402, %544 : vector<1x256xf32>
    %546 = arith.addf %530, %545 : vector<1x256xf32>
    %c0_42 = arith.constant 0 : index
    %c3_43 = arith.constant 3 : index
    %c0_44 = arith.constant 0 : index
    %547 = vector.load %arg1[%c0_42, %c3_43, %c0_44] : memref<1x4x256xf32, #tpu.memory_space<vmem>>, vector<1x1x256xf32>
    %548 = vector.shape_cast %547 : vector<1x1x256xf32> to vector<1x256xf32>
    %c1_i32_45 = arith.constant 1 : i32
    %549 = tpu.dynamic_rotate %548 by %c1_i32_45 dim 1 : vector<1x256xf32>, i32 -> vector<1x256xf32>
    %c255_i32_46 = arith.constant 255 : i32
    %550 = tpu.dynamic_rotate %548 by %c255_i32_46 dim 1 : vector<1x256xf32>, i32 -> vector<1x256xf32>
    %551 = arith.subf %550, %549 : vector<1x256xf32>
    %552 = arith.mulf %0, %551 : vector<1x256xf32>
    %553 = arith.addf %549, %552 : vector<1x256xf32>
    %554 = arith.subf %549, %550 : vector<1x256xf32>
    %555 = arith.mulf %1, %554 : vector<1x256xf32>
    %556 = arith.addf %550, %555 : vector<1x256xf32>
    %c16_i32_47 = arith.constant 16 : i32
    %557 = tpu.dynamic_rotate %553 by %c16_i32_47 dim 1 : vector<1x256xf32>, i32 -> vector<1x256xf32>
    %c240_i32_48 = arith.constant 240 : i32
    %558 = tpu.dynamic_rotate %553 by %c240_i32_48 dim 1 : vector<1x256xf32>, i32 -> vector<1x256xf32>
    %559 = arith.subf %558, %557 : vector<1x256xf32>
    %560 = arith.mulf %2, %559 : vector<1x256xf32>
    %561 = arith.addf %557, %560 : vector<1x256xf32>
    %562 = arith.subf %557, %558 : vector<1x256xf32>
    %563 = arith.mulf %3, %562 : vector<1x256xf32>
    %564 = arith.addf %558, %563 : vector<1x256xf32>
    %c16_i32_49 = arith.constant 16 : i32
    %565 = tpu.dynamic_rotate %548 by %c16_i32_49 dim 1 : vector<1x256xf32>, i32 -> vector<1x256xf32>
    %c240_i32_50 = arith.constant 240 : i32
    %566 = tpu.dynamic_rotate %548 by %c240_i32_50 dim 1 : vector<1x256xf32>, i32 -> vector<1x256xf32>
    %567 = arith.subf %566, %565 : vector<1x256xf32>
    %568 = arith.mulf %2, %567 : vector<1x256xf32>
    %569 = arith.addf %565, %568 : vector<1x256xf32>
    %570 = arith.subf %565, %566 : vector<1x256xf32>
    %571 = arith.mulf %3, %570 : vector<1x256xf32>
    %572 = arith.addf %566, %571 : vector<1x256xf32>
    %c16_i32_51 = arith.constant 16 : i32
    %573 = tpu.dynamic_rotate %556 by %c16_i32_51 dim 1 : vector<1x256xf32>, i32 -> vector<1x256xf32>
    %c240_i32_52 = arith.constant 240 : i32
    %574 = tpu.dynamic_rotate %556 by %c240_i32_52 dim 1 : vector<1x256xf32>, i32 -> vector<1x256xf32>
    %575 = arith.subf %574, %573 : vector<1x256xf32>
    %576 = arith.mulf %2, %575 : vector<1x256xf32>
    %577 = arith.addf %573, %576 : vector<1x256xf32>
    %578 = arith.subf %573, %574 : vector<1x256xf32>
    %579 = arith.mulf %3, %578 : vector<1x256xf32>
    %580 = arith.addf %574, %579 : vector<1x256xf32>
    %c27 = arith.constant 27 : index
    %581 = memref.load %arg2[%c27] : memref<144xf32, #tpu.memory_space<smem>>
    %582 = vector.broadcast %581 : f32 to vector<1x256xf32>
    %583 = arith.mulf %561, %582 : vector<1x256xf32>
    %584 = arith.addf %534, %583 : vector<1x256xf32>
    %c63 = arith.constant 63 : index
    %585 = memref.load %arg2[%c63] : memref<144xf32, #tpu.memory_space<smem>>
    %586 = vector.broadcast %585 : f32 to vector<1x256xf32>
    %587 = arith.mulf %561, %586 : vector<1x256xf32>
    %588 = arith.addf %538, %587 : vector<1x256xf32>
    %c99 = arith.constant 99 : index
    %589 = memref.load %arg2[%c99] : memref<144xf32, #tpu.memory_space<smem>>
    %590 = vector.broadcast %589 : f32 to vector<1x256xf32>
    %591 = arith.mulf %561, %590 : vector<1x256xf32>
    %592 = arith.addf %542, %591 : vector<1x256xf32>
    %c135 = arith.constant 135 : index
    %593 = memref.load %arg2[%c135] : memref<144xf32, #tpu.memory_space<smem>>
    %594 = vector.broadcast %593 : f32 to vector<1x256xf32>
    %595 = arith.mulf %561, %594 : vector<1x256xf32>
    %596 = arith.addf %546, %595 : vector<1x256xf32>
    %c28 = arith.constant 28 : index
    %597 = memref.load %arg2[%c28] : memref<144xf32, #tpu.memory_space<smem>>
    %598 = vector.broadcast %597 : f32 to vector<1x256xf32>
    %599 = arith.mulf %569, %598 : vector<1x256xf32>
    %600 = arith.addf %584, %599 : vector<1x256xf32>
    %c64 = arith.constant 64 : index
    %601 = memref.load %arg2[%c64] : memref<144xf32, #tpu.memory_space<smem>>
    %602 = vector.broadcast %601 : f32 to vector<1x256xf32>
    %603 = arith.mulf %569, %602 : vector<1x256xf32>
    %604 = arith.addf %588, %603 : vector<1x256xf32>
    %c100 = arith.constant 100 : index
    %605 = memref.load %arg2[%c100] : memref<144xf32, #tpu.memory_space<smem>>
    %606 = vector.broadcast %605 : f32 to vector<1x256xf32>
    %607 = arith.mulf %569, %606 : vector<1x256xf32>
    %608 = arith.addf %592, %607 : vector<1x256xf32>
    %c136 = arith.constant 136 : index
    %609 = memref.load %arg2[%c136] : memref<144xf32, #tpu.memory_space<smem>>
    %610 = vector.broadcast %609 : f32 to vector<1x256xf32>
    %611 = arith.mulf %569, %610 : vector<1x256xf32>
    %612 = arith.addf %596, %611 : vector<1x256xf32>
    %c29 = arith.constant 29 : index
    %613 = memref.load %arg2[%c29] : memref<144xf32, #tpu.memory_space<smem>>
    %614 = vector.broadcast %613 : f32 to vector<1x256xf32>
    %615 = arith.mulf %577, %614 : vector<1x256xf32>
    %616 = arith.addf %600, %615 : vector<1x256xf32>
    %c65 = arith.constant 65 : index
    %617 = memref.load %arg2[%c65] : memref<144xf32, #tpu.memory_space<smem>>
    %618 = vector.broadcast %617 : f32 to vector<1x256xf32>
    %619 = arith.mulf %577, %618 : vector<1x256xf32>
    %620 = arith.addf %604, %619 : vector<1x256xf32>
    %c101 = arith.constant 101 : index
    %621 = memref.load %arg2[%c101] : memref<144xf32, #tpu.memory_space<smem>>
    %622 = vector.broadcast %621 : f32 to vector<1x256xf32>
    %623 = arith.mulf %577, %622 : vector<1x256xf32>
    %624 = arith.addf %608, %623 : vector<1x256xf32>
    %c137 = arith.constant 137 : index
    %625 = memref.load %arg2[%c137] : memref<144xf32, #tpu.memory_space<smem>>
    %626 = vector.broadcast %625 : f32 to vector<1x256xf32>
    %627 = arith.mulf %577, %626 : vector<1x256xf32>
    %628 = arith.addf %612, %627 : vector<1x256xf32>
    %c30 = arith.constant 30 : index
    %629 = memref.load %arg2[%c30] : memref<144xf32, #tpu.memory_space<smem>>
    %630 = vector.broadcast %629 : f32 to vector<1x256xf32>
    %631 = arith.mulf %553, %630 : vector<1x256xf32>
    %632 = arith.addf %616, %631 : vector<1x256xf32>
    %c66 = arith.constant 66 : index
    %633 = memref.load %arg2[%c66] : memref<144xf32, #tpu.memory_space<smem>>
    %634 = vector.broadcast %633 : f32 to vector<1x256xf32>
    %635 = arith.mulf %553, %634 : vector<1x256xf32>
    %636 = arith.addf %620, %635 : vector<1x256xf32>
    %c102 = arith.constant 102 : index
    %637 = memref.load %arg2[%c102] : memref<144xf32, #tpu.memory_space<smem>>
    %638 = vector.broadcast %637 : f32 to vector<1x256xf32>
    %639 = arith.mulf %553, %638 : vector<1x256xf32>
    %640 = arith.addf %624, %639 : vector<1x256xf32>
    %c138 = arith.constant 138 : index
    %641 = memref.load %arg2[%c138] : memref<144xf32, #tpu.memory_space<smem>>
    %642 = vector.broadcast %641 : f32 to vector<1x256xf32>
    %643 = arith.mulf %553, %642 : vector<1x256xf32>
    %644 = arith.addf %628, %643 : vector<1x256xf32>
    %c31 = arith.constant 31 : index
    %645 = memref.load %arg2[%c31] : memref<144xf32, #tpu.memory_space<smem>>
    %646 = vector.broadcast %645 : f32 to vector<1x256xf32>
    %647 = arith.mulf %548, %646 : vector<1x256xf32>
    %648 = arith.addf %632, %647 : vector<1x256xf32>
    %c67 = arith.constant 67 : index
    %649 = memref.load %arg2[%c67] : memref<144xf32, #tpu.memory_space<smem>>
    %650 = vector.broadcast %649 : f32 to vector<1x256xf32>
    %651 = arith.mulf %548, %650 : vector<1x256xf32>
    %652 = arith.addf %636, %651 : vector<1x256xf32>
    %c103 = arith.constant 103 : index
    %653 = memref.load %arg2[%c103] : memref<144xf32, #tpu.memory_space<smem>>
    %654 = vector.broadcast %653 : f32 to vector<1x256xf32>
    %655 = arith.mulf %548, %654 : vector<1x256xf32>
    %656 = arith.addf %640, %655 : vector<1x256xf32>
    %c139 = arith.constant 139 : index
    %657 = memref.load %arg2[%c139] : memref<144xf32, #tpu.memory_space<smem>>
    %658 = vector.broadcast %657 : f32 to vector<1x256xf32>
    %659 = arith.mulf %548, %658 : vector<1x256xf32>
    %660 = arith.addf %644, %659 : vector<1x256xf32>
    %c32 = arith.constant 32 : index
    %661 = memref.load %arg2[%c32] : memref<144xf32, #tpu.memory_space<smem>>
    %662 = vector.broadcast %661 : f32 to vector<1x256xf32>
    %663 = arith.mulf %556, %662 : vector<1x256xf32>
    %664 = arith.addf %648, %663 : vector<1x256xf32>
    %c68 = arith.constant 68 : index
    %665 = memref.load %arg2[%c68] : memref<144xf32, #tpu.memory_space<smem>>
    %666 = vector.broadcast %665 : f32 to vector<1x256xf32>
    %667 = arith.mulf %556, %666 : vector<1x256xf32>
    %668 = arith.addf %652, %667 : vector<1x256xf32>
    %c104 = arith.constant 104 : index
    %669 = memref.load %arg2[%c104] : memref<144xf32, #tpu.memory_space<smem>>
    %670 = vector.broadcast %669 : f32 to vector<1x256xf32>
    %671 = arith.mulf %556, %670 : vector<1x256xf32>
    %672 = arith.addf %656, %671 : vector<1x256xf32>
    %c140 = arith.constant 140 : index
    %673 = memref.load %arg2[%c140] : memref<144xf32, #tpu.memory_space<smem>>
    %674 = vector.broadcast %673 : f32 to vector<1x256xf32>
    %675 = arith.mulf %556, %674 : vector<1x256xf32>
    %676 = arith.addf %660, %675 : vector<1x256xf32>
    %c33 = arith.constant 33 : index
    %677 = memref.load %arg2[%c33] : memref<144xf32, #tpu.memory_space<smem>>
    %678 = vector.broadcast %677 : f32 to vector<1x256xf32>
    %679 = arith.mulf %564, %678 : vector<1x256xf32>
    %680 = arith.addf %664, %679 : vector<1x256xf32>
    %c69 = arith.constant 69 : index
    %681 = memref.load %arg2[%c69] : memref<144xf32, #tpu.memory_space<smem>>
    %682 = vector.broadcast %681 : f32 to vector<1x256xf32>
    %683 = arith.mulf %564, %682 : vector<1x256xf32>
    %684 = arith.addf %668, %683 : vector<1x256xf32>
    %c105 = arith.constant 105 : index
    %685 = memref.load %arg2[%c105] : memref<144xf32, #tpu.memory_space<smem>>
    %686 = vector.broadcast %685 : f32 to vector<1x256xf32>
    %687 = arith.mulf %564, %686 : vector<1x256xf32>
    %688 = arith.addf %672, %687 : vector<1x256xf32>
    %c141 = arith.constant 141 : index
    %689 = memref.load %arg2[%c141] : memref<144xf32, #tpu.memory_space<smem>>
    %690 = vector.broadcast %689 : f32 to vector<1x256xf32>
    %691 = arith.mulf %564, %690 : vector<1x256xf32>
    %692 = arith.addf %676, %691 : vector<1x256xf32>
    %c34 = arith.constant 34 : index
    %693 = memref.load %arg2[%c34] : memref<144xf32, #tpu.memory_space<smem>>
    %694 = vector.broadcast %693 : f32 to vector<1x256xf32>
    %695 = arith.mulf %572, %694 : vector<1x256xf32>
    %696 = arith.addf %680, %695 : vector<1x256xf32>
    %c70 = arith.constant 70 : index
    %697 = memref.load %arg2[%c70] : memref<144xf32, #tpu.memory_space<smem>>
    %698 = vector.broadcast %697 : f32 to vector<1x256xf32>
    %699 = arith.mulf %572, %698 : vector<1x256xf32>
    %700 = arith.addf %684, %699 : vector<1x256xf32>
    %c106 = arith.constant 106 : index
    %701 = memref.load %arg2[%c106] : memref<144xf32, #tpu.memory_space<smem>>
    %702 = vector.broadcast %701 : f32 to vector<1x256xf32>
    %703 = arith.mulf %572, %702 : vector<1x256xf32>
    %704 = arith.addf %688, %703 : vector<1x256xf32>
    %c142 = arith.constant 142 : index
    %705 = memref.load %arg2[%c142] : memref<144xf32, #tpu.memory_space<smem>>
    %706 = vector.broadcast %705 : f32 to vector<1x256xf32>
    %707 = arith.mulf %572, %706 : vector<1x256xf32>
    %708 = arith.addf %692, %707 : vector<1x256xf32>
    %c35 = arith.constant 35 : index
    %709 = memref.load %arg2[%c35] : memref<144xf32, #tpu.memory_space<smem>>
    %710 = vector.broadcast %709 : f32 to vector<1x256xf32>
    %711 = arith.mulf %580, %710 : vector<1x256xf32>
    %712 = arith.addf %696, %711 : vector<1x256xf32>
    %c71 = arith.constant 71 : index
    %713 = memref.load %arg2[%c71] : memref<144xf32, #tpu.memory_space<smem>>
    %714 = vector.broadcast %713 : f32 to vector<1x256xf32>
    %715 = arith.mulf %580, %714 : vector<1x256xf32>
    %716 = arith.addf %700, %715 : vector<1x256xf32>
    %c107 = arith.constant 107 : index
    %717 = memref.load %arg2[%c107] : memref<144xf32, #tpu.memory_space<smem>>
    %718 = vector.broadcast %717 : f32 to vector<1x256xf32>
    %719 = arith.mulf %580, %718 : vector<1x256xf32>
    %720 = arith.addf %704, %719 : vector<1x256xf32>
    %c143 = arith.constant 143 : index
    %721 = memref.load %arg2[%c143] : memref<144xf32, #tpu.memory_space<smem>>
    %722 = vector.broadcast %721 : f32 to vector<1x256xf32>
    %723 = arith.mulf %580, %722 : vector<1x256xf32>
    %724 = arith.addf %708, %723 : vector<1x256xf32>
    %cst = arith.constant 0.000000e+00 : f32
    %725 = vector.broadcast %cst : f32 to vector<1x256xf32>
    %726 = arith.cmpf ogt, %712, %725 : vector<1x256xf32>
    %727 = vector.broadcast %4 : f32 to vector<1x256xf32>
    %728 = arith.mulf %727, %712 : vector<1x256xf32>
    %729 = arith.select %726, %712, %728 : vector<1x256xi1>, vector<1x256xf32>
    %cst_53 = arith.constant 0.000000e+00 : f32
    %730 = vector.broadcast %cst_53 : f32 to vector<1x256xf32>
    %731 = arith.cmpf ogt, %716, %730 : vector<1x256xf32>
    %732 = vector.broadcast %4 : f32 to vector<1x256xf32>
    %733 = arith.mulf %732, %716 : vector<1x256xf32>
    %734 = arith.select %731, %716, %733 : vector<1x256xi1>, vector<1x256xf32>
    %cst_54 = arith.constant 0.000000e+00 : f32
    %735 = vector.broadcast %cst_54 : f32 to vector<1x256xf32>
    %736 = arith.cmpf ogt, %720, %735 : vector<1x256xf32>
    %737 = vector.broadcast %4 : f32 to vector<1x256xf32>
    %738 = arith.mulf %737, %720 : vector<1x256xf32>
    %739 = arith.select %736, %720, %738 : vector<1x256xi1>, vector<1x256xf32>
    %cst_55 = arith.constant 0.000000e+00 : f32
    %740 = vector.broadcast %cst_55 : f32 to vector<1x256xf32>
    %741 = arith.cmpf ogt, %724, %740 : vector<1x256xf32>
    %742 = vector.broadcast %4 : f32 to vector<1x256xf32>
    %743 = arith.mulf %742, %724 : vector<1x256xf32>
    %744 = arith.select %741, %724, %743 : vector<1x256xi1>, vector<1x256xf32>
    %c0_56 = arith.constant 0 : index
    %745 = memref.load %arg6[%c0_56] : memref<4xf32, #tpu.memory_space<smem>>
    %746 = vector.broadcast %745 : f32 to vector<1x256xf32>
    %c1_57 = arith.constant 1 : index
    %747 = memref.load %arg6[%c1_57] : memref<4xf32, #tpu.memory_space<smem>>
    %748 = vector.broadcast %747 : f32 to vector<1x256xf32>
    %c2_58 = arith.constant 2 : index
    %749 = memref.load %arg6[%c2_58] : memref<4xf32, #tpu.memory_space<smem>>
    %750 = vector.broadcast %749 : f32 to vector<1x256xf32>
    %c3_59 = arith.constant 3 : index
    %751 = memref.load %arg6[%c3_59] : memref<4xf32, #tpu.memory_space<smem>>
    %752 = vector.broadcast %751 : f32 to vector<1x256xf32>
    %c1_i32_60 = arith.constant 1 : i32
    %753 = tpu.dynamic_rotate %729 by %c1_i32_60 dim 1 : vector<1x256xf32>, i32 -> vector<1x256xf32>
    %c255_i32_61 = arith.constant 255 : i32
    %754 = tpu.dynamic_rotate %729 by %c255_i32_61 dim 1 : vector<1x256xf32>, i32 -> vector<1x256xf32>
    %755 = arith.subf %754, %753 : vector<1x256xf32>
    %756 = arith.mulf %0, %755 : vector<1x256xf32>
    %757 = arith.addf %753, %756 : vector<1x256xf32>
    %758 = arith.subf %753, %754 : vector<1x256xf32>
    %759 = arith.mulf %1, %758 : vector<1x256xf32>
    %760 = arith.addf %754, %759 : vector<1x256xf32>
    %c16_i32_62 = arith.constant 16 : i32
    %761 = tpu.dynamic_rotate %757 by %c16_i32_62 dim 1 : vector<1x256xf32>, i32 -> vector<1x256xf32>
    %c240_i32_63 = arith.constant 240 : i32
    %762 = tpu.dynamic_rotate %757 by %c240_i32_63 dim 1 : vector<1x256xf32>, i32 -> vector<1x256xf32>
    %763 = arith.subf %762, %761 : vector<1x256xf32>
    %764 = arith.mulf %2, %763 : vector<1x256xf32>
    %765 = arith.addf %761, %764 : vector<1x256xf32>
    %766 = arith.subf %761, %762 : vector<1x256xf32>
    %767 = arith.mulf %3, %766 : vector<1x256xf32>
    %768 = arith.addf %762, %767 : vector<1x256xf32>
    %c16_i32_64 = arith.constant 16 : i32
    %769 = tpu.dynamic_rotate %729 by %c16_i32_64 dim 1 : vector<1x256xf32>, i32 -> vector<1x256xf32>
    %c240_i32_65 = arith.constant 240 : i32
    %770 = tpu.dynamic_rotate %729 by %c240_i32_65 dim 1 : vector<1x256xf32>, i32 -> vector<1x256xf32>
    %771 = arith.subf %770, %769 : vector<1x256xf32>
    %772 = arith.mulf %2, %771 : vector<1x256xf32>
    %773 = arith.addf %769, %772 : vector<1x256xf32>
    %774 = arith.subf %769, %770 : vector<1x256xf32>
    %775 = arith.mulf %3, %774 : vector<1x256xf32>
    %776 = arith.addf %770, %775 : vector<1x256xf32>
    %c16_i32_66 = arith.constant 16 : i32
    %777 = tpu.dynamic_rotate %760 by %c16_i32_66 dim 1 : vector<1x256xf32>, i32 -> vector<1x256xf32>
    %c240_i32_67 = arith.constant 240 : i32
    %778 = tpu.dynamic_rotate %760 by %c240_i32_67 dim 1 : vector<1x256xf32>, i32 -> vector<1x256xf32>
    %779 = arith.subf %778, %777 : vector<1x256xf32>
    %780 = arith.mulf %2, %779 : vector<1x256xf32>
    %781 = arith.addf %777, %780 : vector<1x256xf32>
    %782 = arith.subf %777, %778 : vector<1x256xf32>
    %783 = arith.mulf %3, %782 : vector<1x256xf32>
    %784 = arith.addf %778, %783 : vector<1x256xf32>
    %c0_68 = arith.constant 0 : index
    %785 = memref.load %arg5[%c0_68] : memref<144xf32, #tpu.memory_space<smem>>
    %786 = vector.broadcast %785 : f32 to vector<1x256xf32>
    %787 = arith.mulf %765, %786 : vector<1x256xf32>
    %788 = arith.addf %746, %787 : vector<1x256xf32>
    %c36_69 = arith.constant 36 : index
    %789 = memref.load %arg5[%c36_69] : memref<144xf32, #tpu.memory_space<smem>>
    %790 = vector.broadcast %789 : f32 to vector<1x256xf32>
    %791 = arith.mulf %765, %790 : vector<1x256xf32>
    %792 = arith.addf %748, %791 : vector<1x256xf32>
    %c72_70 = arith.constant 72 : index
    %793 = memref.load %arg5[%c72_70] : memref<144xf32, #tpu.memory_space<smem>>
    %794 = vector.broadcast %793 : f32 to vector<1x256xf32>
    %795 = arith.mulf %765, %794 : vector<1x256xf32>
    %796 = arith.addf %750, %795 : vector<1x256xf32>
    %c108_71 = arith.constant 108 : index
    %797 = memref.load %arg5[%c108_71] : memref<144xf32, #tpu.memory_space<smem>>
    %798 = vector.broadcast %797 : f32 to vector<1x256xf32>
    %799 = arith.mulf %765, %798 : vector<1x256xf32>
    %800 = arith.addf %752, %799 : vector<1x256xf32>
    %c1_72 = arith.constant 1 : index
    %801 = memref.load %arg5[%c1_72] : memref<144xf32, #tpu.memory_space<smem>>
    %802 = vector.broadcast %801 : f32 to vector<1x256xf32>
    %803 = arith.mulf %773, %802 : vector<1x256xf32>
    %804 = arith.addf %788, %803 : vector<1x256xf32>
    %c37_73 = arith.constant 37 : index
    %805 = memref.load %arg5[%c37_73] : memref<144xf32, #tpu.memory_space<smem>>
    %806 = vector.broadcast %805 : f32 to vector<1x256xf32>
    %807 = arith.mulf %773, %806 : vector<1x256xf32>
    %808 = arith.addf %792, %807 : vector<1x256xf32>
    %c73_74 = arith.constant 73 : index
    %809 = memref.load %arg5[%c73_74] : memref<144xf32, #tpu.memory_space<smem>>
    %810 = vector.broadcast %809 : f32 to vector<1x256xf32>
    %811 = arith.mulf %773, %810 : vector<1x256xf32>
    %812 = arith.addf %796, %811 : vector<1x256xf32>
    %c109_75 = arith.constant 109 : index
    %813 = memref.load %arg5[%c109_75] : memref<144xf32, #tpu.memory_space<smem>>
    %814 = vector.broadcast %813 : f32 to vector<1x256xf32>
    %815 = arith.mulf %773, %814 : vector<1x256xf32>
    %816 = arith.addf %800, %815 : vector<1x256xf32>
    %c2_76 = arith.constant 2 : index
    %817 = memref.load %arg5[%c2_76] : memref<144xf32, #tpu.memory_space<smem>>
    %818 = vector.broadcast %817 : f32 to vector<1x256xf32>
    %819 = arith.mulf %781, %818 : vector<1x256xf32>
    %820 = arith.addf %804, %819 : vector<1x256xf32>
    %c38_77 = arith.constant 38 : index
    %821 = memref.load %arg5[%c38_77] : memref<144xf32, #tpu.memory_space<smem>>
    %822 = vector.broadcast %821 : f32 to vector<1x256xf32>
    %823 = arith.mulf %781, %822 : vector<1x256xf32>
    %824 = arith.addf %808, %823 : vector<1x256xf32>
    %c74_78 = arith.constant 74 : index
    %825 = memref.load %arg5[%c74_78] : memref<144xf32, #tpu.memory_space<smem>>
    %826 = vector.broadcast %825 : f32 to vector<1x256xf32>
    %827 = arith.mulf %781, %826 : vector<1x256xf32>
    %828 = arith.addf %812, %827 : vector<1x256xf32>
    %c110_79 = arith.constant 110 : index
    %829 = memref.load %arg5[%c110_79] : memref<144xf32, #tpu.memory_space<smem>>
    %830 = vector.broadcast %829 : f32 to vector<1x256xf32>
    %831 = arith.mulf %781, %830 : vector<1x256xf32>
    %832 = arith.addf %816, %831 : vector<1x256xf32>
    %c3_80 = arith.constant 3 : index
    %833 = memref.load %arg5[%c3_80] : memref<144xf32, #tpu.memory_space<smem>>
    %834 = vector.broadcast %833 : f32 to vector<1x256xf32>
    %835 = arith.mulf %757, %834 : vector<1x256xf32>
    %836 = arith.addf %820, %835 : vector<1x256xf32>
    %c39_81 = arith.constant 39 : index
    %837 = memref.load %arg5[%c39_81] : memref<144xf32, #tpu.memory_space<smem>>
    %838 = vector.broadcast %837 : f32 to vector<1x256xf32>
    %839 = arith.mulf %757, %838 : vector<1x256xf32>
    %840 = arith.addf %824, %839 : vector<1x256xf32>
    %c75_82 = arith.constant 75 : index
    %841 = memref.load %arg5[%c75_82] : memref<144xf32, #tpu.memory_space<smem>>
    %842 = vector.broadcast %841 : f32 to vector<1x256xf32>
    %843 = arith.mulf %757, %842 : vector<1x256xf32>
    %844 = arith.addf %828, %843 : vector<1x256xf32>
    %c111_83 = arith.constant 111 : index
    %845 = memref.load %arg5[%c111_83] : memref<144xf32, #tpu.memory_space<smem>>
    %846 = vector.broadcast %845 : f32 to vector<1x256xf32>
    %847 = arith.mulf %757, %846 : vector<1x256xf32>
    %848 = arith.addf %832, %847 : vector<1x256xf32>
    %c4_84 = arith.constant 4 : index
    %849 = memref.load %arg5[%c4_84] : memref<144xf32, #tpu.memory_space<smem>>
    %850 = vector.broadcast %849 : f32 to vector<1x256xf32>
    %851 = arith.mulf %729, %850 : vector<1x256xf32>
    %852 = arith.addf %836, %851 : vector<1x256xf32>
    %c40_85 = arith.constant 40 : index
    %853 = memref.load %arg5[%c40_85] : memref<144xf32, #tpu.memory_space<smem>>
    %854 = vector.broadcast %853 : f32 to vector<1x256xf32>
    %855 = arith.mulf %729, %854 : vector<1x256xf32>
    %856 = arith.addf %840, %855 : vector<1x256xf32>
    %c76_86 = arith.constant 76 : index
    %857 = memref.load %arg5[%c76_86] : memref<144xf32, #tpu.memory_space<smem>>
    %858 = vector.broadcast %857 : f32 to vector<1x256xf32>
    %859 = arith.mulf %729, %858 : vector<1x256xf32>
    %860 = arith.addf %844, %859 : vector<1x256xf32>
    %c112_87 = arith.constant 112 : index
    %861 = memref.load %arg5[%c112_87] : memref<144xf32, #tpu.memory_space<smem>>
    %862 = vector.broadcast %861 : f32 to vector<1x256xf32>
    %863 = arith.mulf %729, %862 : vector<1x256xf32>
    %864 = arith.addf %848, %863 : vector<1x256xf32>
    %c5_88 = arith.constant 5 : index
    %865 = memref.load %arg5[%c5_88] : memref<144xf32, #tpu.memory_space<smem>>
    %866 = vector.broadcast %865 : f32 to vector<1x256xf32>
    %867 = arith.mulf %760, %866 : vector<1x256xf32>
    %868 = arith.addf %852, %867 : vector<1x256xf32>
    %c41_89 = arith.constant 41 : index
    %869 = memref.load %arg5[%c41_89] : memref<144xf32, #tpu.memory_space<smem>>
    %870 = vector.broadcast %869 : f32 to vector<1x256xf32>
    %871 = arith.mulf %760, %870 : vector<1x256xf32>
    %872 = arith.addf %856, %871 : vector<1x256xf32>
    %c77_90 = arith.constant 77 : index
    %873 = memref.load %arg5[%c77_90] : memref<144xf32, #tpu.memory_space<smem>>
    %874 = vector.broadcast %873 : f32 to vector<1x256xf32>
    %875 = arith.mulf %760, %874 : vector<1x256xf32>
    %876 = arith.addf %860, %875 : vector<1x256xf32>
    %c113_91 = arith.constant 113 : index
    %877 = memref.load %arg5[%c113_91] : memref<144xf32, #tpu.memory_space<smem>>
    %878 = vector.broadcast %877 : f32 to vector<1x256xf32>
    %879 = arith.mulf %760, %878 : vector<1x256xf32>
    %880 = arith.addf %864, %879 : vector<1x256xf32>
    %c6_92 = arith.constant 6 : index
    %881 = memref.load %arg5[%c6_92] : memref<144xf32, #tpu.memory_space<smem>>
    %882 = vector.broadcast %881 : f32 to vector<1x256xf32>
    %883 = arith.mulf %768, %882 : vector<1x256xf32>
    %884 = arith.addf %868, %883 : vector<1x256xf32>
    %c42_93 = arith.constant 42 : index
    %885 = memref.load %arg5[%c42_93] : memref<144xf32, #tpu.memory_space<smem>>
    %886 = vector.broadcast %885 : f32 to vector<1x256xf32>
    %887 = arith.mulf %768, %886 : vector<1x256xf32>
    %888 = arith.addf %872, %887 : vector<1x256xf32>
    %c78_94 = arith.constant 78 : index
    %889 = memref.load %arg5[%c78_94] : memref<144xf32, #tpu.memory_space<smem>>
    %890 = vector.broadcast %889 : f32 to vector<1x256xf32>
    %891 = arith.mulf %768, %890 : vector<1x256xf32>
    %892 = arith.addf %876, %891 : vector<1x256xf32>
    %c114_95 = arith.constant 114 : index
    %893 = memref.load %arg5[%c114_95] : memref<144xf32, #tpu.memory_space<smem>>
    %894 = vector.broadcast %893 : f32 to vector<1x256xf32>
    %895 = arith.mulf %768, %894 : vector<1x256xf32>
    %896 = arith.addf %880, %895 : vector<1x256xf32>
    %c7_96 = arith.constant 7 : index
    %897 = memref.load %arg5[%c7_96] : memref<144xf32, #tpu.memory_space<smem>>
    %898 = vector.broadcast %897 : f32 to vector<1x256xf32>
    %899 = arith.mulf %776, %898 : vector<1x256xf32>
    %900 = arith.addf %884, %899 : vector<1x256xf32>
    %c43_97 = arith.constant 43 : index
    %901 = memref.load %arg5[%c43_97] : memref<144xf32, #tpu.memory_space<smem>>
    %902 = vector.broadcast %901 : f32 to vector<1x256xf32>
    %903 = arith.mulf %776, %902 : vector<1x256xf32>
    %904 = arith.addf %888, %903 : vector<1x256xf32>
    %c79_98 = arith.constant 79 : index
    %905 = memref.load %arg5[%c79_98] : memref<144xf32, #tpu.memory_space<smem>>
    %906 = vector.broadcast %905 : f32 to vector<1x256xf32>
    %907 = arith.mulf %776, %906 : vector<1x256xf32>
    %908 = arith.addf %892, %907 : vector<1x256xf32>
    %c115_99 = arith.constant 115 : index
    %909 = memref.load %arg5[%c115_99] : memref<144xf32, #tpu.memory_space<smem>>
    %910 = vector.broadcast %909 : f32 to vector<1x256xf32>
    %911 = arith.mulf %776, %910 : vector<1x256xf32>
    %912 = arith.addf %896, %911 : vector<1x256xf32>
    %c8_100 = arith.constant 8 : index
    %913 = memref.load %arg5[%c8_100] : memref<144xf32, #tpu.memory_space<smem>>
    %914 = vector.broadcast %913 : f32 to vector<1x256xf32>
    %915 = arith.mulf %784, %914 : vector<1x256xf32>
    %916 = arith.addf %900, %915 : vector<1x256xf32>
    %c44_101 = arith.constant 44 : index
    %917 = memref.load %arg5[%c44_101] : memref<144xf32, #tpu.memory_space<smem>>
    %918 = vector.broadcast %917 : f32 to vector<1x256xf32>
    %919 = arith.mulf %784, %918 : vector<1x256xf32>
    %920 = arith.addf %904, %919 : vector<1x256xf32>
    %c80_102 = arith.constant 80 : index
    %921 = memref.load %arg5[%c80_102] : memref<144xf32, #tpu.memory_space<smem>>
    %922 = vector.broadcast %921 : f32 to vector<1x256xf32>
    %923 = arith.mulf %784, %922 : vector<1x256xf32>
    %924 = arith.addf %908, %923 : vector<1x256xf32>
    %c116_103 = arith.constant 116 : index
    %925 = memref.load %arg5[%c116_103] : memref<144xf32, #tpu.memory_space<smem>>
    %926 = vector.broadcast %925 : f32 to vector<1x256xf32>
    %927 = arith.mulf %784, %926 : vector<1x256xf32>
    %928 = arith.addf %912, %927 : vector<1x256xf32>
    %c1_i32_104 = arith.constant 1 : i32
    %929 = tpu.dynamic_rotate %734 by %c1_i32_104 dim 1 : vector<1x256xf32>, i32 -> vector<1x256xf32>
    %c255_i32_105 = arith.constant 255 : i32
    %930 = tpu.dynamic_rotate %734 by %c255_i32_105 dim 1 : vector<1x256xf32>, i32 -> vector<1x256xf32>
    %931 = arith.subf %930, %929 : vector<1x256xf32>
    %932 = arith.mulf %0, %931 : vector<1x256xf32>
    %933 = arith.addf %929, %932 : vector<1x256xf32>
    %934 = arith.subf %929, %930 : vector<1x256xf32>
    %935 = arith.mulf %1, %934 : vector<1x256xf32>
    %936 = arith.addf %930, %935 : vector<1x256xf32>
    %c16_i32_106 = arith.constant 16 : i32
    %937 = tpu.dynamic_rotate %933 by %c16_i32_106 dim 1 : vector<1x256xf32>, i32 -> vector<1x256xf32>
    %c240_i32_107 = arith.constant 240 : i32
    %938 = tpu.dynamic_rotate %933 by %c240_i32_107 dim 1 : vector<1x256xf32>, i32 -> vector<1x256xf32>
    %939 = arith.subf %938, %937 : vector<1x256xf32>
    %940 = arith.mulf %2, %939 : vector<1x256xf32>
    %941 = arith.addf %937, %940 : vector<1x256xf32>
    %942 = arith.subf %937, %938 : vector<1x256xf32>
    %943 = arith.mulf %3, %942 : vector<1x256xf32>
    %944 = arith.addf %938, %943 : vector<1x256xf32>
    %c16_i32_108 = arith.constant 16 : i32
    %945 = tpu.dynamic_rotate %734 by %c16_i32_108 dim 1 : vector<1x256xf32>, i32 -> vector<1x256xf32>
    %c240_i32_109 = arith.constant 240 : i32
    %946 = tpu.dynamic_rotate %734 by %c240_i32_109 dim 1 : vector<1x256xf32>, i32 -> vector<1x256xf32>
    %947 = arith.subf %946, %945 : vector<1x256xf32>
    %948 = arith.mulf %2, %947 : vector<1x256xf32>
    %949 = arith.addf %945, %948 : vector<1x256xf32>
    %950 = arith.subf %945, %946 : vector<1x256xf32>
    %951 = arith.mulf %3, %950 : vector<1x256xf32>
    %952 = arith.addf %946, %951 : vector<1x256xf32>
    %c16_i32_110 = arith.constant 16 : i32
    %953 = tpu.dynamic_rotate %936 by %c16_i32_110 dim 1 : vector<1x256xf32>, i32 -> vector<1x256xf32>
    %c240_i32_111 = arith.constant 240 : i32
    %954 = tpu.dynamic_rotate %936 by %c240_i32_111 dim 1 : vector<1x256xf32>, i32 -> vector<1x256xf32>
    %955 = arith.subf %954, %953 : vector<1x256xf32>
    %956 = arith.mulf %2, %955 : vector<1x256xf32>
    %957 = arith.addf %953, %956 : vector<1x256xf32>
    %958 = arith.subf %953, %954 : vector<1x256xf32>
    %959 = arith.mulf %3, %958 : vector<1x256xf32>
    %960 = arith.addf %954, %959 : vector<1x256xf32>
    %c9_112 = arith.constant 9 : index
    %961 = memref.load %arg5[%c9_112] : memref<144xf32, #tpu.memory_space<smem>>
    %962 = vector.broadcast %961 : f32 to vector<1x256xf32>
    %963 = arith.mulf %941, %962 : vector<1x256xf32>
    %964 = arith.addf %916, %963 : vector<1x256xf32>
    %c45_113 = arith.constant 45 : index
    %965 = memref.load %arg5[%c45_113] : memref<144xf32, #tpu.memory_space<smem>>
    %966 = vector.broadcast %965 : f32 to vector<1x256xf32>
    %967 = arith.mulf %941, %966 : vector<1x256xf32>
    %968 = arith.addf %920, %967 : vector<1x256xf32>
    %c81_114 = arith.constant 81 : index
    %969 = memref.load %arg5[%c81_114] : memref<144xf32, #tpu.memory_space<smem>>
    %970 = vector.broadcast %969 : f32 to vector<1x256xf32>
    %971 = arith.mulf %941, %970 : vector<1x256xf32>
    %972 = arith.addf %924, %971 : vector<1x256xf32>
    %c117_115 = arith.constant 117 : index
    %973 = memref.load %arg5[%c117_115] : memref<144xf32, #tpu.memory_space<smem>>
    %974 = vector.broadcast %973 : f32 to vector<1x256xf32>
    %975 = arith.mulf %941, %974 : vector<1x256xf32>
    %976 = arith.addf %928, %975 : vector<1x256xf32>
    %c10_116 = arith.constant 10 : index
    %977 = memref.load %arg5[%c10_116] : memref<144xf32, #tpu.memory_space<smem>>
    %978 = vector.broadcast %977 : f32 to vector<1x256xf32>
    %979 = arith.mulf %949, %978 : vector<1x256xf32>
    %980 = arith.addf %964, %979 : vector<1x256xf32>
    %c46_117 = arith.constant 46 : index
    %981 = memref.load %arg5[%c46_117] : memref<144xf32, #tpu.memory_space<smem>>
    %982 = vector.broadcast %981 : f32 to vector<1x256xf32>
    %983 = arith.mulf %949, %982 : vector<1x256xf32>
    %984 = arith.addf %968, %983 : vector<1x256xf32>
    %c82_118 = arith.constant 82 : index
    %985 = memref.load %arg5[%c82_118] : memref<144xf32, #tpu.memory_space<smem>>
    %986 = vector.broadcast %985 : f32 to vector<1x256xf32>
    %987 = arith.mulf %949, %986 : vector<1x256xf32>
    %988 = arith.addf %972, %987 : vector<1x256xf32>
    %c118_119 = arith.constant 118 : index
    %989 = memref.load %arg5[%c118_119] : memref<144xf32, #tpu.memory_space<smem>>
    %990 = vector.broadcast %989 : f32 to vector<1x256xf32>
    %991 = arith.mulf %949, %990 : vector<1x256xf32>
    %992 = arith.addf %976, %991 : vector<1x256xf32>
    %c11_120 = arith.constant 11 : index
    %993 = memref.load %arg5[%c11_120] : memref<144xf32, #tpu.memory_space<smem>>
    %994 = vector.broadcast %993 : f32 to vector<1x256xf32>
    %995 = arith.mulf %957, %994 : vector<1x256xf32>
    %996 = arith.addf %980, %995 : vector<1x256xf32>
    %c47_121 = arith.constant 47 : index
    %997 = memref.load %arg5[%c47_121] : memref<144xf32, #tpu.memory_space<smem>>
    %998 = vector.broadcast %997 : f32 to vector<1x256xf32>
    %999 = arith.mulf %957, %998 : vector<1x256xf32>
    %1000 = arith.addf %984, %999 : vector<1x256xf32>
    %c83_122 = arith.constant 83 : index
    %1001 = memref.load %arg5[%c83_122] : memref<144xf32, #tpu.memory_space<smem>>
    %1002 = vector.broadcast %1001 : f32 to vector<1x256xf32>
    %1003 = arith.mulf %957, %1002 : vector<1x256xf32>
    %1004 = arith.addf %988, %1003 : vector<1x256xf32>
    %c119_123 = arith.constant 119 : index
    %1005 = memref.load %arg5[%c119_123] : memref<144xf32, #tpu.memory_space<smem>>
    %1006 = vector.broadcast %1005 : f32 to vector<1x256xf32>
    %1007 = arith.mulf %957, %1006 : vector<1x256xf32>
    %1008 = arith.addf %992, %1007 : vector<1x256xf32>
    %c12_124 = arith.constant 12 : index
    %1009 = memref.load %arg5[%c12_124] : memref<144xf32, #tpu.memory_space<smem>>
    %1010 = vector.broadcast %1009 : f32 to vector<1x256xf32>
    %1011 = arith.mulf %933, %1010 : vector<1x256xf32>
    %1012 = arith.addf %996, %1011 : vector<1x256xf32>
    %c48_125 = arith.constant 48 : index
    %1013 = memref.load %arg5[%c48_125] : memref<144xf32, #tpu.memory_space<smem>>
    %1014 = vector.broadcast %1013 : f32 to vector<1x256xf32>
    %1015 = arith.mulf %933, %1014 : vector<1x256xf32>
    %1016 = arith.addf %1000, %1015 : vector<1x256xf32>
    %c84_126 = arith.constant 84 : index
    %1017 = memref.load %arg5[%c84_126] : memref<144xf32, #tpu.memory_space<smem>>
    %1018 = vector.broadcast %1017 : f32 to vector<1x256xf32>
    %1019 = arith.mulf %933, %1018 : vector<1x256xf32>
    %1020 = arith.addf %1004, %1019 : vector<1x256xf32>
    %c120_127 = arith.constant 120 : index
    %1021 = memref.load %arg5[%c120_127] : memref<144xf32, #tpu.memory_space<smem>>
    %1022 = vector.broadcast %1021 : f32 to vector<1x256xf32>
    %1023 = arith.mulf %933, %1022 : vector<1x256xf32>
    %1024 = arith.addf %1008, %1023 : vector<1x256xf32>
    %c13_128 = arith.constant 13 : index
    %1025 = memref.load %arg5[%c13_128] : memref<144xf32, #tpu.memory_space<smem>>
    %1026 = vector.broadcast %1025 : f32 to vector<1x256xf32>
    %1027 = arith.mulf %734, %1026 : vector<1x256xf32>
    %1028 = arith.addf %1012, %1027 : vector<1x256xf32>
    %c49_129 = arith.constant 49 : index
    %1029 = memref.load %arg5[%c49_129] : memref<144xf32, #tpu.memory_space<smem>>
    %1030 = vector.broadcast %1029 : f32 to vector<1x256xf32>
    %1031 = arith.mulf %734, %1030 : vector<1x256xf32>
    %1032 = arith.addf %1016, %1031 : vector<1x256xf32>
    %c85_130 = arith.constant 85 : index
    %1033 = memref.load %arg5[%c85_130] : memref<144xf32, #tpu.memory_space<smem>>
    %1034 = vector.broadcast %1033 : f32 to vector<1x256xf32>
    %1035 = arith.mulf %734, %1034 : vector<1x256xf32>
    %1036 = arith.addf %1020, %1035 : vector<1x256xf32>
    %c121_131 = arith.constant 121 : index
    %1037 = memref.load %arg5[%c121_131] : memref<144xf32, #tpu.memory_space<smem>>
    %1038 = vector.broadcast %1037 : f32 to vector<1x256xf32>
    %1039 = arith.mulf %734, %1038 : vector<1x256xf32>
    %1040 = arith.addf %1024, %1039 : vector<1x256xf32>
    %c14_132 = arith.constant 14 : index
    %1041 = memref.load %arg5[%c14_132] : memref<144xf32, #tpu.memory_space<smem>>
    %1042 = vector.broadcast %1041 : f32 to vector<1x256xf32>
    %1043 = arith.mulf %936, %1042 : vector<1x256xf32>
    %1044 = arith.addf %1028, %1043 : vector<1x256xf32>
    %c50_133 = arith.constant 50 : index
    %1045 = memref.load %arg5[%c50_133] : memref<144xf32, #tpu.memory_space<smem>>
    %1046 = vector.broadcast %1045 : f32 to vector<1x256xf32>
    %1047 = arith.mulf %936, %1046 : vector<1x256xf32>
    %1048 = arith.addf %1032, %1047 : vector<1x256xf32>
    %c86_134 = arith.constant 86 : index
    %1049 = memref.load %arg5[%c86_134] : memref<144xf32, #tpu.memory_space<smem>>
    %1050 = vector.broadcast %1049 : f32 to vector<1x256xf32>
    %1051 = arith.mulf %936, %1050 : vector<1x256xf32>
    %1052 = arith.addf %1036, %1051 : vector<1x256xf32>
    %c122_135 = arith.constant 122 : index
    %1053 = memref.load %arg5[%c122_135] : memref<144xf32, #tpu.memory_space<smem>>
    %1054 = vector.broadcast %1053 : f32 to vector<1x256xf32>
    %1055 = arith.mulf %936, %1054 : vector<1x256xf32>
    %1056 = arith.addf %1040, %1055 : vector<1x256xf32>
    %c15_136 = arith.constant 15 : index
    %1057 = memref.load %arg5[%c15_136] : memref<144xf32, #tpu.memory_space<smem>>
    %1058 = vector.broadcast %1057 : f32 to vector<1x256xf32>
    %1059 = arith.mulf %944, %1058 : vector<1x256xf32>
    %1060 = arith.addf %1044, %1059 : vector<1x256xf32>
    %c51_137 = arith.constant 51 : index
    %1061 = memref.load %arg5[%c51_137] : memref<144xf32, #tpu.memory_space<smem>>
    %1062 = vector.broadcast %1061 : f32 to vector<1x256xf32>
    %1063 = arith.mulf %944, %1062 : vector<1x256xf32>
    %1064 = arith.addf %1048, %1063 : vector<1x256xf32>
    %c87_138 = arith.constant 87 : index
    %1065 = memref.load %arg5[%c87_138] : memref<144xf32, #tpu.memory_space<smem>>
    %1066 = vector.broadcast %1065 : f32 to vector<1x256xf32>
    %1067 = arith.mulf %944, %1066 : vector<1x256xf32>
    %1068 = arith.addf %1052, %1067 : vector<1x256xf32>
    %c123_139 = arith.constant 123 : index
    %1069 = memref.load %arg5[%c123_139] : memref<144xf32, #tpu.memory_space<smem>>
    %1070 = vector.broadcast %1069 : f32 to vector<1x256xf32>
    %1071 = arith.mulf %944, %1070 : vector<1x256xf32>
    %1072 = arith.addf %1056, %1071 : vector<1x256xf32>
    %c16_140 = arith.constant 16 : index
    %1073 = memref.load %arg5[%c16_140] : memref<144xf32, #tpu.memory_space<smem>>
    %1074 = vector.broadcast %1073 : f32 to vector<1x256xf32>
    %1075 = arith.mulf %952, %1074 : vector<1x256xf32>
    %1076 = arith.addf %1060, %1075 : vector<1x256xf32>
    %c52_141 = arith.constant 52 : index
    %1077 = memref.load %arg5[%c52_141] : memref<144xf32, #tpu.memory_space<smem>>
    %1078 = vector.broadcast %1077 : f32 to vector<1x256xf32>
    %1079 = arith.mulf %952, %1078 : vector<1x256xf32>
    %1080 = arith.addf %1064, %1079 : vector<1x256xf32>
    %c88_142 = arith.constant 88 : index
    %1081 = memref.load %arg5[%c88_142] : memref<144xf32, #tpu.memory_space<smem>>
    %1082 = vector.broadcast %1081 : f32 to vector<1x256xf32>
    %1083 = arith.mulf %952, %1082 : vector<1x256xf32>
    %1084 = arith.addf %1068, %1083 : vector<1x256xf32>
    %c124_143 = arith.constant 124 : index
    %1085 = memref.load %arg5[%c124_143] : memref<144xf32, #tpu.memory_space<smem>>
    %1086 = vector.broadcast %1085 : f32 to vector<1x256xf32>
    %1087 = arith.mulf %952, %1086 : vector<1x256xf32>
    %1088 = arith.addf %1072, %1087 : vector<1x256xf32>
    %c17_144 = arith.constant 17 : index
    %1089 = memref.load %arg5[%c17_144] : memref<144xf32, #tpu.memory_space<smem>>
    %1090 = vector.broadcast %1089 : f32 to vector<1x256xf32>
    %1091 = arith.mulf %960, %1090 : vector<1x256xf32>
    %1092 = arith.addf %1076, %1091 : vector<1x256xf32>
    %c53_145 = arith.constant 53 : index
    %1093 = memref.load %arg5[%c53_145] : memref<144xf32, #tpu.memory_space<smem>>
    %1094 = vector.broadcast %1093 : f32 to vector<1x256xf32>
    %1095 = arith.mulf %960, %1094 : vector<1x256xf32>
    %1096 = arith.addf %1080, %1095 : vector<1x256xf32>
    %c89_146 = arith.constant 89 : index
    %1097 = memref.load %arg5[%c89_146] : memref<144xf32, #tpu.memory_space<smem>>
    %1098 = vector.broadcast %1097 : f32 to vector<1x256xf32>
    %1099 = arith.mulf %960, %1098 : vector<1x256xf32>
    %1100 = arith.addf %1084, %1099 : vector<1x256xf32>
    %c125_147 = arith.constant 125 : index
    %1101 = memref.load %arg5[%c125_147] : memref<144xf32, #tpu.memory_space<smem>>
    %1102 = vector.broadcast %1101 : f32 to vector<1x256xf32>
    %1103 = arith.mulf %960, %1102 : vector<1x256xf32>
    %1104 = arith.addf %1088, %1103 : vector<1x256xf32>
    %c1_i32_148 = arith.constant 1 : i32
    %1105 = tpu.dynamic_rotate %739 by %c1_i32_148 dim 1 : vector<1x256xf32>, i32 -> vector<1x256xf32>
    %c255_i32_149 = arith.constant 255 : i32
    %1106 = tpu.dynamic_rotate %739 by %c255_i32_149 dim 1 : vector<1x256xf32>, i32 -> vector<1x256xf32>
    %1107 = arith.subf %1106, %1105 : vector<1x256xf32>
    %1108 = arith.mulf %0, %1107 : vector<1x256xf32>
    %1109 = arith.addf %1105, %1108 : vector<1x256xf32>
    %1110 = arith.subf %1105, %1106 : vector<1x256xf32>
    %1111 = arith.mulf %1, %1110 : vector<1x256xf32>
    %1112 = arith.addf %1106, %1111 : vector<1x256xf32>
    %c16_i32_150 = arith.constant 16 : i32
    %1113 = tpu.dynamic_rotate %1109 by %c16_i32_150 dim 1 : vector<1x256xf32>, i32 -> vector<1x256xf32>
    %c240_i32_151 = arith.constant 240 : i32
    %1114 = tpu.dynamic_rotate %1109 by %c240_i32_151 dim 1 : vector<1x256xf32>, i32 -> vector<1x256xf32>
    %1115 = arith.subf %1114, %1113 : vector<1x256xf32>
    %1116 = arith.mulf %2, %1115 : vector<1x256xf32>
    %1117 = arith.addf %1113, %1116 : vector<1x256xf32>
    %1118 = arith.subf %1113, %1114 : vector<1x256xf32>
    %1119 = arith.mulf %3, %1118 : vector<1x256xf32>
    %1120 = arith.addf %1114, %1119 : vector<1x256xf32>
    %c16_i32_152 = arith.constant 16 : i32
    %1121 = tpu.dynamic_rotate %739 by %c16_i32_152 dim 1 : vector<1x256xf32>, i32 -> vector<1x256xf32>
    %c240_i32_153 = arith.constant 240 : i32
    %1122 = tpu.dynamic_rotate %739 by %c240_i32_153 dim 1 : vector<1x256xf32>, i32 -> vector<1x256xf32>
    %1123 = arith.subf %1122, %1121 : vector<1x256xf32>
    %1124 = arith.mulf %2, %1123 : vector<1x256xf32>
    %1125 = arith.addf %1121, %1124 : vector<1x256xf32>
    %1126 = arith.subf %1121, %1122 : vector<1x256xf32>
    %1127 = arith.mulf %3, %1126 : vector<1x256xf32>
    %1128 = arith.addf %1122, %1127 : vector<1x256xf32>
    %c16_i32_154 = arith.constant 16 : i32
    %1129 = tpu.dynamic_rotate %1112 by %c16_i32_154 dim 1 : vector<1x256xf32>, i32 -> vector<1x256xf32>
    %c240_i32_155 = arith.constant 240 : i32
    %1130 = tpu.dynamic_rotate %1112 by %c240_i32_155 dim 1 : vector<1x256xf32>, i32 -> vector<1x256xf32>
    %1131 = arith.subf %1130, %1129 : vector<1x256xf32>
    %1132 = arith.mulf %2, %1131 : vector<1x256xf32>
    %1133 = arith.addf %1129, %1132 : vector<1x256xf32>
    %1134 = arith.subf %1129, %1130 : vector<1x256xf32>
    %1135 = arith.mulf %3, %1134 : vector<1x256xf32>
    %1136 = arith.addf %1130, %1135 : vector<1x256xf32>
    %c18_156 = arith.constant 18 : index
    %1137 = memref.load %arg5[%c18_156] : memref<144xf32, #tpu.memory_space<smem>>
    %1138 = vector.broadcast %1137 : f32 to vector<1x256xf32>
    %1139 = arith.mulf %1117, %1138 : vector<1x256xf32>
    %1140 = arith.addf %1092, %1139 : vector<1x256xf32>
    %c54_157 = arith.constant 54 : index
    %1141 = memref.load %arg5[%c54_157] : memref<144xf32, #tpu.memory_space<smem>>
    %1142 = vector.broadcast %1141 : f32 to vector<1x256xf32>
    %1143 = arith.mulf %1117, %1142 : vector<1x256xf32>
    %1144 = arith.addf %1096, %1143 : vector<1x256xf32>
    %c90_158 = arith.constant 90 : index
    %1145 = memref.load %arg5[%c90_158] : memref<144xf32, #tpu.memory_space<smem>>
    %1146 = vector.broadcast %1145 : f32 to vector<1x256xf32>
    %1147 = arith.mulf %1117, %1146 : vector<1x256xf32>
    %1148 = arith.addf %1100, %1147 : vector<1x256xf32>
    %c126_159 = arith.constant 126 : index
    %1149 = memref.load %arg5[%c126_159] : memref<144xf32, #tpu.memory_space<smem>>
    %1150 = vector.broadcast %1149 : f32 to vector<1x256xf32>
    %1151 = arith.mulf %1117, %1150 : vector<1x256xf32>
    %1152 = arith.addf %1104, %1151 : vector<1x256xf32>
    %c19_160 = arith.constant 19 : index
    %1153 = memref.load %arg5[%c19_160] : memref<144xf32, #tpu.memory_space<smem>>
    %1154 = vector.broadcast %1153 : f32 to vector<1x256xf32>
    %1155 = arith.mulf %1125, %1154 : vector<1x256xf32>
    %1156 = arith.addf %1140, %1155 : vector<1x256xf32>
    %c55_161 = arith.constant 55 : index
    %1157 = memref.load %arg5[%c55_161] : memref<144xf32, #tpu.memory_space<smem>>
    %1158 = vector.broadcast %1157 : f32 to vector<1x256xf32>
    %1159 = arith.mulf %1125, %1158 : vector<1x256xf32>
    %1160 = arith.addf %1144, %1159 : vector<1x256xf32>
    %c91_162 = arith.constant 91 : index
    %1161 = memref.load %arg5[%c91_162] : memref<144xf32, #tpu.memory_space<smem>>
    %1162 = vector.broadcast %1161 : f32 to vector<1x256xf32>
    %1163 = arith.mulf %1125, %1162 : vector<1x256xf32>
    %1164 = arith.addf %1148, %1163 : vector<1x256xf32>
    %c127_163 = arith.constant 127 : index
    %1165 = memref.load %arg5[%c127_163] : memref<144xf32, #tpu.memory_space<smem>>
    %1166 = vector.broadcast %1165 : f32 to vector<1x256xf32>
    %1167 = arith.mulf %1125, %1166 : vector<1x256xf32>
    %1168 = arith.addf %1152, %1167 : vector<1x256xf32>
    %c20_164 = arith.constant 20 : index
    %1169 = memref.load %arg5[%c20_164] : memref<144xf32, #tpu.memory_space<smem>>
    %1170 = vector.broadcast %1169 : f32 to vector<1x256xf32>
    %1171 = arith.mulf %1133, %1170 : vector<1x256xf32>
    %1172 = arith.addf %1156, %1171 : vector<1x256xf32>
    %c56_165 = arith.constant 56 : index
    %1173 = memref.load %arg5[%c56_165] : memref<144xf32, #tpu.memory_space<smem>>
    %1174 = vector.broadcast %1173 : f32 to vector<1x256xf32>
    %1175 = arith.mulf %1133, %1174 : vector<1x256xf32>
    %1176 = arith.addf %1160, %1175 : vector<1x256xf32>
    %c92_166 = arith.constant 92 : index
    %1177 = memref.load %arg5[%c92_166] : memref<144xf32, #tpu.memory_space<smem>>
    %1178 = vector.broadcast %1177 : f32 to vector<1x256xf32>
    %1179 = arith.mulf %1133, %1178 : vector<1x256xf32>
    %1180 = arith.addf %1164, %1179 : vector<1x256xf32>
    %c128_167 = arith.constant 128 : index
    %1181 = memref.load %arg5[%c128_167] : memref<144xf32, #tpu.memory_space<smem>>
    %1182 = vector.broadcast %1181 : f32 to vector<1x256xf32>
    %1183 = arith.mulf %1133, %1182 : vector<1x256xf32>
    %1184 = arith.addf %1168, %1183 : vector<1x256xf32>
    %c21_168 = arith.constant 21 : index
    %1185 = memref.load %arg5[%c21_168] : memref<144xf32, #tpu.memory_space<smem>>
    %1186 = vector.broadcast %1185 : f32 to vector<1x256xf32>
    %1187 = arith.mulf %1109, %1186 : vector<1x256xf32>
    %1188 = arith.addf %1172, %1187 : vector<1x256xf32>
    %c57_169 = arith.constant 57 : index
    %1189 = memref.load %arg5[%c57_169] : memref<144xf32, #tpu.memory_space<smem>>
    %1190 = vector.broadcast %1189 : f32 to vector<1x256xf32>
    %1191 = arith.mulf %1109, %1190 : vector<1x256xf32>
    %1192 = arith.addf %1176, %1191 : vector<1x256xf32>
    %c93_170 = arith.constant 93 : index
    %1193 = memref.load %arg5[%c93_170] : memref<144xf32, #tpu.memory_space<smem>>
    %1194 = vector.broadcast %1193 : f32 to vector<1x256xf32>
    %1195 = arith.mulf %1109, %1194 : vector<1x256xf32>
    %1196 = arith.addf %1180, %1195 : vector<1x256xf32>
    %c129_171 = arith.constant 129 : index
    %1197 = memref.load %arg5[%c129_171] : memref<144xf32, #tpu.memory_space<smem>>
    %1198 = vector.broadcast %1197 : f32 to vector<1x256xf32>
    %1199 = arith.mulf %1109, %1198 : vector<1x256xf32>
    %1200 = arith.addf %1184, %1199 : vector<1x256xf32>
    %c22_172 = arith.constant 22 : index
    %1201 = memref.load %arg5[%c22_172] : memref<144xf32, #tpu.memory_space<smem>>
    %1202 = vector.broadcast %1201 : f32 to vector<1x256xf32>
    %1203 = arith.mulf %739, %1202 : vector<1x256xf32>
    %1204 = arith.addf %1188, %1203 : vector<1x256xf32>
    %c58_173 = arith.constant 58 : index
    %1205 = memref.load %arg5[%c58_173] : memref<144xf32, #tpu.memory_space<smem>>
    %1206 = vector.broadcast %1205 : f32 to vector<1x256xf32>
    %1207 = arith.mulf %739, %1206 : vector<1x256xf32>
    %1208 = arith.addf %1192, %1207 : vector<1x256xf32>
    %c94_174 = arith.constant 94 : index
    %1209 = memref.load %arg5[%c94_174] : memref<144xf32, #tpu.memory_space<smem>>
    %1210 = vector.broadcast %1209 : f32 to vector<1x256xf32>
    %1211 = arith.mulf %739, %1210 : vector<1x256xf32>
    %1212 = arith.addf %1196, %1211 : vector<1x256xf32>
    %c130_175 = arith.constant 130 : index
    %1213 = memref.load %arg5[%c130_175] : memref<144xf32, #tpu.memory_space<smem>>
    %1214 = vector.broadcast %1213 : f32 to vector<1x256xf32>
    %1215 = arith.mulf %739, %1214 : vector<1x256xf32>
    %1216 = arith.addf %1200, %1215 : vector<1x256xf32>
    %c23_176 = arith.constant 23 : index
    %1217 = memref.load %arg5[%c23_176] : memref<144xf32, #tpu.memory_space<smem>>
    %1218 = vector.broadcast %1217 : f32 to vector<1x256xf32>
    %1219 = arith.mulf %1112, %1218 : vector<1x256xf32>
    %1220 = arith.addf %1204, %1219 : vector<1x256xf32>
    %c59_177 = arith.constant 59 : index
    %1221 = memref.load %arg5[%c59_177] : memref<144xf32, #tpu.memory_space<smem>>
    %1222 = vector.broadcast %1221 : f32 to vector<1x256xf32>
    %1223 = arith.mulf %1112, %1222 : vector<1x256xf32>
    %1224 = arith.addf %1208, %1223 : vector<1x256xf32>
    %c95_178 = arith.constant 95 : index
    %1225 = memref.load %arg5[%c95_178] : memref<144xf32, #tpu.memory_space<smem>>
    %1226 = vector.broadcast %1225 : f32 to vector<1x256xf32>
    %1227 = arith.mulf %1112, %1226 : vector<1x256xf32>
    %1228 = arith.addf %1212, %1227 : vector<1x256xf32>
    %c131_179 = arith.constant 131 : index
    %1229 = memref.load %arg5[%c131_179] : memref<144xf32, #tpu.memory_space<smem>>
    %1230 = vector.broadcast %1229 : f32 to vector<1x256xf32>
    %1231 = arith.mulf %1112, %1230 : vector<1x256xf32>
    %1232 = arith.addf %1216, %1231 : vector<1x256xf32>
    %c24_180 = arith.constant 24 : index
    %1233 = memref.load %arg5[%c24_180] : memref<144xf32, #tpu.memory_space<smem>>
    %1234 = vector.broadcast %1233 : f32 to vector<1x256xf32>
    %1235 = arith.mulf %1120, %1234 : vector<1x256xf32>
    %1236 = arith.addf %1220, %1235 : vector<1x256xf32>
    %c60_181 = arith.constant 60 : index
    %1237 = memref.load %arg5[%c60_181] : memref<144xf32, #tpu.memory_space<smem>>
    %1238 = vector.broadcast %1237 : f32 to vector<1x256xf32>
    %1239 = arith.mulf %1120, %1238 : vector<1x256xf32>
    %1240 = arith.addf %1224, %1239 : vector<1x256xf32>
    %c96_182 = arith.constant 96 : index
    %1241 = memref.load %arg5[%c96_182] : memref<144xf32, #tpu.memory_space<smem>>
    %1242 = vector.broadcast %1241 : f32 to vector<1x256xf32>
    %1243 = arith.mulf %1120, %1242 : vector<1x256xf32>
    %1244 = arith.addf %1228, %1243 : vector<1x256xf32>
    %c132_183 = arith.constant 132 : index
    %1245 = memref.load %arg5[%c132_183] : memref<144xf32, #tpu.memory_space<smem>>
    %1246 = vector.broadcast %1245 : f32 to vector<1x256xf32>
    %1247 = arith.mulf %1120, %1246 : vector<1x256xf32>
    %1248 = arith.addf %1232, %1247 : vector<1x256xf32>
    %c25_184 = arith.constant 25 : index
    %1249 = memref.load %arg5[%c25_184] : memref<144xf32, #tpu.memory_space<smem>>
    %1250 = vector.broadcast %1249 : f32 to vector<1x256xf32>
    %1251 = arith.mulf %1128, %1250 : vector<1x256xf32>
    %1252 = arith.addf %1236, %1251 : vector<1x256xf32>
    %c61_185 = arith.constant 61 : index
    %1253 = memref.load %arg5[%c61_185] : memref<144xf32, #tpu.memory_space<smem>>
    %1254 = vector.broadcast %1253 : f32 to vector<1x256xf32>
    %1255 = arith.mulf %1128, %1254 : vector<1x256xf32>
    %1256 = arith.addf %1240, %1255 : vector<1x256xf32>
    %c97_186 = arith.constant 97 : index
    %1257 = memref.load %arg5[%c97_186] : memref<144xf32, #tpu.memory_space<smem>>
    %1258 = vector.broadcast %1257 : f32 to vector<1x256xf32>
    %1259 = arith.mulf %1128, %1258 : vector<1x256xf32>
    %1260 = arith.addf %1244, %1259 : vector<1x256xf32>
    %c133_187 = arith.constant 133 : index
    %1261 = memref.load %arg5[%c133_187] : memref<144xf32, #tpu.memory_space<smem>>
    %1262 = vector.broadcast %1261 : f32 to vector<1x256xf32>
    %1263 = arith.mulf %1128, %1262 : vector<1x256xf32>
    %1264 = arith.addf %1248, %1263 : vector<1x256xf32>
    %c26_188 = arith.constant 26 : index
    %1265 = memref.load %arg5[%c26_188] : memref<144xf32, #tpu.memory_space<smem>>
    %1266 = vector.broadcast %1265 : f32 to vector<1x256xf32>
    %1267 = arith.mulf %1136, %1266 : vector<1x256xf32>
    %1268 = arith.addf %1252, %1267 : vector<1x256xf32>
    %c62_189 = arith.constant 62 : index
    %1269 = memref.load %arg5[%c62_189] : memref<144xf32, #tpu.memory_space<smem>>
    %1270 = vector.broadcast %1269 : f32 to vector<1x256xf32>
    %1271 = arith.mulf %1136, %1270 : vector<1x256xf32>
    %1272 = arith.addf %1256, %1271 : vector<1x256xf32>
    %c98_190 = arith.constant 98 : index
    %1273 = memref.load %arg5[%c98_190] : memref<144xf32, #tpu.memory_space<smem>>
    %1274 = vector.broadcast %1273 : f32 to vector<1x256xf32>
    %1275 = arith.mulf %1136, %1274 : vector<1x256xf32>
    %1276 = arith.addf %1260, %1275 : vector<1x256xf32>
    %c134_191 = arith.constant 134 : index
    %1277 = memref.load %arg5[%c134_191] : memref<144xf32, #tpu.memory_space<smem>>
    %1278 = vector.broadcast %1277 : f32 to vector<1x256xf32>
    %1279 = arith.mulf %1136, %1278 : vector<1x256xf32>
    %1280 = arith.addf %1264, %1279 : vector<1x256xf32>
    %c1_i32_192 = arith.constant 1 : i32
    %1281 = tpu.dynamic_rotate %744 by %c1_i32_192 dim 1 : vector<1x256xf32>, i32 -> vector<1x256xf32>
    %c255_i32_193 = arith.constant 255 : i32
    %1282 = tpu.dynamic_rotate %744 by %c255_i32_193 dim 1 : vector<1x256xf32>, i32 -> vector<1x256xf32>
    %1283 = arith.subf %1282, %1281 : vector<1x256xf32>
    %1284 = arith.mulf %0, %1283 : vector<1x256xf32>
    %1285 = arith.addf %1281, %1284 : vector<1x256xf32>
    %1286 = arith.subf %1281, %1282 : vector<1x256xf32>
    %1287 = arith.mulf %1, %1286 : vector<1x256xf32>
    %1288 = arith.addf %1282, %1287 : vector<1x256xf32>
    %c16_i32_194 = arith.constant 16 : i32
    %1289 = tpu.dynamic_rotate %1285 by %c16_i32_194 dim 1 : vector<1x256xf32>, i32 -> vector<1x256xf32>
    %c240_i32_195 = arith.constant 240 : i32
    %1290 = tpu.dynamic_rotate %1285 by %c240_i32_195 dim 1 : vector<1x256xf32>, i32 -> vector<1x256xf32>
    %1291 = arith.subf %1290, %1289 : vector<1x256xf32>
    %1292 = arith.mulf %2, %1291 : vector<1x256xf32>
    %1293 = arith.addf %1289, %1292 : vector<1x256xf32>
    %1294 = arith.subf %1289, %1290 : vector<1x256xf32>
    %1295 = arith.mulf %3, %1294 : vector<1x256xf32>
    %1296 = arith.addf %1290, %1295 : vector<1x256xf32>
    %c16_i32_196 = arith.constant 16 : i32
    %1297 = tpu.dynamic_rotate %744 by %c16_i32_196 dim 1 : vector<1x256xf32>, i32 -> vector<1x256xf32>
    %c240_i32_197 = arith.constant 240 : i32
    %1298 = tpu.dynamic_rotate %744 by %c240_i32_197 dim 1 : vector<1x256xf32>, i32 -> vector<1x256xf32>
    %1299 = arith.subf %1298, %1297 : vector<1x256xf32>
    %1300 = arith.mulf %2, %1299 : vector<1x256xf32>
    %1301 = arith.addf %1297, %1300 : vector<1x256xf32>
    %1302 = arith.subf %1297, %1298 : vector<1x256xf32>
    %1303 = arith.mulf %3, %1302 : vector<1x256xf32>
    %1304 = arith.addf %1298, %1303 : vector<1x256xf32>
    %c16_i32_198 = arith.constant 16 : i32
    %1305 = tpu.dynamic_rotate %1288 by %c16_i32_198 dim 1 : vector<1x256xf32>, i32 -> vector<1x256xf32>
    %c240_i32_199 = arith.constant 240 : i32
    %1306 = tpu.dynamic_rotate %1288 by %c240_i32_199 dim 1 : vector<1x256xf32>, i32 -> vector<1x256xf32>
    %1307 = arith.subf %1306, %1305 : vector<1x256xf32>
    %1308 = arith.mulf %2, %1307 : vector<1x256xf32>
    %1309 = arith.addf %1305, %1308 : vector<1x256xf32>
    %1310 = arith.subf %1305, %1306 : vector<1x256xf32>
    %1311 = arith.mulf %3, %1310 : vector<1x256xf32>
    %1312 = arith.addf %1306, %1311 : vector<1x256xf32>
    %c27_200 = arith.constant 27 : index
    %1313 = memref.load %arg5[%c27_200] : memref<144xf32, #tpu.memory_space<smem>>
    %1314 = vector.broadcast %1313 : f32 to vector<1x256xf32>
    %1315 = arith.mulf %1293, %1314 : vector<1x256xf32>
    %1316 = arith.addf %1268, %1315 : vector<1x256xf32>
    %c63_201 = arith.constant 63 : index
    %1317 = memref.load %arg5[%c63_201] : memref<144xf32, #tpu.memory_space<smem>>
    %1318 = vector.broadcast %1317 : f32 to vector<1x256xf32>
    %1319 = arith.mulf %1293, %1318 : vector<1x256xf32>
    %1320 = arith.addf %1272, %1319 : vector<1x256xf32>
    %c99_202 = arith.constant 99 : index
    %1321 = memref.load %arg5[%c99_202] : memref<144xf32, #tpu.memory_space<smem>>
    %1322 = vector.broadcast %1321 : f32 to vector<1x256xf32>
    %1323 = arith.mulf %1293, %1322 : vector<1x256xf32>
    %1324 = arith.addf %1276, %1323 : vector<1x256xf32>
    %c135_203 = arith.constant 135 : index
    %1325 = memref.load %arg5[%c135_203] : memref<144xf32, #tpu.memory_space<smem>>
    %1326 = vector.broadcast %1325 : f32 to vector<1x256xf32>
    %1327 = arith.mulf %1293, %1326 : vector<1x256xf32>
    %1328 = arith.addf %1280, %1327 : vector<1x256xf32>
    %c28_204 = arith.constant 28 : index
    %1329 = memref.load %arg5[%c28_204] : memref<144xf32, #tpu.memory_space<smem>>
    %1330 = vector.broadcast %1329 : f32 to vector<1x256xf32>
    %1331 = arith.mulf %1301, %1330 : vector<1x256xf32>
    %1332 = arith.addf %1316, %1331 : vector<1x256xf32>
    %c64_205 = arith.constant 64 : index
    %1333 = memref.load %arg5[%c64_205] : memref<144xf32, #tpu.memory_space<smem>>
    %1334 = vector.broadcast %1333 : f32 to vector<1x256xf32>
    %1335 = arith.mulf %1301, %1334 : vector<1x256xf32>
    %1336 = arith.addf %1320, %1335 : vector<1x256xf32>
    %c100_206 = arith.constant 100 : index
    %1337 = memref.load %arg5[%c100_206] : memref<144xf32, #tpu.memory_space<smem>>
    %1338 = vector.broadcast %1337 : f32 to vector<1x256xf32>
    %1339 = arith.mulf %1301, %1338 : vector<1x256xf32>
    %1340 = arith.addf %1324, %1339 : vector<1x256xf32>
    %c136_207 = arith.constant 136 : index
    %1341 = memref.load %arg5[%c136_207] : memref<144xf32, #tpu.memory_space<smem>>
    %1342 = vector.broadcast %1341 : f32 to vector<1x256xf32>
    %1343 = arith.mulf %1301, %1342 : vector<1x256xf32>
    %1344 = arith.addf %1328, %1343 : vector<1x256xf32>
    %c29_208 = arith.constant 29 : index
    %1345 = memref.load %arg5[%c29_208] : memref<144xf32, #tpu.memory_space<smem>>
    %1346 = vector.broadcast %1345 : f32 to vector<1x256xf32>
    %1347 = arith.mulf %1309, %1346 : vector<1x256xf32>
    %1348 = arith.addf %1332, %1347 : vector<1x256xf32>
    %c65_209 = arith.constant 65 : index
    %1349 = memref.load %arg5[%c65_209] : memref<144xf32, #tpu.memory_space<smem>>
    %1350 = vector.broadcast %1349 : f32 to vector<1x256xf32>
    %1351 = arith.mulf %1309, %1350 : vector<1x256xf32>
    %1352 = arith.addf %1336, %1351 : vector<1x256xf32>
    %c101_210 = arith.constant 101 : index
    %1353 = memref.load %arg5[%c101_210] : memref<144xf32, #tpu.memory_space<smem>>
    %1354 = vector.broadcast %1353 : f32 to vector<1x256xf32>
    %1355 = arith.mulf %1309, %1354 : vector<1x256xf32>
    %1356 = arith.addf %1340, %1355 : vector<1x256xf32>
    %c137_211 = arith.constant 137 : index
    %1357 = memref.load %arg5[%c137_211] : memref<144xf32, #tpu.memory_space<smem>>
    %1358 = vector.broadcast %1357 : f32 to vector<1x256xf32>
    %1359 = arith.mulf %1309, %1358 : vector<1x256xf32>
    %1360 = arith.addf %1344, %1359 : vector<1x256xf32>
    %c30_212 = arith.constant 30 : index
    %1361 = memref.load %arg5[%c30_212] : memref<144xf32, #tpu.memory_space<smem>>
    %1362 = vector.broadcast %1361 : f32 to vector<1x256xf32>
    %1363 = arith.mulf %1285, %1362 : vector<1x256xf32>
    %1364 = arith.addf %1348, %1363 : vector<1x256xf32>
    %c66_213 = arith.constant 66 : index
    %1365 = memref.load %arg5[%c66_213] : memref<144xf32, #tpu.memory_space<smem>>
    %1366 = vector.broadcast %1365 : f32 to vector<1x256xf32>
    %1367 = arith.mulf %1285, %1366 : vector<1x256xf32>
    %1368 = arith.addf %1352, %1367 : vector<1x256xf32>
    %c102_214 = arith.constant 102 : index
    %1369 = memref.load %arg5[%c102_214] : memref<144xf32, #tpu.memory_space<smem>>
    %1370 = vector.broadcast %1369 : f32 to vector<1x256xf32>
    %1371 = arith.mulf %1285, %1370 : vector<1x256xf32>
    %1372 = arith.addf %1356, %1371 : vector<1x256xf32>
    %c138_215 = arith.constant 138 : index
    %1373 = memref.load %arg5[%c138_215] : memref<144xf32, #tpu.memory_space<smem>>
    %1374 = vector.broadcast %1373 : f32 to vector<1x256xf32>
    %1375 = arith.mulf %1285, %1374 : vector<1x256xf32>
    %1376 = arith.addf %1360, %1375 : vector<1x256xf32>
    %c31_216 = arith.constant 31 : index
    %1377 = memref.load %arg5[%c31_216] : memref<144xf32, #tpu.memory_space<smem>>
    %1378 = vector.broadcast %1377 : f32 to vector<1x256xf32>
    %1379 = arith.mulf %744, %1378 : vector<1x256xf32>
    %1380 = arith.addf %1364, %1379 : vector<1x256xf32>
    %c67_217 = arith.constant 67 : index
    %1381 = memref.load %arg5[%c67_217] : memref<144xf32, #tpu.memory_space<smem>>
    %1382 = vector.broadcast %1381 : f32 to vector<1x256xf32>
    %1383 = arith.mulf %744, %1382 : vector<1x256xf32>
    %1384 = arith.addf %1368, %1383 : vector<1x256xf32>
    %c103_218 = arith.constant 103 : index
    %1385 = memref.load %arg5[%c103_218] : memref<144xf32, #tpu.memory_space<smem>>
    %1386 = vector.broadcast %1385 : f32 to vector<1x256xf32>
    %1387 = arith.mulf %744, %1386 : vector<1x256xf32>
    %1388 = arith.addf %1372, %1387 : vector<1x256xf32>
    %c139_219 = arith.constant 139 : index
    %1389 = memref.load %arg5[%c139_219] : memref<144xf32, #tpu.memory_space<smem>>
    %1390 = vector.broadcast %1389 : f32 to vector<1x256xf32>
    %1391 = arith.mulf %744, %1390 : vector<1x256xf32>
    %1392 = arith.addf %1376, %1391 : vector<1x256xf32>
    %c32_220 = arith.constant 32 : index
    %1393 = memref.load %arg5[%c32_220] : memref<144xf32, #tpu.memory_space<smem>>
    %1394 = vector.broadcast %1393 : f32 to vector<1x256xf32>
    %1395 = arith.mulf %1288, %1394 : vector<1x256xf32>
    %1396 = arith.addf %1380, %1395 : vector<1x256xf32>
    %c68_221 = arith.constant 68 : index
    %1397 = memref.load %arg5[%c68_221] : memref<144xf32, #tpu.memory_space<smem>>
    %1398 = vector.broadcast %1397 : f32 to vector<1x256xf32>
    %1399 = arith.mulf %1288, %1398 : vector<1x256xf32>
    %1400 = arith.addf %1384, %1399 : vector<1x256xf32>
    %c104_222 = arith.constant 104 : index
    %1401 = memref.load %arg5[%c104_222] : memref<144xf32, #tpu.memory_space<smem>>
    %1402 = vector.broadcast %1401 : f32 to vector<1x256xf32>
    %1403 = arith.mulf %1288, %1402 : vector<1x256xf32>
    %1404 = arith.addf %1388, %1403 : vector<1x256xf32>
    %c140_223 = arith.constant 140 : index
    %1405 = memref.load %arg5[%c140_223] : memref<144xf32, #tpu.memory_space<smem>>
    %1406 = vector.broadcast %1405 : f32 to vector<1x256xf32>
    %1407 = arith.mulf %1288, %1406 : vector<1x256xf32>
    %1408 = arith.addf %1392, %1407 : vector<1x256xf32>
    %c33_224 = arith.constant 33 : index
    %1409 = memref.load %arg5[%c33_224] : memref<144xf32, #tpu.memory_space<smem>>
    %1410 = vector.broadcast %1409 : f32 to vector<1x256xf32>
    %1411 = arith.mulf %1296, %1410 : vector<1x256xf32>
    %1412 = arith.addf %1396, %1411 : vector<1x256xf32>
    %c69_225 = arith.constant 69 : index
    %1413 = memref.load %arg5[%c69_225] : memref<144xf32, #tpu.memory_space<smem>>
    %1414 = vector.broadcast %1413 : f32 to vector<1x256xf32>
    %1415 = arith.mulf %1296, %1414 : vector<1x256xf32>
    %1416 = arith.addf %1400, %1415 : vector<1x256xf32>
    %c105_226 = arith.constant 105 : index
    %1417 = memref.load %arg5[%c105_226] : memref<144xf32, #tpu.memory_space<smem>>
    %1418 = vector.broadcast %1417 : f32 to vector<1x256xf32>
    %1419 = arith.mulf %1296, %1418 : vector<1x256xf32>
    %1420 = arith.addf %1404, %1419 : vector<1x256xf32>
    %c141_227 = arith.constant 141 : index
    %1421 = memref.load %arg5[%c141_227] : memref<144xf32, #tpu.memory_space<smem>>
    %1422 = vector.broadcast %1421 : f32 to vector<1x256xf32>
    %1423 = arith.mulf %1296, %1422 : vector<1x256xf32>
    %1424 = arith.addf %1408, %1423 : vector<1x256xf32>
    %c34_228 = arith.constant 34 : index
    %1425 = memref.load %arg5[%c34_228] : memref<144xf32, #tpu.memory_space<smem>>
    %1426 = vector.broadcast %1425 : f32 to vector<1x256xf32>
    %1427 = arith.mulf %1304, %1426 : vector<1x256xf32>
    %1428 = arith.addf %1412, %1427 : vector<1x256xf32>
    %c70_229 = arith.constant 70 : index
    %1429 = memref.load %arg5[%c70_229] : memref<144xf32, #tpu.memory_space<smem>>
    %1430 = vector.broadcast %1429 : f32 to vector<1x256xf32>
    %1431 = arith.mulf %1304, %1430 : vector<1x256xf32>
    %1432 = arith.addf %1416, %1431 : vector<1x256xf32>
    %c106_230 = arith.constant 106 : index
    %1433 = memref.load %arg5[%c106_230] : memref<144xf32, #tpu.memory_space<smem>>
    %1434 = vector.broadcast %1433 : f32 to vector<1x256xf32>
    %1435 = arith.mulf %1304, %1434 : vector<1x256xf32>
    %1436 = arith.addf %1420, %1435 : vector<1x256xf32>
    %c142_231 = arith.constant 142 : index
    %1437 = memref.load %arg5[%c142_231] : memref<144xf32, #tpu.memory_space<smem>>
    %1438 = vector.broadcast %1437 : f32 to vector<1x256xf32>
    %1439 = arith.mulf %1304, %1438 : vector<1x256xf32>
    %1440 = arith.addf %1424, %1439 : vector<1x256xf32>
    %c35_232 = arith.constant 35 : index
    %1441 = memref.load %arg5[%c35_232] : memref<144xf32, #tpu.memory_space<smem>>
    %1442 = vector.broadcast %1441 : f32 to vector<1x256xf32>
    %1443 = arith.mulf %1312, %1442 : vector<1x256xf32>
    %1444 = arith.addf %1428, %1443 : vector<1x256xf32>
    %c71_233 = arith.constant 71 : index
    %1445 = memref.load %arg5[%c71_233] : memref<144xf32, #tpu.memory_space<smem>>
    %1446 = vector.broadcast %1445 : f32 to vector<1x256xf32>
    %1447 = arith.mulf %1312, %1446 : vector<1x256xf32>
    %1448 = arith.addf %1432, %1447 : vector<1x256xf32>
    %c107_234 = arith.constant 107 : index
    %1449 = memref.load %arg5[%c107_234] : memref<144xf32, #tpu.memory_space<smem>>
    %1450 = vector.broadcast %1449 : f32 to vector<1x256xf32>
    %1451 = arith.mulf %1312, %1450 : vector<1x256xf32>
    %1452 = arith.addf %1436, %1451 : vector<1x256xf32>
    %c143_235 = arith.constant 143 : index
    %1453 = memref.load %arg5[%c143_235] : memref<144xf32, #tpu.memory_space<smem>>
    %1454 = vector.broadcast %1453 : f32 to vector<1x256xf32>
    %1455 = arith.mulf %1312, %1454 : vector<1x256xf32>
    %1456 = arith.addf %1440, %1455 : vector<1x256xf32>
    %c0_236 = arith.constant 0 : index
    %c0_237 = arith.constant 0 : index
    %c0_238 = arith.constant 0 : index
    %1457 = vector.load %arg1[%c0_236, %c0_237, %c0_238] : memref<1x4x256xf32, #tpu.memory_space<vmem>>, vector<1x1x256xf32>
    %1458 = vector.shape_cast %1457 : vector<1x1x256xf32> to vector<1x256xf32>
    %cst_239 = arith.constant 1.000000e-01 : f32
    %1459 = vector.broadcast %cst_239 : f32 to vector<1x256xf32>
    %1460 = arith.mulf %1444, %1459 : vector<1x256xf32>
    %1461 = arith.addf %1460, %1458 : vector<1x256xf32>
    %c0_240 = arith.constant 0 : index
    %c0_241 = arith.constant 0 : index
    %c0_242 = arith.constant 0 : index
    %1462 = vector.load %arg8[%c0_240, %c0_241, %c0_242] : memref<1x4x256xf32, #tpu.memory_space<vmem>>, vector<1x1x256xf32>
    %1463 = vector.shape_cast %1462 : vector<1x1x256xf32> to vector<1x256xf32>
    %1464 = vector.shape_cast %1461 : vector<1x256xf32> to vector<1x1x256xf32>
    tpu.vector_store %arg8[%c0_240, %c0_241, %c0_242], %1464 {strides = array<i32>} : memref<1x4x256xf32, #tpu.memory_space<vmem>>, vector<1x1x256xf32>,
    %c0_243 = arith.constant 0 : index
    %c1_244 = arith.constant 1 : index
    %c0_245 = arith.constant 0 : index
    %1465 = vector.load %arg1[%c0_243, %c1_244, %c0_245] : memref<1x4x256xf32, #tpu.memory_space<vmem>>, vector<1x1x256xf32>
    %1466 = vector.shape_cast %1465 : vector<1x1x256xf32> to vector<1x256xf32>
    %cst_246 = arith.constant 1.000000e-01 : f32
    %1467 = vector.broadcast %cst_246 : f32 to vector<1x256xf32>
    %1468 = arith.mulf %1448, %1467 : vector<1x256xf32>
    %1469 = arith.addf %1468, %1466 : vector<1x256xf32>
    %c0_247 = arith.constant 0 : index
    %c1_248 = arith.constant 1 : index
    %c0_249 = arith.constant 0 : index
    %1470 = vector.load %arg8[%c0_247, %c1_248, %c0_249] : memref<1x4x256xf32, #tpu.memory_space<vmem>>, vector<1x1x256xf32>
    %1471 = vector.shape_cast %1470 : vector<1x1x256xf32> to vector<1x256xf32>
    %1472 = vector.shape_cast %1469 : vector<1x256xf32> to vector<1x1x256xf32>
    tpu.vector_store %arg8[%c0_247, %c1_248, %c0_249], %1472 {strides = array<i32>} : memref<1x4x256xf32, #tpu.memory_space<vmem>>, vector<1x1x256xf32>,
    %c0_250 = arith.constant 0 : index
    %c2_251 = arith.constant 2 : index
    %c0_252 = arith.constant 0 : index
    %1473 = vector.load %arg1[%c0_250, %c2_251, %c0_252] : memref<1x4x256xf32, #tpu.memory_space<vmem>>, vector<1x1x256xf32>
    %1474 = vector.shape_cast %1473 : vector<1x1x256xf32> to vector<1x256xf32>
    %cst_253 = arith.constant 1.000000e-01 : f32
    %1475 = vector.broadcast %cst_253 : f32 to vector<1x256xf32>
    %1476 = arith.mulf %1452, %1475 : vector<1x256xf32>
    %1477 = arith.addf %1476, %1474 : vector<1x256xf32>
    %c0_254 = arith.constant 0 : index
    %c2_255 = arith.constant 2 : index
    %c0_256 = arith.constant 0 : index
    %1478 = vector.load %arg8[%c0_254, %c2_255, %c0_256] : memref<1x4x256xf32, #tpu.memory_space<vmem>>, vector<1x1x256xf32>
    %1479 = vector.shape_cast %1478 : vector<1x1x256xf32> to vector<1x256xf32>
    %1480 = vector.shape_cast %1477 : vector<1x256xf32> to vector<1x1x256xf32>
    tpu.vector_store %arg8[%c0_254, %c2_255, %c0_256], %1480 {strides = array<i32>} : memref<1x4x256xf32, #tpu.memory_space<vmem>>, vector<1x1x256xf32>,
    %c0_257 = arith.constant 0 : index
    %c3_258 = arith.constant 3 : index
    %c0_259 = arith.constant 0 : index
    %1481 = vector.load %arg1[%c0_257, %c3_258, %c0_259] : memref<1x4x256xf32, #tpu.memory_space<vmem>>, vector<1x1x256xf32>
    %1482 = vector.shape_cast %1481 : vector<1x1x256xf32> to vector<1x256xf32>
    %cst_260 = arith.constant 1.000000e-01 : f32
    %1483 = vector.broadcast %cst_260 : f32 to vector<1x256xf32>
    %1484 = arith.mulf %1456, %1483 : vector<1x256xf32>
    %1485 = arith.addf %1484, %1482 : vector<1x256xf32>
    %c0_261 = arith.constant 0 : index
    %c3_262 = arith.constant 3 : index
    %c0_263 = arith.constant 0 : index
    %1486 = vector.load %arg8[%c0_261, %c3_262, %c0_263] : memref<1x4x256xf32, #tpu.memory_space<vmem>>, vector<1x1x256xf32>
    %1487 = vector.shape_cast %1486 : vector<1x1x256xf32> to vector<1x256xf32>
    %1488 = vector.shape_cast %1485 : vector<1x256xf32> to vector<1x1x256xf32>
    tpu.vector_store %arg8[%c0_261, %c3_262, %c0_263], %1488 {strides = array<i32>} : memref<1x4x256xf32, #tpu.memory_space<vmem>>, vector<1x1x256xf32>,
    return
  }
  func.func @transform_0(%arg0: i32) -> (i32, i32, i32) {
    %c0_i32 = arith.constant 0 : i32
    %c0_i32_0 = arith.constant 0 : i32
    %c0_i32_1 = arith.constant 0 : i32
    return %arg0, %c0_i32, %c0_i32_0 : i32, i32, i32
  }
  func.func @transform_1(%arg0: i32) -> i32 {
    %c0_i32 = arith.constant 0 : i32
    %c0_i32_0 = arith.constant 0 : i32
    return %c0_i32 : i32
  }
  func.func @transform_2(%arg0: i32) -> i32 {
    %c0_i32 = arith.constant 0 : i32
    %c0_i32_0 = arith.constant 0 : i32
    return %c0_i32 : i32
  }
  func.func @transform_3(%arg0: i32) -> i32 {
    %c0_i32 = arith.constant 0 : i32
    %c0_i32_0 = arith.constant 0 : i32
    return %c0_i32 : i32
  }
  func.func @transform_4(%arg0: i32) -> i32 {
    %c0_i32 = arith.constant 0 : i32
    %c0_i32_0 = arith.constant 0 : i32
    return %c0_i32 : i32
  }
  func.func @transform_5(%arg0: i32) -> i32 {
    %c0_i32 = arith.constant 0 : i32
    %c0_i32_0 = arith.constant 0 : i32
    return %c0_i32 : i32
  }
  func.func @transform_6(%arg0: i32) -> (i32, i32) {
    %c0_i32 = arith.constant 0 : i32
    %c0_i32_0 = arith.constant 0 : i32
    %c0_i32_1 = arith.constant 0 : i32
    return %c0_i32, %c0_i32_0 : i32, i32
  }
  func.func @transform_7(%arg0: i32) -> (i32, i32, i32) {
    %c0_i32 = arith.constant 0 : i32
    %c0_i32_0 = arith.constant 0 : i32
    %c0_i32_1 = arith.constant 0 : i32
    return %arg0, %c0_i32, %c0_i32_0 : i32, i32, i32
  }
}

</mosaic_0001>

<llo_original>
// kernel: tpu_custom_call.1
$region0: #{tpu_custom_call.1}
  #allocation0 [shape = 'u32[]', space=smem, size = 0x4, offset = 0x4, fixed_abs, tag = 'smem constant byte address 0x4 - core index']
  #allocation1 [shape = 'u32[144,128]{1,0:T(1,128)}', space=vmem, size = 0x12000, scoped, tag = 'internal scratch']
  #allocation2 [shape = 'f32[1]{0:T(128)S(6)}', space=smem, size = 0x200, scoped, tag = 'scoped memory for tpu_custom_call.1']
  %s0 = inlined_call_operand.hbm [shape: f32[2,4,256], index: 0, kind: input, shape index: {}]
  %s1 = inlined_call_operand.vmem [shape: f32[144], index: 1, kind: input, shape index: {}]
  %s2 = inlined_call_operand.vmem [shape: f32[4], index: 2, kind: input, shape index: {}]
  %s3 = inlined_call_operand.<no memory space> [shape: f32[1], index: 3, kind: input, shape index: {}]
  %s4 = inlined_call_operand.vmem [shape: f32[144], index: 4, kind: input, shape index: {}]
  %s5 = inlined_call_operand.vmem [shape: f32[4], index: 5, kind: input, shape index: {}]
  %s6 = inlined_call_operand.vmem [shape: f32[4,256], index: 6, kind: input, shape index: {}]
  %s7 = inlined_call_operand.hbm [shape: f32[2,4,256], index: 7, kind: output, shape index: {}]
  %s8 = sld [smem:[#allocation0]]
  $region81: #{tpu_custom_call.1} parent=0
    _
  %s10 = ssub.s32 1, %s8
  %s11 = scalar_select 0, %s10, %s8
  %12 = sst [smem:[#allocation2]] %s3
  $region1: #{tpu_custom_call.1} parent=0
    #allocation3 [shape = 'u8[8192]{0}', space=vmem, size = 0x2000, scoped, tag = 'input window, operand 0']
    #allocation4 [shape = 's32[2]{0}', space=sflag, size = 0x8, scoped, tag = 'scoped memory for tpu_custom_call.1']
    #allocation5 [shape = 's32[2]{0}', space=sflag, size = 0x8, scoped, tag = 'scoped memory for tpu_custom_call.1']
    #allocation6 [shape = 's32[2]{0}', space=sflag, size = 0x8, scoped, tag = 'scoped memory for tpu_custom_call.1']
    #allocation7 [shape = 'u8[1024]{0}', space=smem, size = 0x400, scoped, tag = 'input window, operand 1, single buffered']
    #allocation8 [shape = 'u8[512]{0}', space=smem, size = 0x200, scoped, tag = 'input window, operand 2, single buffered']
    #allocation9 [shape = 's32[1]{0}', space=sflag, size = 0x4, scoped, tag = 'scoped memory for tpu_custom_call.1']
    #allocation10 [shape = 'u8[1024]{0}', space=smem, size = 0x400, scoped, tag = 'input window, operand 4, single buffered']
    #allocation11 [shape = 'u8[512]{0}', space=smem, size = 0x200, scoped, tag = 'input window, operand 5, single buffered']
    #allocation12 [shape = 's32[1]{0}', space=sflag, size = 0x4, scoped, tag = 'scoped memory for tpu_custom_call.1']
    #allocation13 [shape = 'u8[8192]{0}', space=vmem, size = 0x2000, scoped, tag = 'output window, operand 0']
    %13 = vsyncpa [#allocation4], 0
    %s14 = scalar_lea.sflag [#allocation4], 1
    %15 = vsyncpa %s14, 0
    %16 = vsyncpa [#allocation6], 0
    %17 = vsyncpa [#allocation9], 0
    %18 = vsyncpa [#allocation12], 0
    %19 = vsyncpa [#allocation5], 0
    %s20 = scalar_lea.sflag [#allocation5], 1
    %21 = vsyncpa %s20, 0
    loop: start=0, step=1, limit=4
    $region2: #{tpu_custom_call.1} parent=1 // loop_pre_header
      _
    $region3: #{tpu_custom_call.1} parent=1 // loop_header
      %s23 = sphi 0, %s27
      %p24 = scmp.ge.s32.totalorder %s23, 4
      %s33 = sphi 0, %s35
      %s36 = sphi 0, %s33
      %s37 = sphi 0, %s36
      %s53 = sphi 0, %s37
      %s57 = sphi 0, %s57
      %s59 = sphi 0, %s57
      %s60 = sphi 0, %s59
      %s74 = sphi 0, %s60
      %s78 = sphi 0, %s78
      %s80 = sphi 0, %s78
      %s81 = sphi 0, %s80
      %s95 = sphi 0, %s81
      %s99 = sphi 0, %s99
      %s101 = sphi 0, %s99
      %s102 = sphi 0, %s101
      %s116 = sphi 0, %s102
      %s120 = sphi 0, %s120
      %s122 = sphi 0, %s120
      %s123 = sphi 0, %s122
      %s137 = sphi 0, %s123
      %s141 = sphi 0, %s141
      %s143 = sphi 0, %s141
      %s144 = sphi 0, %s143
      %s158 = sphi 0, %s144
      %s162 = sphi 0, %s162
      %s164 = sphi 0, %s162
      %s165 = sphi 0, %s164
      %s179 = sphi 0, %s165
      %s185 = sphi 0, %s187
      %s188 = sphi 0, %s185
      %s189 = sphi 0, %s188
      %s205 = sphi 0, %s189
    $region4: #{tpu_custom_call.1} parent=1 // loop_header_branch
      %26 = sbr.rel (%p24) target = $region8
    $region5: #{tpu_custom_call.1} parent=1 // loop_body
      %s28 = ssub.s32 %s23, 1
      %s29 = ssub.s32 %s23, 2
      %s30 = sadd.s32 %s23, 1
      %s31 = ssub.s32 %s23, %s30
      %p32 = scmp.eq.s32.totalorder %s31, 0
      %s34 = sadd.s32 %s33, 1
      %s35 = scalar_select %p32, %s33, %s34
      %p38 = pneg %p32
      %p39 = scmp.eq.s32.totalorder %s23, 1
      %p40 = por %p38, %p39
      %p41 = scmp.ne.s32.totalorder %s33, %s36
      %p42 = scmp.eq.s32.totalorder %s23, 0
      %p43 = por %p41, %p42
      %p44 = scmp.ne.s32.totalorder %s33, %s36
      %p45 = scmp.eq.s32.totalorder %s28, 1
      %p46 = por %p44, %p45
      %p47 = scmp.ne.s32.totalorder %s36, %s37
      %p48 = scmp.eq.s32.totalorder %s28, 0
      %p49 = por %p47, %p48
      %p50 = scmp.ne.s32.totalorder %s36, %s37
      %p51 = scmp.eq.s32.totalorder %s29, 1
      %p52 = por %p50, %p51
      %p54 = scmp.ne.s32.totalorder %s37, %s53
      %p55 = scmp.eq.s32.totalorder %s29, 0
      %p56 = por %p54, %p55
      %s58 = sadd.s32 %s57, 1
      %p61 = scmp.eq.s32.totalorder %s23, 1
      %p62 = scmp.ne.s32.totalorder %s57, %s59
      %p63 = scmp.eq.s32.totalorder %s23, 0
      %p64 = por %p62, %p63
      %p65 = scmp.ne.s32.totalorder %s57, %s59
      %p66 = scmp.eq.s32.totalorder %s28, 1
      %p67 = por %p65, %p66
      %p68 = scmp.ne.s32.totalorder %s59, %s60
      %p69 = scmp.eq.s32.totalorder %s28, 0
      %p70 = por %p68, %p69
      %p71 = scmp.ne.s32.totalorder %s59, %s60
      %p72 = scmp.eq.s32.totalorder %s29, 1
      %p73 = por %p71, %p72
      %p75 = scmp.ne.s32.totalorder %s60, %s74
      %p76 = scmp.eq.s32.totalorder %s29, 0
      %p77 = por %p75, %p76
      %s79 = sadd.s32 %s78, 1
      %p82 = scmp.eq.s32.totalorder %s23, 1
      %p83 = scmp.ne.s32.totalorder %s78, %s80
      %p84 = scmp.eq.s32.totalorder %s23, 0
      %p85 = por %p83, %p84
      %p86 = scmp.ne.s32.totalorder %s78, %s80
      %p87 = scmp.eq.s32.totalorder %s28, 1
      %p88 = por %p86, %p87
      %p89 = scmp.ne.s32.totalorder %s80, %s81
      %p90 = scmp.eq.s32.totalorder %s28, 0
      %p91 = por %p89, %p90
      %p92 = scmp.ne.s32.totalorder %s80, %s81
      %p93 = scmp.eq.s32.totalorder %s29, 1
      %p94 = por %p92, %p93
      %p96 = scmp.ne.s32.totalorder %s81, %s95
      %p97 = scmp.eq.s32.totalorder %s29, 0
      %p98 = por %p96, %p97
      %s100 = sadd.s32 %s99, 1
      %p103 = scmp.eq.s32.totalorder %s23, 1
      %p104 = scmp.ne.s32.totalorder %s99, %s101
      %p105 = scmp.eq.s32.totalorder %s23, 0
      %p106 = por %p104, %p105
      %p107 = scmp.ne.s32.totalorder %s99, %s101
      %p108 = scmp.eq.s32.totalorder %s28, 1
      %p109 = por %p107, %p108
      %p110 = scmp.ne.s32.totalorder %s101, %s102
      %p111 = scmp.eq.s32.totalorder %s28, 0
      %p112 = por %p110, %p111
      %p113 = scmp.ne.s32.totalorder %s101, %s102
      %p114 = scmp.eq.s32.totalorder %s29, 1
      %p115 = por %p113, %p114
      %p117 = scmp.ne.s32.totalorder %s102, %s116
      %p118 = scmp.eq.s32.totalorder %s29, 0
      %p119 = por %p117, %p118
      %s121 = sadd.s32 %s120, 1
      %p124 = scmp.eq.s32.totalorder %s23, 1
      %p125 = scmp.ne.s32.totalorder %s120, %s122
      %p126 = scmp.eq.s32.totalorder %s23, 0
      %p127 = por %p125, %p126
      %p128 = scmp.ne.s32.totalorder %s120, %s122
      %p129 = scmp.eq.s32.totalorder %s28, 1
      %p130 = por %p128, %p129
      %p131 = scmp.ne.s32.totalorder %s122, %s123
      %p132 = scmp.eq.s32.totalorder %s28, 0
      %p133 = por %p131, %p132
      %p134 = scmp.ne.s32.totalorder %s122, %s123
      %p135 = scmp.eq.s32.totalorder %s29, 1
      %p136 = por %p134, %p135
      %p138 = scmp.ne.s32.totalorder %s123, %s137
      %p139 = scmp.eq.s32.totalorder %s29, 0
      %p140 = por %p138, %p139
      %s142 = sadd.s32 %s141, 1
      %p145 = scmp.eq.s32.totalorder %s23, 1
      %p146 = scmp.ne.s32.totalorder %s141, %s143
      %p147 = scmp.eq.s32.totalorder %s23, 0
      %p148 = por %p146, %p147
      %p149 = scmp.ne.s32.totalorder %s141, %s143
      %p150 = scmp.eq.s32.totalorder %s28, 1
      %p151 = por %p149, %p150
      %p152 = scmp.ne.s32.totalorder %s143, %s144
      %p153 = scmp.eq.s32.totalorder %s28, 0
      %p154 = por %p152, %p153
      %p155 = scmp.ne.s32.totalorder %s143, %s144
      %p156 = scmp.eq.s32.totalorder %s29, 1
      %p157 = por %p155, %p156
      %p159 = scmp.ne.s32.totalorder %s144, %s158
      %p160 = scmp.eq.s32.totalorder %s29, 0
      %p161 = por %p159, %p160
      %s163 = sadd.s32 %s162, 1
      %p166 = scmp.eq.s32.totalorder %s23, 1
      %p167 = scmp.ne.s32.totalorder %s162, %s164
      %p168 = scmp.eq.s32.totalorder %s23, 0
      %p169 = por %p167, %p168
      %p170 = scmp.ne.s32.totalorder %s162, %s164
      %p171 = scmp.eq.s32.totalorder %s28, 1
      %p172 = por %p170, %p171
      %p173 = scmp.ne.s32.totalorder %s164, %s165
      %p174 = scmp.eq.s32.totalorder %s28, 0
      %p175 = por %p173, %p174
      %p176 = scmp.ne.s32.totalorder %s164, %s165
      %p177 = scmp.eq.s32.totalorder %s29, 1
      %p178 = por %p176, %p177
      %p180 = scmp.ne.s32.totalorder %s165, %s179
      %p181 = scmp.eq.s32.totalorder %s29, 0
      %p182 = por %p180, %p181
      %s183 = ssub.s32 %s23, %s30
      %p184 = scmp.eq.s32.totalorder %s183, 0
      %s186 = sadd.s32 %s185, 1
      %s187 = scalar_select %p184, %s185, %s186
      %p190 = pneg %p184
      %p191 = scmp.eq.s32.totalorder %s23, 1
      %p192 = por %p190, %p191
      %p193 = scmp.ne.s32.totalorder %s185, %s188
      %p194 = scmp.eq.s32.totalorder %s23, 0
      %p195 = por %p193, %p194
      %p196 = scmp.ne.s32.totalorder %s185, %s188
      %p197 = scmp.eq.s32.totalorder %s28, 1
      %p198 = por %p196, %p197
      %p199 = scmp.ne.s32.totalorder %s188, %s189
      %p200 = scmp.eq.s32.totalorder %s28, 0
      %p201 = por %p199, %p200
      %p202 = scmp.ne.s32.totalorder %s188, %s189
      %p203 = scmp.eq.s32.totalorder %s29, 1
      %p204 = por %p202, %p203
      %p206 = scmp.ne.s32.totalorder %s189, %s205
      %p207 = scmp.eq.s32.totalorder %s29, 0
      %p208 = por %p206, %p207
      %p209 = scmp.le.s32.totalorder 1, %s23
      %p210 = scmp.lt.s32.totalorder %s23, 3
      %p211 = pnand %p209, %p210
      %p212 = pneg %p211
      // Predicated region
      $region9: #{tpu_custom_call.1} parent=5 // pred_check
        _
      $region10: #{tpu_custom_call.1} parent=5 // pred_check_branch
        %214 = sbr.rel (%p211) target = $region12
      $region11: #{tpu_custom_call.1} parent=5 // pred_region
        %s215 = ssub.s32 %s23, 1
        // Predicated region
        $region13: #{tpu_custom_call.1} parent=11 // pred_check
          %p216 = pneg %p70
        $region14: #{tpu_custom_call.1} parent=11 // pred_check_branch
          %218 = sbr.rel (%p216) target = $region16
        $region15: #{tpu_custom_call.1} parent=11 // pred_region
          %s220 = ssub.s32 32, 32
          %221 = vsyncadd [#allocation6], %s220
          %s223 = sshll.u32 %s1, 4
          %s224 = int_to_ptr.vmem [resolvable:$true] %s223
          %226 = dma.vmem_to_smem %s224, 32, [#allocation7], [#allocation6]
        $region16: #{tpu_custom_call.1} parent=11 // pred_fallthru
          _
        // Predicated region
        $region17: #{tpu_custom_call.1} parent=11 // pred_check
          %p227 = pneg %p91
        $region18: #{tpu_custom_call.1} parent=11 // pred_check_branch
          %229 = sbr.rel (%p227) target = $region20
        $region19: #{tpu_custom_call.1} parent=11 // pred_region
          %s231 = ssub.s32 16, 16
          %232 = vsyncadd [#allocation9], %s231
          %s234 = sshll.u32 %s2, 4
          %s235 = int_to_ptr.vmem [resolvable:$true] %s234
          %237 = dma.vmem_to_smem %s235, 16, [#allocation8], [#allocation9]
        $region20: #{tpu_custom_call.1} parent=11 // pred_fallthru
          _
        // Predicated region
        $region21: #{tpu_custom_call.1} parent=11 // pred_check
          %p238 = pneg %p112
        $region22: #{tpu_custom_call.1} parent=11 // pred_check_branch
          %240 = sbr.rel (%p238) target = $region24
        $region23: #{tpu_custom_call.1} parent=11 // pred_region
          _
        $region24: #{tpu_custom_call.1} parent=11 // pred_fallthru
          _
        // Predicated region
        $region25: #{tpu_custom_call.1} parent=11 // pred_check
          %p241 = pneg %p133
        $region26: #{tpu_custom_call.1} parent=11 // pred_check_branch
          %243 = sbr.rel (%p241) target = $region28
        $region27: #{tpu_custom_call.1} parent=11 // pred_region
          %s245 = ssub.s32 32, 32
          %246 = vsyncadd [#allocation9], %s245
          %s248 = sshll.u32 %s4, 4
          %s249 = int_to_ptr.vmem [resolvable:$true] %s248
          %251 = dma.vmem_to_smem %s249, 32, [#allocation10], [#allocation9]
        $region28: #{tpu_custom_call.1} parent=11 // pred_fallthru
          _
        // Predicated region
        $region29: #{tpu_custom_call.1} parent=11 // pred_check
          %p252 = pneg %p154
        $region30: #{tpu_custom_call.1} parent=11 // pred_check_branch
          %254 = sbr.rel (%p252) target = $region32
        $region31: #{tpu_custom_call.1} parent=11 // pred_region
          %s256 = ssub.s32 16, 16
          %257 = vsyncadd [#allocation12], %s256
          %s259 = sshll.u32 %s5, 4
          %s260 = int_to_ptr.vmem [resolvable:$true] %s259
          %262 = dma.vmem_to_smem %s260, 16, [#allocation11], [#allocation12]
        $region32: #{tpu_custom_call.1} parent=11 // pred_fallthru
          _
        // Predicated region
        $region33: #{tpu_custom_call.1} parent=11 // pred_check
          %p263 = pneg %p175
        $region34: #{tpu_custom_call.1} parent=11 // pred_check_branch
          %265 = sbr.rel (%p263) target = $region36
        $region35: #{tpu_custom_call.1} parent=11 // pred_region
          _
        $region36: #{tpu_custom_call.1} parent=11 // pred_fallthru
          _
      $region12: #{tpu_custom_call.1} parent=5 // pred_fallthru
        _
      %p266 = scmp.lt.s32.totalorder %s23, 2
      // Predicated region
      $region37: #{tpu_custom_call.1} parent=5 // pred_check
        %p267 = pneg %p266
      $region38: #{tpu_custom_call.1} parent=5 // pred_check_branch
        %269 = sbr.rel (%p267) target = $region40
      $region39: #{tpu_custom_call.1} parent=5 // pred_region
        // Predicated region
        $region41: #{tpu_custom_call.1} parent=39 // pred_check
          %p270 = pneg %p43
        $region42: #{tpu_custom_call.1} parent=39 // pred_check_branch
          %272 = sbr.rel (%p270) target = $region44
        $region43: #{tpu_custom_call.1} parent=39 // pred_region
          %s273 = sand.u32 %s33, 1
          %s274 = scalar_lea.sflag [#allocation4], %s273
          %s275 = sand.u32 %s33, 1
          %s276 = smul.addr %s275, 8
          %s277 = scalar_lea.vmem [#allocation3], %s276
          %s279 = ssub.s32 128, 128
          %280 = vsyncadd %s274, %s279
          %s281 = smul.addr %s23, 2
          %s282 = smul.addr %s281, 64
          %s283 = scalar_lea.hbm %s0, %s282
          %s285 = sshll.u32 %s277, 4
          %s286 = int_to_ptr.vmem [resolvable:$true] %s285
          %288 = dma.hbm_to_vmem [thread:$0]  %s283, 128, %s286, %s274
        $region44: #{tpu_custom_call.1} parent=39 // pred_fallthru
          _
      $region40: #{tpu_custom_call.1} parent=5 // pred_fallthru
        _
      %p289 = scmp.le.s32.totalorder 1, %s23
      %p290 = scmp.lt.s32.totalorder %s23, 3
      %p291 = pnand %p289, %p290
      %p292 = pneg %p291
      // Predicated region
      $region45: #{tpu_custom_call.1} parent=5 // pred_check
        _
      $region46: #{tpu_custom_call.1} parent=5 // pred_check_branch
        %294 = sbr.rel (%p291) target = $region48
      $region47: #{tpu_custom_call.1} parent=5 // pred_region
        %s295 = ssub.s32 %s23, 1
        %s296 = sand.u32 %s36, 1
        %s297 = scalar_lea.sflag [#allocation4], %s296
        %s298 = sand.u32 %s36, 1
        %s299 = smul.addr %s298, 8
        %s300 = scalar_lea.vmem [#allocation3], %s299
        // Predicated region
        $region49: #{tpu_custom_call.1} parent=47 // pred_check
          %p301 = pneg %p49
        $region50: #{tpu_custom_call.1} parent=47 // pred_check_branch
          %303 = sbr.rel (%p301) target = $region52
        $region51: #{tpu_custom_call.1} parent=47 // pred_region
          %304 = dma.done %s297, 128
        $region52: #{tpu_custom_call.1} parent=47 // pred_fallthru
          _
        // Predicated region
        $region53: #{tpu_custom_call.1} parent=47 // pred_check
          %p305 = pneg %p70
        $region54: #{tpu_custom_call.1} parent=47 // pred_check_branch
          %307 = sbr.rel (%p305) target = $region56
        $region55: #{tpu_custom_call.1} parent=47 // pred_region
          %308 = dma.done [#allocation6], 32
        $region56: #{tpu_custom_call.1} parent=47 // pred_fallthru
          _
        // Predicated region
        $region57: #{tpu_custom_call.1} parent=47 // pred_check
          %p309 = pneg %p91
        $region58: #{tpu_custom_call.1} parent=47 // pred_check_branch
          %311 = sbr.rel (%p309) target = $region60
        $region59: #{tpu_custom_call.1} parent=47 // pred_region
          %312 = dma.done [#allocation9], 16
        $region60: #{tpu_custom_call.1} parent=47 // pred_fallthru
          _
        // Predicated region
        $region61: #{tpu_custom_call.1} parent=47 // pred_check
          %p313 = pneg %p133
        $region62: #{tpu_custom_call.1} parent=47 // pred_check_branch
          %315 = sbr.rel (%p313) target = $region64
        $region63: #{tpu_custom_call.1} parent=47 // pred_region
          %316 = dma.done [#allocation9], 32
        $region64: #{tpu_custom_call.1} parent=47 // pred_fallthru
          _
        // Predicated region
        $region65: #{tpu_custom_call.1} parent=47 // pred_check
          %p317 = pneg %p154
        $region66: #{tpu_custom_call.1} parent=47 // pred_check_branch
          %319 = sbr.rel (%p317) target = $region68
        $region67: #{tpu_custom_call.1} parent=47 // pred_region
          %320 = dma.done [#allocation12], 16
        $region68: #{tpu_custom_call.1} parent=47 // pred_fallthru
          _
        %321 = sfence
        %s322 = sand.u32 %s36, 1
        %s323 = scalar_lea.sflag [#allocation4], %s322
        %s324 = sand.u32 %s36, 1
        %s325 = smul.addr %s324, 8
        %s326 = scalar_lea.vmem [#allocation3], %s325
        %p327 = pneg %p49
        %p328 = pneg %p46
        %p329 = pneg %p70
        %p330 = pneg %p67
        %p331 = pneg %p91
        %p332 = pneg %p88
        %p333 = pneg %p112
        %p334 = pneg %p109
        %p335 = pneg %p133
        %p336 = pneg %p130
        %p337 = pneg %p154
        %p338 = pneg %p151
        %p339 = pneg %p175
        %p340 = pneg %p172
        %p341 = pneg %p201
        %p342 = pneg %p198
        %s343 = sand.u32 %s188, 1
        %s344 = scalar_lea.sflag [#allocation5], %s343
        %s345 = sand.u32 %s188, 1
        %s346 = smul.addr %s345, 8
        %s347 = scalar_lea.vmem [#allocation13], %s346
        %v348 = vld [vmem:[%s6] ss:$4 sm:$0x3]
        %s349 = scalar_lea.vmem %s6, 1
        %v350 = vld [vmem:[%s349] ss:$4 sm:$0x3]
        %s351 = scalar_lea.vmem %s6, 2
        %v352 = vld [vmem:[%s351] ss:$4 sm:$0x3]
        %s353 = scalar_lea.vmem %s6, 3
        %v354 = vld [vmem:[%s353] ss:$4 sm:$0x3]
        %s355 = sld [smem:[#allocation2]]
        %s356 = sld [smem:[#allocation8]]
        %v357 = vstv %s356
        %s358 = sld [smem:[#allocation8 + $0x1]]
        %v359 = vstv %s358
        %s360 = sld [smem:[#allocation8 + $0x2]]
        %v361 = vstv %s360
        %s362 = sld [smem:[#allocation8 + $0x3]]
        %v363 = vstv %s362
        %v364 = vld [vmem:[%s300] ss:$4 sm:$0x3]
        %v366 = vlaneseq
        %v367 = vshrl.u32 %v366, 7
        %v368 = vsub.s32 0, %v367
        %v369 = vrot.slane %v364, %v368
        %v370 = vlaneseq
        %v371 = vshrl.u32 %v370, 7
        %v372 = vsub.s32 1, %v371
        %v373 = vrot.slane %v364, %v372
        %376 = vrot.lane.b32.xlu0 %v369, 1
        %v377 = vpop.permute.xlu0 %376
        %378 = vrot.lane.b32.xlu0 %v373, 1
        %v379 = vpop.permute.xlu0 %378
        %v380 = vlaneseq
        %v381 = vand.u32 %v380, 127
        %vm382 = vcmp.lt.s32.totalorder %v381, 1
        %v383 = vsel %vm382, %v377, %v379
        %v384 = vsel %vm382, %v379, %v377
        %385 = vrot.lane.b32.xlu0 %v369, 127
        %v386 = vpop.permute.xlu0 %385
        %387 = vrot.lane.b32.xlu0 %v373, 127
        %v388 = vpop.permute.xlu0 %387
        %vm389 = vcmp.lt.s32.totalorder %v381, 127
        %v390 = vsel %vm389, %v386, %v388
        %v391 = vsel %vm389, %v388, %v386
        %v392 = vsub.f32 %v390, %v384
        %v393 = vsub.f32 %v391, %v383
        %v396 = vcombine.low %v392, %v393
        %v398 = vunpack.c.l.s4 1966171168
        %v399 = vunpack.c.0.s8 %v398
        %v400 = vlaneseq
        %v401 = vshrl.u32 %v400, 7
        %v402 = vsub.s32 %v399, %v401
        %v403 = vrot.slane %v396, %v402
        %v405 = vunpack.c.l.s4 1966171168
        %v406 = vunpack.c.0.s8 %v405
        %v407 = vlaneseq
        %v408 = vshrl.u32 %v407, 7
        %v409 = vsub.s32 %v406, %v408
        %v410 = vrot.slane %v403, %v409
        %v412 = vmul.f32 %v348, %v410
        %v414 = vlaneseq
        %v415 = vshrl.u32 %v414, 7
        %v416 = vsub.s32 0, %v415
        %v417 = vrot.slane %v412, %v416
        %v418 = vlaneseq
        %v419 = vshrl.u32 %v418, 7
        %v420 = vsub.s32 1, %v419
        %v421 = vrot.slane %v412, %v420
        %v424 = vadd.f32 %v384, %v417
        %v425 = vadd.f32 %v383, %v421
        %v426 = vsub.f32 %v384, %v390
        %v427 = vsub.f32 %v383, %v391
        %v430 = vcombine.low %v426, %v427
        %v432 = vunpack.c.l.s4 1966171168
        %v433 = vunpack.c.0.s8 %v432
        %v434 = vlaneseq
        %v435 = vshrl.u32 %v434, 7
        %v436 = vsub.s32 %v433, %v435
        %v437 = vrot.slane %v430, %v436
        %v439 = vunpack.c.l.s4 1966171168
        %v440 = vunpack.c.0.s8 %v439
        %v441 = vlaneseq
        %v442 = vshrl.u32 %v441, 7
        %v443 = vsub.s32 %v440, %v442
        %v444 = vrot.slane %v437, %v443
        %v446 = vmul.f32 %v350, %v444
        %v448 = vlaneseq
        %v449 = vshrl.u32 %v448, 7
        %v450 = vsub.s32 0, %v449
        %v451 = vrot.slane %v446, %v450
        %v452 = vlaneseq
        %v453 = vshrl.u32 %v452, 7
        %v454 = vsub.s32 1, %v453
        %v455 = vrot.slane %v446, %v454
        %v458 = vadd.f32 %v390, %v451
        %v459 = vadd.f32 %v391, %v455
        %460 = vrot.lane.b32.xlu0 %v424, 16
        %v461 = vpop.permute.xlu0 %460
        %462 = vrot.lane.b32.xlu0 %v425, 16
        %v463 = vpop.permute.xlu0 %462
        %vm464 = vcmp.lt.s32.totalorder %v381, 16
        %v465 = vsel %vm464, %v461, %v463
        %v466 = vsel %vm464, %v463, %v461
        %467 = vrot.lane.b32.xlu0 %v424, 112
        %v468 = vpop.permute.xlu0 %467
        %469 = vrot.lane.b32.xlu0 %v425, 112
        %v470 = vpop.permute.xlu0 %469
        %vm471 = vcmp.lt.s32.totalorder %v381, 112
        %v472 = vsel %vm471, %v468, %v470
        %v473 = vsel %vm471, %v470, %v468
        %v474 = vsub.f32 %v472, %v466
        %v475 = vsub.f32 %v473, %v465
        %v478 = vcombine.low %v474, %v475
        %v480 = vunpack.c.l.s4 1966171168
        %v481 = vunpack.c.0.s8 %v480
        %v482 = vlaneseq
        %v483 = vshrl.u32 %v482, 7
        %v484 = vsub.s32 %v481, %v483
        %v485 = vrot.slane %v478, %v484
        %v487 = vunpack.c.l.s4 1966171168
        %v488 = vunpack.c.0.s8 %v487
        %v489 = vlaneseq
        %v490 = vshrl.u32 %v489, 7
        %v491 = vsub.s32 %v488, %v490
        %v492 = vrot.slane %v485, %v491
        %v494 = vmul.f32 %v352, %v492
        %v496 = vlaneseq
        %v497 = vshrl.u32 %v496, 7
        %v498 = vsub.s32 0, %v497
        %v499 = vrot.slane %v494, %v498
        %v500 = vlaneseq
        %v501 = vshrl.u32 %v500, 7
        %v502 = vsub.s32 1, %v501
        %v503 = vrot.slane %v494, %v502
        %v506 = vadd.f32 %v466, %v499
        %v507 = vadd.f32 %v465, %v503
        %v508 = vsub.f32 %v466, %v472
        %v509 = vsub.f32 %v465, %v473
        %v512 = vcombine.low %v508, %v509
        %v514 = vunpack.c.l.s4 1966171168
        %v515 = vunpack.c.0.s8 %v514
        %v516 = vlaneseq
        %v517 = vshrl.u32 %v516, 7
        %v518 = vsub.s32 %v515, %v517
        %v519 = vrot.slane %v512, %v518
        %v521 = vunpack.c.l.s4 1966171168
        %v522 = vunpack.c.0.s8 %v521
        %v523 = vlaneseq
        %v524 = vshrl.u32 %v523, 7
        %v525 = vsub.s32 %v522, %v524
        %v526 = vrot.slane %v519, %v525
        %v528 = vmul.f32 %v354, %v526
        %v530 = vlaneseq
        %v531 = vshrl.u32 %v530, 7
        %v532 = vsub.s32 0, %v531
        %v533 = vrot.slane %v528, %v532
        %v534 = vlaneseq
        %v535 = vshrl.u32 %v534, 7
        %v536 = vsub.s32 1, %v535
        %v537 = vrot.slane %v528, %v536
        %v540 = vadd.f32 %v472, %v533
        %v541 = vadd.f32 %v473, %v537
        %542 = vrot.lane.b32.xlu0 %v369, 16
        %v543 = vpop.permute.xlu0 %542
        %544 = vrot.lane.b32.xlu0 %v373, 16
        %v545 = vpop.permute.xlu0 %544
        %v546 = vsel %vm464, %v543, %v545
        %v547 = vsel %vm464, %v545, %v543
        %548 = vrot.lane.b32.xlu0 %v369, 112
        %v549 = vpop.permute.xlu0 %548
        %550 = vrot.lane.b32.xlu0 %v373, 112
        %v551 = vpop.permute.xlu0 %550
        %v552 = vsel %vm471, %v549, %v551
        %v553 = vsel %vm471, %v551, %v549
        %v554 = vsub.f32 %v552, %v547
        %v555 = vsub.f32 %v553, %v546
        %v558 = vcombine.low %v554, %v555
        %v560 = vunpack.c.l.s4 1966171168
        %v561 = vunpack.c.0.s8 %v560
        %v562 = vlaneseq
        %v563 = vshrl.u32 %v562, 7
        %v564 = vsub.s32 %v561, %v563
        %v565 = vrot.slane %v558, %v564
        %v567 = vunpack.c.l.s4 1966171168
        %v568 = vunpack.c.0.s8 %v567
        %v569 = vlaneseq
        %v570 = vshrl.u32 %v569, 7
        %v571 = vsub.s32 %v568, %v570
        %v572 = vrot.slane %v565, %v571
        %v574 = vmul.f32 %v352, %v572
        %v576 = vlaneseq
        %v577 = vshrl.u32 %v576, 7
        %v578 = vsub.s32 0, %v577
        %v579 = vrot.slane %v574, %v578
        %v580 = vlaneseq
        %v581 = vshrl.u32 %v580, 7
        %v582 = vsub.s32 1, %v581
        %v583 = vrot.slane %v574, %v582
        %v586 = vadd.f32 %v547, %v579
        %v587 = vadd.f32 %v546, %v583
        %v588 = vsub.f32 %v547, %v552
        %v589 = vsub.f32 %v546, %v553
        %v592 = vcombine.low %v588, %v589
        %v594 = vunpack.c.l.s4 1966171168
        %v595 = vunpack.c.0.s8 %v594
        %v596 = vlaneseq
        %v597 = vshrl.u32 %v596, 7
        %v598 = vsub.s32 %v595, %v597
        %v599 = vrot.slane %v592, %v598
        %v601 = vunpack.c.l.s4 1966171168
        %v602 = vunpack.c.0.s8 %v601
        %v603 = vlaneseq
        %v604 = vshrl.u32 %v603, 7
        %v605 = vsub.s32 %v602, %v604
        %v606 = vrot.slane %v599, %v605
        %v608 = vmul.f32 %v354, %v606
        %v610 = vlaneseq
        %v611 = vshrl.u32 %v610, 7
        %v612 = vsub.s32 0, %v611
        %v613 = vrot.slane %v608, %v612
        %v614 = vlaneseq
        %v615 = vshrl.u32 %v614, 7
        %v616 = vsub.s32 1, %v615
        %v617 = vrot.slane %v608, %v616
        %v620 = vadd.f32 %v552, %v613
        %v621 = vadd.f32 %v553, %v617
        %622 = vrot.lane.b32.xlu0 %v458, 16
        %v623 = vpop.permute.xlu0 %622
        %624 = vrot.lane.b32.xlu0 %v459, 16
        %v625 = vpop.permute.xlu0 %624
        %v626 = vsel %vm464, %v623, %v625
        %v627 = vsel %vm464, %v625, %v623
        %628 = vrot.lane.b32.xlu0 %v458, 112
        %v629 = vpop.permute.xlu0 %628
        %630 = vrot.lane.b32.xlu0 %v459, 112
        %v631 = vpop.permute.xlu0 %630
        %v632 = vsel %vm471, %v629, %v631
        %v633 = vsel %vm471, %v631, %v629
        %v634 = vsub.f32 %v632, %v627
        %v635 = vsub.f32 %v633, %v626
        %v638 = vcombine.low %v634, %v635
        %v640 = vunpack.c.l.s4 1966171168
        %v641 = vunpack.c.0.s8 %v640
        %v642 = vlaneseq
        %v643 = vshrl.u32 %v642, 7
        %v644 = vsub.s32 %v641, %v643
        %v645 = vrot.slane %v638, %v644
        %v647 = vunpack.c.l.s4 1966171168
        %v648 = vunpack.c.0.s8 %v647
        %v649 = vlaneseq
        %v650 = vshrl.u32 %v649, 7
        %v651 = vsub.s32 %v648, %v650
        %v652 = vrot.slane %v645, %v651
        %v654 = vmul.f32 %v352, %v652
        %v656 = vlaneseq
        %v657 = vshrl.u32 %v656, 7
        %v658 = vsub.s32 0, %v657
        %v659 = vrot.slane %v654, %v658
        %v660 = vlaneseq
        %v661 = vshrl.u32 %v660, 7
        %v662 = vsub.s32 1, %v661
        %v663 = vrot.slane %v654, %v662
        %v666 = vadd.f32 %v627, %v659
        %v667 = vadd.f32 %v626, %v663
        %v668 = vsub.f32 %v627, %v632
        %v669 = vsub.f32 %v626, %v633
        %v672 = vcombine.low %v668, %v669
        %v674 = vunpack.c.l.s4 1966171168
        %v675 = vunpack.c.0.s8 %v674
        %v676 = vlaneseq
        %v677 = vshrl.u32 %v676, 7
        %v678 = vsub.s32 %v675, %v677
        %v679 = vrot.slane %v672, %v678
        %v681 = vunpack.c.l.s4 1966171168
        %v682 = vunpack.c.0.s8 %v681
        %v683 = vlaneseq
        %v684 = vshrl.u32 %v683, 7
        %v685 = vsub.s32 %v682, %v684
        %v686 = vrot.slane %v679, %v685
        %v688 = vmul.f32 %v354, %v686
        %v690 = vlaneseq
        %v691 = vshrl.u32 %v690, 7
        %v692 = vsub.s32 0, %v691
        %v693 = vrot.slane %v688, %v692
        %v694 = vlaneseq
        %v695 = vshrl.u32 %v694, 7
        %v696 = vsub.s32 1, %v695
        %v697 = vrot.slane %v688, %v696
        %v700 = vadd.f32 %v632, %v693
        %v701 = vadd.f32 %v633, %v697
        %s702 = sld [smem:[#allocation7]]
        %v703 = vstv %s702
        %v704 = vmul.f32 %v506, %v703
        %v705 = vmul.f32 %v507, %v703
        %v706 = vadd.f32 %v357, %v704
        %v707 = vadd.f32 %v357, %v705
        %s708 = sld [smem:[#allocation7 + $0x24]]
        %v709 = vstv %s708
        %v710 = vmul.f32 %v506, %v709
        %v711 = vmul.f32 %v507, %v709
        %v712 = vadd.f32 %v359, %v710
        %v713 = vadd.f32 %v359, %v711
        %s714 = sld [smem:[#allocation7 + $0x48]]
        %v715 = vstv %s714
        %v716 = vmul.f32 %v506, %v715
        %v717 = vmul.f32 %v507, %v715
        %v718 = vadd.f32 %v361, %v716
        %v719 = vadd.f32 %v361, %v717
        %s720 = sld [smem:[#allocation7 + $0x6c]]
        %v721 = vstv %s720
        %v722 = vmul.f32 %v506, %v721
        %v723 = vmul.f32 %v507, %v721
        %v724 = vadd.f32 %v363, %v722
        %v725 = vadd.f32 %v363, %v723
        %s726 = sld [smem:[#allocation7 + $0x1]]
        %v727 = vstv %s726
        %v728 = vmul.f32 %v586, %v727
        %v729 = vmul.f32 %v587, %v727
        %v730 = vadd.f32 %v706, %v728
        %v731 = vadd.f32 %v707, %v729
        %s732 = sld [smem:[#allocation7 + $0x25]]
        %v733 = vstv %s732
        %v734 = vmul.f32 %v586, %v733
        %v735 = vmul.f32 %v587, %v733
        %v736 = vadd.f32 %v712, %v734
        %v737 = vadd.f32 %v713, %v735
        %s738 = sld [smem:[#allocation7 + $0x49]]
        %v739 = vstv %s738
        %v740 = vmul.f32 %v586, %v739
        %v741 = vmul.f32 %v587, %v739
        %v742 = vadd.f32 %v718, %v740
        %v743 = vadd.f32 %v719, %v741
        %s744 = sld [smem:[#allocation7 + $0x6d]]
        %v745 = vstv %s744
        %v746 = vmul.f32 %v586, %v745
        %v747 = vmul.f32 %v587, %v745
        %v748 = vadd.f32 %v724, %v746
        %v749 = vadd.f32 %v725, %v747
        %s750 = sld [smem:[#allocation7 + $0x2]]
        %v751 = vstv %s750
        %v752 = vmul.f32 %v666, %v751
        %v753 = vmul.f32 %v667, %v751
        %v754 = vadd.f32 %v730, %v752
        %v755 = vadd.f32 %v731, %v753
        %s756 = sld [smem:[#allocation7 + $0x26]]
        %v757 = vstv %s756
        %v758 = vmul.f32 %v666, %v757
        %v759 = vmul.f32 %v667, %v757
        %v760 = vadd.f32 %v736, %v758
        %v761 = vadd.f32 %v737, %v759
        %s762 = sld [smem:[#allocation7 + $0x4a]]
        %v763 = vstv %s762
        %v764 = vmul.f32 %v666, %v763
        %v765 = vmul.f32 %v667, %v763
        %v766 = vadd.f32 %v742, %v764
        %v767 = vadd.f32 %v743, %v765
        %s768 = sld [smem:[#allocation7 + $0x6e]]
        %v769 = vstv %s768
        %v770 = vmul.f32 %v666, %v769
        %v771 = vmul.f32 %v667, %v769
        %v772 = vadd.f32 %v748, %v770
        %v773 = vadd.f32 %v749, %v771
        %s774 = sld [smem:[#allocation7 + $0x3]]
        %v775 = vstv %s774
        %v776 = vmul.f32 %v424, %v775
        %v777 = vmul.f32 %v425, %v775
        %v778 = vadd.f32 %v754, %v776
        %v779 = vadd.f32 %v755, %v777
        %s780 = sld [smem:[#allocation7 + $0x27]]
        %v781 = vstv %s780
        %v782 = vmul.f32 %v424, %v781
        %v783 = vmul.f32 %v425, %v781
        %v784 = vadd.f32 %v760, %v782
        %v785 = vadd.f32 %v761, %v783
        %s786 = sld [smem:[#allocation7 + $0x4b]]
        %v787 = vstv %s786
        %v788 = vmul.f32 %v424, %v787
        %v789 = vmul.f32 %v425, %v787
        %v790 = vadd.f32 %v766, %v788
        %v791 = vadd.f32 %v767, %v789
        %s792 = sld [smem:[#allocation7 + $0x6f]]
        %v793 = vstv %s792
        %v794 = vmul.f32 %v424, %v793
        %v795 = vmul.f32 %v425, %v793
        %v796 = vadd.f32 %v772, %v794
        %v797 = vadd.f32 %v773, %v795
        %s798 = sld [smem:[#allocation7 + $0x4]]
        %v799 = vstv %s798
        %v800 = vmul.f32 %v364, %v799
        %v802 = vlaneseq
        %v803 = vshrl.u32 %v802, 7
        %v804 = vsub.s32 0, %v803
        %v805 = vrot.slane %v800, %v804
        %v806 = vlaneseq
        %v807 = vshrl.u32 %v806, 7
        %v808 = vsub.s32 1, %v807
        %v809 = vrot.slane %v800, %v808
        %v812 = vadd.f32 %v778, %v805
        %v813 = vadd.f32 %v779, %v809
        %s814 = sld [smem:[#allocation7 + $0x28]]
        %v815 = vstv %s814
        %v816 = vmul.f32 %v364, %v815
        %v818 = vlaneseq
        %v819 = vshrl.u32 %v818, 7
        %v820 = vsub.s32 0, %v819
        %v821 = vrot.slane %v816, %v820
        %v822 = vlaneseq
        %v823 = vshrl.u32 %v822, 7
        %v824 = vsub.s32 1, %v823
        %v825 = vrot.slane %v816, %v824
        %v828 = vadd.f32 %v784, %v821
        %v829 = vadd.f32 %v785, %v825
        %s830 = sld [smem:[#allocation7 + $0x4c]]
        %v831 = vstv %s830
        %v832 = vmul.f32 %v364, %v831
        %v834 = vlaneseq
        %v835 = vshrl.u32 %v834, 7
        %v836 = vsub.s32 0, %v835
        %v837 = vrot.slane %v832, %v836
        %v838 = vlaneseq
        %v839 = vshrl.u32 %v838, 7
        %v840 = vsub.s32 1, %v839
        %v841 = vrot.slane %v832, %v840
        %v844 = vadd.f32 %v790, %v837
        %v845 = vadd.f32 %v791, %v841
        %s846 = sld [smem:[#allocation7 + $0x70]]
        %v847 = vstv %s846
        %v848 = vmul.f32 %v364, %v847
        %v850 = vlaneseq
        %v851 = vshrl.u32 %v850, 7
        %v852 = vsub.s32 0, %v851
        %v853 = vrot.slane %v848, %v852
        %v854 = vlaneseq
        %v855 = vshrl.u32 %v854, 7
        %v856 = vsub.s32 1, %v855
        %v857 = vrot.slane %v848, %v856
        %v860 = vadd.f32 %v796, %v853
        %v861 = vadd.f32 %v797, %v857
        %s862 = sld [smem:[#allocation7 + $0x5]]
        %v863 = vstv %s862
        %v864 = vmul.f32 %v458, %v863
        %v865 = vmul.f32 %v459, %v863
        %v866 = vadd.f32 %v812, %v864
        %v867 = vadd.f32 %v813, %v865
        %s868 = sld [smem:[#allocation7 + $0x29]]
        %v869 = vstv %s868
        %v870 = vmul.f32 %v458, %v869
        %v871 = vmul.f32 %v459, %v869
        %v872 = vadd.f32 %v828, %v870
        %v873 = vadd.f32 %v829, %v871
        %s874 = sld [smem:[#allocation7 + $0x4d]]
        %v875 = vstv %s874
        %v876 = vmul.f32 %v458, %v875
        %v877 = vmul.f32 %v459, %v875
        %v878 = vadd.f32 %v844, %v876
        %v879 = vadd.f32 %v845, %v877
        %s880 = sld [smem:[#allocation7 + $0x71]]
        %v881 = vstv %s880
        %v882 = vmul.f32 %v458, %v881
        %v883 = vmul.f32 %v459, %v881
        %v884 = vadd.f32 %v860, %v882
        %v885 = vadd.f32 %v861, %v883
        %s886 = sld [smem:[#allocation7 + $0x6]]
        %v887 = vstv %s886
        %v888 = vmul.f32 %v540, %v887
        %v889 = vmul.f32 %v541, %v887
        %v890 = vadd.f32 %v866, %v888
        %v891 = vadd.f32 %v867, %v889
        %s892 = sld [smem:[#allocation7 + $0x2a]]
        %v893 = vstv %s892
        %v894 = vmul.f32 %v540, %v893
        %v895 = vmul.f32 %v541, %v893
        %v896 = vadd.f32 %v872, %v894
        %v897 = vadd.f32 %v873, %v895
        %s898 = sld [smem:[#allocation7 + $0x4e]]
        %v899 = vstv %s898
        %v900 = vmul.f32 %v540, %v899
        %v901 = vmul.f32 %v541, %v899
        %v902 = vadd.f32 %v878, %v900
        %v903 = vadd.f32 %v879, %v901
        %s904 = sld [smem:[#allocation7 + $0x72]]
        %v905 = vstv %s904
        %v906 = vmul.f32 %v540, %v905
        %v907 = vmul.f32 %v541, %v905
        %v908 = vadd.f32 %v884, %v906
        %v909 = vadd.f32 %v885, %v907
        %s910 = sld [smem:[#allocation7 + $0x7]]
        %v911 = vstv %s910
        %v912 = vmul.f32 %v620, %v911
        %v913 = vmul.f32 %v621, %v911
        %v914 = vadd.f32 %v890, %v912
        %v915 = vadd.f32 %v891, %v913
        %s916 = sld [smem:[#allocation7 + $0x2b]]
        %v917 = vstv %s916
        %v918 = vmul.f32 %v620, %v917
        %v919 = vmul.f32 %v621, %v917
        %v920 = vadd.f32 %v896, %v918
        %v921 = vadd.f32 %v897, %v919
        %s922 = sld [smem:[#allocation7 + $0x4f]]
        %v923 = vstv %s922
        %v924 = vmul.f32 %v620, %v923
        %v925 = vmul.f32 %v621, %v923
        %v926 = vadd.f32 %v902, %v924
        %v927 = vadd.f32 %v903, %v925
        %s928 = sld [smem:[#allocation7 + $0x73]]
        %v929 = vstv %s928
        %v930 = vmul.f32 %v620, %v929
        %v931 = vmul.f32 %v621, %v929
        %v932 = vadd.f32 %v908, %v930
        %v933 = vadd.f32 %v909, %v931
        %s934 = sld [smem:[#allocation7 + $0x8]]
        %v935 = vstv %s934
        %v936 = vmul.f32 %v700, %v935
        %v937 = vmul.f32 %v701, %v935
        %v938 = vadd.f32 %v914, %v936
        %v939 = vadd.f32 %v915, %v937
        %s940 = sld [smem:[#allocation7 + $0x2c]]
        %v941 = vstv %s940
        %v942 = vmul.f32 %v700, %v941
        %v943 = vmul.f32 %v701, %v941
        %v944 = vadd.f32 %v920, %v942
        %v945 = vadd.f32 %v921, %v943
        %s946 = sld [smem:[#allocation7 + $0x50]]
        %v947 = vstv %s946
        %v948 = vmul.f32 %v700, %v947
        %v949 = vmul.f32 %v701, %v947
        %v950 = vadd.f32 %v926, %v948
        %v951 = vadd.f32 %v927, %v949
        %s952 = sld [smem:[#allocation7 + $0x74]]
        %v953 = vstv %s952
        %v954 = vmul.f32 %v700, %v953
        %v955 = vmul.f32 %v701, %v953
        %v956 = vadd.f32 %v932, %v954
        %v957 = vadd.f32 %v933, %v955
        %s958 = scalar_lea.vmem %s300, 1 [#allocation3]
        %v959 = vld [vmem:[%s958] ss:$4 sm:$0x3]
        %v961 = vlaneseq
        %v962 = vshrl.u32 %v961, 7
        %v963 = vsub.s32 0, %v962
        %v964 = vrot.slane %v959, %v963
        %v965 = vlaneseq
        %v966 = vshrl.u32 %v965, 7
        %v967 = vsub.s32 1, %v966
        %v968 = vrot.slane %v959, %v967
        %971 = vrot.lane.b32.xlu0 %v964, 1
        %v972 = vpop.permute.xlu0 %971
        %973 = vrot.lane.b32.xlu0 %v968, 1
        %v974 = vpop.permute.xlu0 %973
        %v975 = vsel %vm382, %v972, %v974
        %v976 = vsel %vm382, %v974, %v972
        %977 = vrot.lane.b32.xlu0 %v964, 127
        %v978 = vpop.permute.xlu0 %977
        %979 = vrot.lane.b32.xlu0 %v968, 127
        %v980 = vpop.permute.xlu0 %979
        %v981 = vsel %vm389, %v978, %v980
        %v982 = vsel %vm389, %v980, %v978
        %v983 = vsub.f32 %v981, %v976
        %v984 = vsub.f32 %v982, %v975
        %v987 = vcombine.low %v983, %v984
        %v989 = vunpack.c.l.s4 1966171168
        %v990 = vunpack.c.0.s8 %v989
        %v991 = vlaneseq
        %v992 = vshrl.u32 %v991, 7
        %v993 = vsub.s32 %v990, %v992
        %v994 = vrot.slane %v987, %v993
        %v996 = vunpack.c.l.s4 1966171168
        %v997 = vunpack.c.0.s8 %v996
        %v998 = vlaneseq
        %v999 = vshrl.u32 %v998, 7
        %v1000 = vsub.s32 %v997, %v999
        %v1001 = vrot.slane %v994, %v1000
        %v1003 = vmul.f32 %v348, %v1001
        %v1005 = vlaneseq
        %v1006 = vshrl.u32 %v1005, 7
        %v1007 = vsub.s32 0, %v1006
        %v1008 = vrot.slane %v1003, %v1007
        %v1009 = vlaneseq
        %v1010 = vshrl.u32 %v1009, 7
        %v1011 = vsub.s32 1, %v1010
        %v1012 = vrot.slane %v1003, %v1011
        %v1015 = vadd.f32 %v976, %v1008
        %v1016 = vadd.f32 %v975, %v1012
        %v1017 = vsub.f32 %v976, %v981
        %v1018 = vsub.f32 %v975, %v982
        %v1021 = vcombine.low %v1017, %v1018
        %v1023 = vunpack.c.l.s4 1966171168
        %v1024 = vunpack.c.0.s8 %v1023
        %v1025 = vlaneseq
        %v1026 = vshrl.u32 %v1025, 7
        %v1027 = vsub.s32 %v1024, %v1026
        %v1028 = vrot.slane %v1021, %v1027
        %v1030 = vunpack.c.l.s4 1966171168
        %v1031 = vunpack.c.0.s8 %v1030
        %v1032 = vlaneseq
        %v1033 = vshrl.u32 %v1032, 7
        %v1034 = vsub.s32 %v1031, %v1033
        %v1035 = vrot.slane %v1028, %v1034
        %v1037 = vmul.f32 %v350, %v1035
        %v1039 = vlaneseq
        %v1040 = vshrl.u32 %v1039, 7
        %v1041 = vsub.s32 0, %v1040
        %v1042 = vrot.slane %v1037, %v1041
        %v1043 = vlaneseq
        %v1044 = vshrl.u32 %v1043, 7
        %v1045 = vsub.s32 1, %v1044
        %v1046 = vrot.slane %v1037, %v1045
        %v1049 = vadd.f32 %v981, %v1042
        %v1050 = vadd.f32 %v982, %v1046
        %1051 = vrot.lane.b32.xlu0 %v1015, 16
        %v1052 = vpop.permute.xlu0 %1051
        %1053 = vrot.lane.b32.xlu0 %v1016, 16
        %v1054 = vpop.permute.xlu0 %1053
        %v1055 = vsel %vm464, %v1052, %v1054
        %v1056 = vsel %vm464, %v1054, %v1052
        %1057 = vrot.lane.b32.xlu0 %v1015, 112
        %v1058 = vpop.permute.xlu0 %1057
        %1059 = vrot.lane.b32.xlu0 %v1016, 112
        %v1060 = vpop.permute.xlu0 %1059
        %v1061 = vsel %vm471, %v1058, %v1060
        %v1062 = vsel %vm471, %v1060, %v1058
        %v1063 = vsub.f32 %v1061, %v1056
        %v1064 = vsub.f32 %v1062, %v1055
        %v1067 = vcombine.low %v1063, %v1064
        %v1069 = vunpack.c.l.s4 1966171168
        %v1070 = vunpack.c.0.s8 %v1069
        %v1071 = vlaneseq
        %v1072 = vshrl.u32 %v1071, 7
        %v1073 = vsub.s32 %v1070, %v1072
        %v1074 = vrot.slane %v1067, %v1073
        %v1076 = vunpack.c.l.s4 1966171168
        %v1077 = vunpack.c.0.s8 %v1076
        %v1078 = vlaneseq
        %v1079 = vshrl.u32 %v1078, 7
        %v1080 = vsub.s32 %v1077, %v1079
        %v1081 = vrot.slane %v1074, %v1080
        %v1083 = vmul.f32 %v352, %v1081
        %v1085 = vlaneseq
        %v1086 = vshrl.u32 %v1085, 7
        %v1087 = vsub.s32 0, %v1086
        %v1088 = vrot.slane %v1083, %v1087
        %v1089 = vlaneseq
        %v1090 = vshrl.u32 %v1089, 7
        %v1091 = vsub.s32 1, %v1090
        %v1092 = vrot.slane %v1083, %v1091
        %v1095 = vadd.f32 %v1056, %v1088
        %v1096 = vadd.f32 %v1055, %v1092
        %v1097 = vsub.f32 %v1056, %v1061
        %v1098 = vsub.f32 %v1055, %v1062
        %v1101 = vcombine.low %v1097, %v1098
        %v1103 = vunpack.c.l.s4 1966171168
        %v1104 = vunpack.c.0.s8 %v1103
        %v1105 = vlaneseq
        %v1106 = vshrl.u32 %v1105, 7
        %v1107 = vsub.s32 %v1104, %v1106
        %v1108 = vrot.slane %v1101, %v1107
        %v1110 = vunpack.c.l.s4 1966171168
        %v1111 = vunpack.c.0.s8 %v1110
        %v1112 = vlaneseq
        %v1113 = vshrl.u32 %v1112, 7
        %v1114 = vsub.s32 %v1111, %v1113
        %v1115 = vrot.slane %v1108, %v1114
        %v1117 = vmul.f32 %v354, %v1115
        %v1119 = vlaneseq
        %v1120 = vshrl.u32 %v1119, 7
        %v1121 = vsub.s32 0, %v1120
        %v1122 = vrot.slane %v1117, %v1121
        %v1123 = vlaneseq
        %v1124 = vshrl.u32 %v1123, 7
        %v1125 = vsub.s32 1, %v1124
        %v1126 = vrot.slane %v1117, %v1125
        %v1129 = vadd.f32 %v1061, %v1122
        %v1130 = vadd.f32 %v1062, %v1126
        %1131 = vrot.lane.b32.xlu0 %v964, 16
        %v1132 = vpop.permute.xlu0 %1131
        %1133 = vrot.lane.b32.xlu0 %v968, 16
        %v1134 = vpop.permute.xlu0 %1133
        %v1135 = vsel %vm464, %v1132, %v1134
        %v1136 = vsel %vm464, %v1134, %v1132
        %1137 = vrot.lane.b32.xlu0 %v964, 112
        %v1138 = vpop.permute.xlu0 %1137
        %1139 = vrot.lane.b32.xlu0 %v968, 112
        %v1140 = vpop.permute.xlu0 %1139
        %v1141 = vsel %vm471, %v1138, %v1140
        %v1142 = vsel %vm471, %v1140, %v1138
        %v1143 = vsub.f32 %v1141, %v1136
        %v1144 = vsub.f32 %v1142, %v1135
        %v1147 = vcombine.low %v1143, %v1144
        %v1149 = vunpack.c.l.s4 1966171168
        %v1150 = vunpack.c.0.s8 %v1149
        %v1151 = vlaneseq
        %v1152 = vshrl.u32 %v1151, 7
        %v1153 = vsub.s32 %v1150, %v1152
        %v1154 = vrot.slane %v1147, %v1153
        %v1156 = vunpack.c.l.s4 1966171168
        %v1157 = vunpack.c.0.s8 %v1156
        %v1158 = vlaneseq
        %v1159 = vshrl.u32 %v1158, 7
        %v1160 = vsub.s32 %v1157, %v1159
        %v1161 = vrot.slane %v1154, %v1160
        %v1163 = vmul.f32 %v352, %v1161
        %v1165 = vlaneseq
        %v1166 = vshrl.u32 %v1165, 7
        %v1167 = vsub.s32 0, %v1166
        %v1168 = vrot.slane %v1163, %v1167
        %v1169 = vlaneseq
        %v1170 = vshrl.u32 %v1169, 7
        %v1171 = vsub.s32 1, %v1170
        %v1172 = vrot.slane %v1163, %v1171
        %v1175 = vadd.f32 %v1136, %v1168
        %v1176 = vadd.f32 %v1135, %v1172
        %v1177 = vsub.f32 %v1136, %v1141
        %v1178 = vsub.f32 %v1135, %v1142
        %v1181 = vcombine.low %v1177, %v1178
        %v1183 = vunpack.c.l.s4 1966171168
        %v1184 = vunpack.c.0.s8 %v1183
        %v1185 = vlaneseq
        %v1186 = vshrl.u32 %v1185, 7
        %v1187 = vsub.s32 %v1184, %v1186
        %v1188 = vrot.slane %v1181, %v1187
        %v1190 = vunpack.c.l.s4 1966171168
        %v1191 = vunpack.c.0.s8 %v1190
        %v1192 = vlaneseq
        %v1193 = vshrl.u32 %v1192, 7
        %v1194 = vsub.s32 %v1191, %v1193
        %v1195 = vrot.slane %v1188, %v1194
        %v1197 = vmul.f32 %v354, %v1195
        %v1199 = vlaneseq
        %v1200 = vshrl.u32 %v1199, 7
        %v1201 = vsub.s32 0, %v1200
        %v1202 = vrot.slane %v1197, %v1201
        %v1203 = vlaneseq
        %v1204 = vshrl.u32 %v1203, 7
        %v1205 = vsub.s32 1, %v1204
        %v1206 = vrot.slane %v1197, %v1205
        %v1209 = vadd.f32 %v1141, %v1202
        %v1210 = vadd.f32 %v1142, %v1206
        %1211 = vrot.lane.b32.xlu0 %v1049, 16
        %v1212 = vpop.permute.xlu0 %1211
        %1213 = vrot.lane.b32.xlu0 %v1050, 16
        %v1214 = vpop.permute.xlu0 %1213
        %v1215 = vsel %vm464, %v1212, %v1214
        %v1216 = vsel %vm464, %v1214, %v1212
        %1217 = vrot.lane.b32.xlu0 %v1049, 112
        %v1218 = vpop.permute.xlu0 %1217
        %1219 = vrot.lane.b32.xlu0 %v1050, 112
        %v1220 = vpop.permute.xlu0 %1219
        %v1221 = vsel %vm471, %v1218, %v1220
        %v1222 = vsel %vm471, %v1220, %v1218
        %v1223 = vsub.f32 %v1221, %v1216
        %v1224 = vsub.f32 %v1222, %v1215
        %v1227 = vcombine.low %v1223, %v1224
        %v1229 = vunpack.c.l.s4 1966171168
        %v1230 = vunpack.c.0.s8 %v1229
        %v1231 = vlaneseq
        %v1232 = vshrl.u32 %v1231, 7
        %v1233 = vsub.s32 %v1230, %v1232
        %v1234 = vrot.slane %v1227, %v1233
        %v1236 = vunpack.c.l.s4 1966171168
        %v1237 = vunpack.c.0.s8 %v1236
        %v1238 = vlaneseq
        %v1239 = vshrl.u32 %v1238, 7
        %v1240 = vsub.s32 %v1237, %v1239
        %v1241 = vrot.slane %v1234, %v1240
        %v1243 = vmul.f32 %v352, %v1241
        %v1245 = vlaneseq
        %v1246 = vshrl.u32 %v1245, 7
        %v1247 = vsub.s32 0, %v1246
        %v1248 = vrot.slane %v1243, %v1247
        %v1249 = vlaneseq
        %v1250 = vshrl.u32 %v1249, 7
        %v1251 = vsub.s32 1, %v1250
        %v1252 = vrot.slane %v1243, %v1251
        %v1255 = vadd.f32 %v1216, %v1248
        %v1256 = vadd.f32 %v1215, %v1252
        %v1257 = vsub.f32 %v1216, %v1221
        %v1258 = vsub.f32 %v1215, %v1222
        %v1261 = vcombine.low %v1257, %v1258
        %v1263 = vunpack.c.l.s4 1966171168
        %v1264 = vunpack.c.0.s8 %v1263
        %v1265 = vlaneseq
        %v1266 = vshrl.u32 %v1265, 7
        %v1267 = vsub.s32 %v1264, %v1266
        %v1268 = vrot.slane %v1261, %v1267
        %v1270 = vunpack.c.l.s4 1966171168
        %v1271 = vunpack.c.0.s8 %v1270
        %v1272 = vlaneseq
        %v1273 = vshrl.u32 %v1272, 7
        %v1274 = vsub.s32 %v1271, %v1273
        %v1275 = vrot.slane %v1268, %v1274
        %v1277 = vmul.f32 %v354, %v1275
        %v1279 = vlaneseq
        %v1280 = vshrl.u32 %v1279, 7
        %v1281 = vsub.s32 0, %v1280
        %v1282 = vrot.slane %v1277, %v1281
        %v1283 = vlaneseq
        %v1284 = vshrl.u32 %v1283, 7
        %v1285 = vsub.s32 1, %v1284
        %v1286 = vrot.slane %v1277, %v1285
        %v1289 = vadd.f32 %v1221, %v1282
        %v1290 = vadd.f32 %v1222, %v1286
        %s1291 = sld [smem:[#allocation7 + $0x9]]
        %v1292 = vstv %s1291
        %v1293 = vmul.f32 %v1095, %v1292
        %v1294 = vmul.f32 %v1096, %v1292
        %v1295 = vadd.f32 %v938, %v1293
        %v1296 = vadd.f32 %v939, %v1294
        %s1297 = sld [smem:[#allocation7 + $0x2d]]
        %v1298 = vstv %s1297
        %v1299 = vmul.f32 %v1095, %v1298
        %v1300 = vmul.f32 %v1096, %v1298
        %v1301 = vadd.f32 %v944, %v1299
        %v1302 = vadd.f32 %v945, %v1300
        %s1303 = sld [smem:[#allocation7 + $0x51]]
        %v1304 = vstv %s1303
        %v1305 = vmul.f32 %v1095, %v1304
        %v1306 = vmul.f32 %v1096, %v1304
        %v1307 = vadd.f32 %v950, %v1305
        %v1308 = vadd.f32 %v951, %v1306
        %s1309 = sld [smem:[#allocation7 + $0x75]]
        %v1310 = vstv %s1309
        %v1311 = vmul.f32 %v1095, %v1310
        %v1312 = vmul.f32 %v1096, %v1310
        %v1313 = vadd.f32 %v956, %v1311
        %v1314 = vadd.f32 %v957, %v1312
        %s1315 = sld [smem:[#allocation7 + $0xa]]
        %v1316 = vstv %s1315
        %v1317 = vmul.f32 %v1175, %v1316
        %v1318 = vmul.f32 %v1176, %v1316
        %v1319 = vadd.f32 %v1295, %v1317
        %v1320 = vadd.f32 %v1296, %v1318
        %s1321 = sld [smem:[#allocation7 + $0x2e]]
        %v1322 = vstv %s1321
        %v1323 = vmul.f32 %v1175, %v1322
        %v1324 = vmul.f32 %v1176, %v1322
        %v1325 = vadd.f32 %v1301, %v1323
        %v1326 = vadd.f32 %v1302, %v1324
        %s1327 = sld [smem:[#allocation7 + $0x52]]
        %v1328 = vstv %s1327
        %v1329 = vmul.f32 %v1175, %v1328
        %v1330 = vmul.f32 %v1176, %v1328
        %v1331 = vadd.f32 %v1307, %v1329
        %v1332 = vadd.f32 %v1308, %v1330
        %s1333 = sld [smem:[#allocation7 + $0x76]]
        %v1334 = vstv %s1333
        %v1335 = vmul.f32 %v1175, %v1334
        %v1336 = vmul.f32 %v1176, %v1334
        %v1337 = vadd.f32 %v1313, %v1335
        %v1338 = vadd.f32 %v1314, %v1336
        %s1339 = sld [smem:[#allocation7 + $0xb]]
        %v1340 = vstv %s1339
        %v1341 = vmul.f32 %v1255, %v1340
        %v1342 = vmul.f32 %v1256, %v1340
        %v1343 = vadd.f32 %v1319, %v1341
        %v1344 = vadd.f32 %v1320, %v1342
        %s1345 = sld [smem:[#allocation7 + $0x2f]]
        %v1346 = vstv %s1345
        %v1347 = vmul.f32 %v1255, %v1346
        %v1348 = vmul.f32 %v1256, %v1346
        %v1349 = vadd.f32 %v1325, %v1347
        %v1350 = vadd.f32 %v1326, %v1348
        %s1351 = sld [smem:[#allocation7 + $0x53]]
        %v1352 = vstv %s1351
        %v1353 = vmul.f32 %v1255, %v1352
        %v1354 = vmul.f32 %v1256, %v1352
        %v1355 = vadd.f32 %v1331, %v1353
        %v1356 = vadd.f32 %v1332, %v1354
        %s1357 = sld [smem:[#allocation7 + $0x77]]
        %v1358 = vstv %s1357
        %v1359 = vmul.f32 %v1255, %v1358
        %v1360 = vmul.f32 %v1256, %v1358
        %v1361 = vadd.f32 %v1337, %v1359
        %v1362 = vadd.f32 %v1338, %v1360
        %s1363 = sld [smem:[#allocation7 + $0xc]]
        %v1364 = vstv %s1363
        %v1365 = vmul.f32 %v1015, %v1364
        %v1366 = vmul.f32 %v1016, %v1364
        %v1367 = vadd.f32 %v1343, %v1365
        %v1368 = vadd.f32 %v1344, %v1366
        %s1369 = sld [smem:[#allocation7 + $0x30]]
        %v1370 = vstv %s1369
        %v1371 = vmul.f32 %v1015, %v1370
        %v1372 = vmul.f32 %v1016, %v1370
        %v1373 = vadd.f32 %v1349, %v1371
        %v1374 = vadd.f32 %v1350, %v1372
        %s1375 = sld [smem:[#allocation7 + $0x54]]
        %v1376 = vstv %s1375
        %v1377 = vmul.f32 %v1015, %v1376
        %v1378 = vmul.f32 %v1016, %v1376
        %v1379 = vadd.f32 %v1355, %v1377
        %v1380 = vadd.f32 %v1356, %v1378
        %s1381 = sld [smem:[#allocation7 + $0x78]]
        %v1382 = vstv %s1381
        %v1383 = vmul.f32 %v1015, %v1382
        %v1384 = vmul.f32 %v1016, %v1382
        %v1385 = vadd.f32 %v1361, %v1383
        %v1386 = vadd.f32 %v1362, %v1384
        %s1387 = sld [smem:[#allocation7 + $0xd]]
        %v1388 = vstv %s1387
        %v1389 = vmul.f32 %v959, %v1388
        %v1391 = vlaneseq
        %v1392 = vshrl.u32 %v1391, 7
        %v1393 = vsub.s32 0, %v1392
        %v1394 = vrot.slane %v1389, %v1393
        %v1395 = vlaneseq
        %v1396 = vshrl.u32 %v1395, 7
        %v1397 = vsub.s32 1, %v1396
        %v1398 = vrot.slane %v1389, %v1397
        %v1401 = vadd.f32 %v1367, %v1394
        %v1402 = vadd.f32 %v1368, %v1398
        %s1403 = sld [smem:[#allocation7 + $0x31]]
        %v1404 = vstv %s1403
        %v1405 = vmul.f32 %v959, %v1404
        %v1407 = vlaneseq
        %v1408 = vshrl.u32 %v1407, 7
        %v1409 = vsub.s32 0, %v1408
        %v1410 = vrot.slane %v1405, %v1409
        %v1411 = vlaneseq
        %v1412 = vshrl.u32 %v1411, 7
        %v1413 = vsub.s32 1, %v1412
        %v1414 = vrot.slane %v1405, %v1413
        %v1417 = vadd.f32 %v1373, %v1410
        %v1418 = vadd.f32 %v1374, %v1414
        %s1419 = sld [smem:[#allocation7 + $0x55]]
        %v1420 = vstv %s1419
        %v1421 = vmul.f32 %v959, %v1420
        %v1423 = vlaneseq
        %v1424 = vshrl.u32 %v1423, 7
        %v1425 = vsub.s32 0, %v1424
        %v1426 = vrot.slane %v1421, %v1425
        %v1427 = vlaneseq
        %v1428 = vshrl.u32 %v1427, 7
        %v1429 = vsub.s32 1, %v1428
        %v1430 = vrot.slane %v1421, %v1429
        %v1433 = vadd.f32 %v1379, %v1426
        %v1434 = vadd.f32 %v1380, %v1430
        %s1435 = sld [smem:[#allocation7 + $0x79]]
        %v1436 = vstv %s1435
        %v1437 = vmul.f32 %v959, %v1436
        %v1439 = vlaneseq
        %v1440 = vshrl.u32 %v1439, 7
        %v1441 = vsub.s32 0, %v1440
        %v1442 = vrot.slane %v1437, %v1441
        %v1443 = vlaneseq
        %v1444 = vshrl.u32 %v1443, 7
        %v1445 = vsub.s32 1, %v1444
        %v1446 = vrot.slane %v1437, %v1445
        %v1449 = vadd.f32 %v1385, %v1442
        %v1450 = vadd.f32 %v1386, %v1446
        %s1451 = sld [smem:[#allocation7 + $0xe]]
        %v1452 = vstv %s1451
        %v1453 = vmul.f32 %v1049, %v1452
        %v1454 = vmul.f32 %v1050, %v1452
        %v1455 = vadd.f32 %v1401, %v1453
        %v1456 = vadd.f32 %v1402, %v1454
        %s1457 = sld [smem:[#allocation7 + $0x32]]
        %v1458 = vstv %s1457
        %v1459 = vmul.f32 %v1049, %v1458
        %v1460 = vmul.f32 %v1050, %v1458
        %v1461 = vadd.f32 %v1417, %v1459
        %v1462 = vadd.f32 %v1418, %v1460
        %s1463 = sld [smem:[#allocation7 + $0x56]]
        %v1464 = vstv %s1463
        %v1465 = vmul.f32 %v1049, %v1464
        %v1466 = vmul.f32 %v1050, %v1464
        %v1467 = vadd.f32 %v1433, %v1465
        %v1468 = vadd.f32 %v1434, %v1466
        %s1469 = sld [smem:[#allocation7 + $0x7a]]
        %v1470 = vstv %s1469
        %v1471 = vmul.f32 %v1049, %v1470
        %v1472 = vmul.f32 %v1050, %v1470
        %v1473 = vadd.f32 %v1449, %v1471
        %v1474 = vadd.f32 %v1450, %v1472
        %s1475 = sld [smem:[#allocation7 + $0xf]]
        %v1476 = vstv %s1475
        %v1477 = vmul.f32 %v1129, %v1476
        %v1478 = vmul.f32 %v1130, %v1476
        %v1479 = vadd.f32 %v1455, %v1477
        %v1480 = vadd.f32 %v1456, %v1478
        %s1481 = sld [smem:[#allocation7 + $0x33]]
        %v1482 = vstv %s1481
        %v1483 = vmul.f32 %v1129, %v1482
        %v1484 = vmul.f32 %v1130, %v1482
        %v1485 = vadd.f32 %v1461, %v1483
        %v1486 = vadd.f32 %v1462, %v1484
        %s1487 = sld [smem:[#allocation7 + $0x57]]
        %v1488 = vstv %s1487
        %v1489 = vmul.f32 %v1129, %v1488
        %v1490 = vmul.f32 %v1130, %v1488
        %v1491 = vadd.f32 %v1467, %v1489
        %v1492 = vadd.f32 %v1468, %v1490
        %s1493 = sld [smem:[#allocation7 + $0x7b]]
        %v1494 = vstv %s1493
        %v1495 = vmul.f32 %v1129, %v1494
        %v1496 = vmul.f32 %v1130, %v1494
        %v1497 = vadd.f32 %v1473, %v1495
        %v1498 = vadd.f32 %v1474, %v1496
        %s1499 = sld [smem:[#allocation7 + $0x10]]
        %v1500 = vstv %s1499
        %v1501 = vmul.f32 %v1209, %v1500
        %v1502 = vmul.f32 %v1210, %v1500
        %v1503 = vadd.f32 %v1479, %v1501
        %v1504 = vadd.f32 %v1480, %v1502
        %s1505 = sld [smem:[#allocation7 + $0x34]]
        %v1506 = vstv %s1505
        %v1507 = vmul.f32 %v1209, %v1506
        %v1508 = vmul.f32 %v1210, %v1506
        %v1509 = vadd.f32 %v1485, %v1507
        %v1510 = vadd.f32 %v1486, %v1508
        %s1511 = sld [smem:[#allocation7 + $0x58]]
        %v1512 = vstv %s1511
        %v1513 = vmul.f32 %v1209, %v1512
        %v1514 = vmul.f32 %v1210, %v1512
        %v1515 = vadd.f32 %v1491, %v1513
        %v1516 = vadd.f32 %v1492, %v1514
        %s1517 = sld [smem:[#allocation7 + $0x7c]]
        %v1518 = vstv %s1517
        %v1519 = vmul.f32 %v1209, %v1518
        %v1520 = vmul.f32 %v1210, %v1518
        %v1521 = vadd.f32 %v1497, %v1519
        %v1522 = vadd.f32 %v1498, %v1520
        %s1523 = sld [smem:[#allocation7 + $0x11]]
        %v1524 = vstv %s1523
        %v1525 = vmul.f32 %v1289, %v1524
        %v1526 = vmul.f32 %v1290, %v1524
        %v1527 = vadd.f32 %v1503, %v1525
        %v1528 = vadd.f32 %v1504, %v1526
        %s1529 = sld [smem:[#allocation7 + $0x35]]
        %v1530 = vstv %s1529
        %v1531 = vmul.f32 %v1289, %v1530
        %v1532 = vmul.f32 %v1290, %v1530
        %v1533 = vadd.f32 %v1509, %v1531
        %v1534 = vadd.f32 %v1510, %v1532
        %s1535 = sld [smem:[#allocation7 + $0x59]]
        %v1536 = vstv %s1535
        %v1537 = vmul.f32 %v1289, %v1536
        %v1538 = vmul.f32 %v1290, %v1536
        %v1539 = vadd.f32 %v1515, %v1537
        %v1540 = vadd.f32 %v1516, %v1538
        %s1541 = sld [smem:[#allocation7 + $0x7d]]
        %v1542 = vstv %s1541
        %v1543 = vmul.f32 %v1289, %v1542
        %v1544 = vmul.f32 %v1290, %v1542
        %v1545 = vadd.f32 %v1521, %v1543
        %v1546 = vadd.f32 %v1522, %v1544
        %s1547 = scalar_lea.vmem %s300, 2 [#allocation3]
        %v1548 = vld [vmem:[%s1547] ss:$4 sm:$0x3]
        %v1550 = vlaneseq
        %v1551 = vshrl.u32 %v1550, 7
        %v1552 = vsub.s32 0, %v1551
        %v1553 = vrot.slane %v1548, %v1552
        %v1554 = vlaneseq
        %v1555 = vshrl.u32 %v1554, 7
        %v1556 = vsub.s32 1, %v1555
        %v1557 = vrot.slane %v1548, %v1556
        %1560 = vrot.lane.b32.xlu0 %v1553, 1
        %v1561 = vpop.permute.xlu0 %1560
        %1562 = vrot.lane.b32.xlu0 %v1557, 1
        %v1563 = vpop.permute.xlu0 %1562
        %v1564 = vsel %vm382, %v1561, %v1563
        %v1565 = vsel %vm382, %v1563, %v1561
        %1566 = vrot.lane.b32.xlu0 %v1553, 127
        %v1567 = vpop.permute.xlu0 %1566
        %1568 = vrot.lane.b32.xlu0 %v1557, 127
        %v1569 = vpop.permute.xlu0 %1568
        %v1570 = vsel %vm389, %v1567, %v1569
        %v1571 = vsel %vm389, %v1569, %v1567
        %v1572 = vsub.f32 %v1570, %v1565
        %v1573 = vsub.f32 %v1571, %v1564
        %v1576 = vcombine.low %v1572, %v1573
        %v1578 = vunpack.c.l.s4 1966171168
        %v1579 = vunpack.c.0.s8 %v1578
        %v1580 = vlaneseq
        %v1581 = vshrl.u32 %v1580, 7
        %v1582 = vsub.s32 %v1579, %v1581
        %v1583 = vrot.slane %v1576, %v1582
        %v1585 = vunpack.c.l.s4 1966171168
        %v1586 = vunpack.c.0.s8 %v1585
        %v1587 = vlaneseq
        %v1588 = vshrl.u32 %v1587, 7
        %v1589 = vsub.s32 %v1586, %v1588
        %v1590 = vrot.slane %v1583, %v1589
        %v1592 = vmul.f32 %v348, %v1590
        %v1594 = vlaneseq
        %v1595 = vshrl.u32 %v1594, 7
        %v1596 = vsub.s32 0, %v1595
        %v1597 = vrot.slane %v1592, %v1596
        %v1598 = vlaneseq
        %v1599 = vshrl.u32 %v1598, 7
        %v1600 = vsub.s32 1, %v1599
        %v1601 = vrot.slane %v1592, %v1600
        %v1604 = vadd.f32 %v1565, %v1597
        %v1605 = vadd.f32 %v1564, %v1601
        %v1606 = vsub.f32 %v1565, %v1570
        %v1607 = vsub.f32 %v1564, %v1571
        %v1610 = vcombine.low %v1606, %v1607
        %v1612 = vunpack.c.l.s4 1966171168
        %v1613 = vunpack.c.0.s8 %v1612
        %v1614 = vlaneseq
        %v1615 = vshrl.u32 %v1614, 7
        %v1616 = vsub.s32 %v1613, %v1615
        %v1617 = vrot.slane %v1610, %v1616
        %v1619 = vunpack.c.l.s4 1966171168
        %v1620 = vunpack.c.0.s8 %v1619
        %v1621 = vlaneseq
        %v1622 = vshrl.u32 %v1621, 7
        %v1623 = vsub.s32 %v1620, %v1622
        %v1624 = vrot.slane %v1617, %v1623
        %v1626 = vmul.f32 %v350, %v1624
        %v1628 = vlaneseq
        %v1629 = vshrl.u32 %v1628, 7
        %v1630 = vsub.s32 0, %v1629
        %v1631 = vrot.slane %v1626, %v1630
        %v1632 = vlaneseq
        %v1633 = vshrl.u32 %v1632, 7
        %v1634 = vsub.s32 1, %v1633
        %v1635 = vrot.slane %v1626, %v1634
        %v1638 = vadd.f32 %v1570, %v1631
        %v1639 = vadd.f32 %v1571, %v1635
        %1640 = vrot.lane.b32.xlu0 %v1604, 16
        %v1641 = vpop.permute.xlu0 %1640
        %1642 = vrot.lane.b32.xlu0 %v1605, 16
        %v1643 = vpop.permute.xlu0 %1642
        %v1644 = vsel %vm464, %v1641, %v1643
        %v1645 = vsel %vm464, %v1643, %v1641
        %1646 = vrot.lane.b32.xlu0 %v1604, 112
        %v1647 = vpop.permute.xlu0 %1646
        %1648 = vrot.lane.b32.xlu0 %v1605, 112
        %v1649 = vpop.permute.xlu0 %1648
        %v1650 = vsel %vm471, %v1647, %v1649
        %v1651 = vsel %vm471, %v1649, %v1647
        %v1652 = vsub.f32 %v1650, %v1645
        %v1653 = vsub.f32 %v1651, %v1644
        %v1656 = vcombine.low %v1652, %v1653
        %v1658 = vunpack.c.l.s4 1966171168
        %v1659 = vunpack.c.0.s8 %v1658
        %v1660 = vlaneseq
        %v1661 = vshrl.u32 %v1660, 7
        %v1662 = vsub.s32 %v1659, %v1661
        %v1663 = vrot.slane %v1656, %v1662
        %v1665 = vunpack.c.l.s4 1966171168
        %v1666 = vunpack.c.0.s8 %v1665
        %v1667 = vlaneseq
        %v1668 = vshrl.u32 %v1667, 7
        %v1669 = vsub.s32 %v1666, %v1668
        %v1670 = vrot.slane %v1663, %v1669
        %v1672 = vmul.f32 %v352, %v1670
        %v1674 = vlaneseq
        %v1675 = vshrl.u32 %v1674, 7
        %v1676 = vsub.s32 0, %v1675
        %v1677 = vrot.slane %v1672, %v1676
        %v1678 = vlaneseq
        %v1679 = vshrl.u32 %v1678, 7
        %v1680 = vsub.s32 1, %v1679
        %v1681 = vrot.slane %v1672, %v1680
        %v1684 = vadd.f32 %v1645, %v1677
        %v1685 = vadd.f32 %v1644, %v1681
        %v1686 = vsub.f32 %v1645, %v1650
        %v1687 = vsub.f32 %v1644, %v1651
        %v1690 = vcombine.low %v1686, %v1687
        %v1692 = vunpack.c.l.s4 1966171168
        %v1693 = vunpack.c.0.s8 %v1692
        %v1694 = vlaneseq
        %v1695 = vshrl.u32 %v1694, 7
        %v1696 = vsub.s32 %v1693, %v1695
        %v1697 = vrot.slane %v1690, %v1696
        %v1699 = vunpack.c.l.s4 1966171168
        %v1700 = vunpack.c.0.s8 %v1699
        %v1701 = vlaneseq
        %v1702 = vshrl.u32 %v1701, 7
        %v1703 = vsub.s32 %v1700, %v1702
        %v1704 = vrot.slane %v1697, %v1703
        %v1706 = vmul.f32 %v354, %v1704
        %v1708 = vlaneseq
        %v1709 = vshrl.u32 %v1708, 7
        %v1710 = vsub.s32 0, %v1709
        %v1711 = vrot.slane %v1706, %v1710
        %v1712 = vlaneseq
        %v1713 = vshrl.u32 %v1712, 7
        %v1714 = vsub.s32 1, %v1713
        %v1715 = vrot.slane %v1706, %v1714
        %v1718 = vadd.f32 %v1650, %v1711
        %v1719 = vadd.f32 %v1651, %v1715
        %1720 = vrot.lane.b32.xlu0 %v1553, 16
        %v1721 = vpop.permute.xlu0 %1720
        %1722 = vrot.lane.b32.xlu0 %v1557, 16
        %v1723 = vpop.permute.xlu0 %1722
        %v1724 = vsel %vm464, %v1721, %v1723
        %v1725 = vsel %vm464, %v1723, %v1721
        %1726 = vrot.lane.b32.xlu0 %v1553, 112
        %v1727 = vpop.permute.xlu0 %1726
        %1728 = vrot.lane.b32.xlu0 %v1557, 112
        %v1729 = vpop.permute.xlu0 %1728
        %v1730 = vsel %vm471, %v1727, %v1729
        %v1731 = vsel %vm471, %v1729, %v1727
        %v1732 = vsub.f32 %v1730, %v1725
        %v1733 = vsub.f32 %v1731, %v1724
        %v1736 = vcombine.low %v1732, %v1733
        %v1738 = vunpack.c.l.s4 1966171168
        %v1739 = vunpack.c.0.s8 %v1738
        %v1740 = vlaneseq
        %v1741 = vshrl.u32 %v1740, 7
        %v1742 = vsub.s32 %v1739, %v1741
        %v1743 = vrot.slane %v1736, %v1742
        %v1745 = vunpack.c.l.s4 1966171168
        %v1746 = vunpack.c.0.s8 %v1745
        %v1747 = vlaneseq
        %v1748 = vshrl.u32 %v1747, 7
        %v1749 = vsub.s32 %v1746, %v1748
        %v1750 = vrot.slane %v1743, %v1749
        %v1752 = vmul.f32 %v352, %v1750
        %v1754 = vlaneseq
        %v1755 = vshrl.u32 %v1754, 7
        %v1756 = vsub.s32 0, %v1755
        %v1757 = vrot.slane %v1752, %v1756
        %v1758 = vlaneseq
        %v1759 = vshrl.u32 %v1758, 7
        %v1760 = vsub.s32 1, %v1759
        %v1761 = vrot.slane %v1752, %v1760
        %v1764 = vadd.f32 %v1725, %v1757
        %v1765 = vadd.f32 %v1724, %v1761
        %v1766 = vsub.f32 %v1725, %v1730
        %v1767 = vsub.f32 %v1724, %v1731
        %v1770 = vcombine.low %v1766, %v1767
        %v1772 = vunpack.c.l.s4 1966171168
        %v1773 = vunpack.c.0.s8 %v1772
        %v1774 = vlaneseq
        %v1775 = vshrl.u32 %v1774, 7
        %v1776 = vsub.s32 %v1773, %v1775
        %v1777 = vrot.slane %v1770, %v1776
        %v1779 = vunpack.c.l.s4 1966171168
        %v1780 = vunpack.c.0.s8 %v1779
        %v1781 = vlaneseq
        %v1782 = vshrl.u32 %v1781, 7
        %v1783 = vsub.s32 %v1780, %v1782
        %v1784 = vrot.slane %v1777, %v1783
        %v1786 = vmul.f32 %v354, %v1784
        %v1788 = vlaneseq
        %v1789 = vshrl.u32 %v1788, 7
        %v1790 = vsub.s32 0, %v1789
        %v1791 = vrot.slane %v1786, %v1790
        %v1792 = vlaneseq
        %v1793 = vshrl.u32 %v1792, 7
        %v1794 = vsub.s32 1, %v1793
        %v1795 = vrot.slane %v1786, %v1794
        %v1798 = vadd.f32 %v1730, %v1791
        %v1799 = vadd.f32 %v1731, %v1795
        %1800 = vrot.lane.b32.xlu0 %v1638, 16
        %v1801 = vpop.permute.xlu0 %1800
        %1802 = vrot.lane.b32.xlu0 %v1639, 16
        %v1803 = vpop.permute.xlu0 %1802
        %v1804 = vsel %vm464, %v1801, %v1803
        %v1805 = vsel %vm464, %v1803, %v1801
        %1806 = vrot.lane.b32.xlu0 %v1638, 112
        %v1807 = vpop.permute.xlu0 %1806
        %1808 = vrot.lane.b32.xlu0 %v1639, 112
        %v1809 = vpop.permute.xlu0 %1808
        %v1810 = vsel %vm471, %v1807, %v1809
        %v1811 = vsel %vm471, %v1809, %v1807
        %v1812 = vsub.f32 %v1810, %v1805
        %v1813 = vsub.f32 %v1811, %v1804
        %v1816 = vcombine.low %v1812, %v1813
        %v1818 = vunpack.c.l.s4 1966171168
        %v1819 = vunpack.c.0.s8 %v1818
        %v1820 = vlaneseq
        %v1821 = vshrl.u32 %v1820, 7
        %v1822 = vsub.s32 %v1819, %v1821
        %v1823 = vrot.slane %v1816, %v1822
        %v1825 = vunpack.c.l.s4 1966171168
        %v1826 = vunpack.c.0.s8 %v1825
        %v1827 = vlaneseq
        %v1828 = vshrl.u32 %v1827, 7
        %v1829 = vsub.s32 %v1826, %v1828
        %v1830 = vrot.slane %v1823, %v1829
        %v1832 = vmul.f32 %v352, %v1830
        %v1834 = vlaneseq
        %v1835 = vshrl.u32 %v1834, 7
        %v1836 = vsub.s32 0, %v1835
        %v1837 = vrot.slane %v1832, %v1836
        %v1838 = vlaneseq
        %v1839 = vshrl.u32 %v1838, 7
        %v1840 = vsub.s32 1, %v1839
        %v1841 = vrot.slane %v1832, %v1840
        %v1844 = vadd.f32 %v1805, %v1837
        %v1845 = vadd.f32 %v1804, %v1841
        %v1846 = vsub.f32 %v1805, %v1810
        %v1847 = vsub.f32 %v1804, %v1811
        %v1850 = vcombine.low %v1846, %v1847
        %v1852 = vunpack.c.l.s4 1966171168
        %v1853 = vunpack.c.0.s8 %v1852
        %v1854 = vlaneseq
        %v1855 = vshrl.u32 %v1854, 7
        %v1856 = vsub.s32 %v1853, %v1855
        %v1857 = vrot.slane %v1850, %v1856
        %v1859 = vunpack.c.l.s4 1966171168
        %v1860 = vunpack.c.0.s8 %v1859
        %v1861 = vlaneseq
        %v1862 = vshrl.u32 %v1861, 7
        %v1863 = vsub.s32 %v1860, %v1862
        %v1864 = vrot.slane %v1857, %v1863
        %v1866 = vmul.f32 %v354, %v1864
        %v1868 = vlaneseq
        %v1869 = vshrl.u32 %v1868, 7
        %v1870 = vsub.s32 0, %v1869
        %v1871 = vrot.slane %v1866, %v1870
        %v1872 = vlaneseq
        %v1873 = vshrl.u32 %v1872, 7
        %v1874 = vsub.s32 1, %v1873
        %v1875 = vrot.slane %v1866, %v1874
        %v1878 = vadd.f32 %v1810, %v1871
        %v1879 = vadd.f32 %v1811, %v1875
        %s1880 = sld [smem:[#allocation7 + $0x12]]
        %v1881 = vstv %s1880
        %v1882 = vmul.f32 %v1684, %v1881
        %v1883 = vmul.f32 %v1685, %v1881
        %v1884 = vadd.f32 %v1527, %v1882
        %v1885 = vadd.f32 %v1528, %v1883
        %s1886 = sld [smem:[#allocation7 + $0x36]]
        %v1887 = vstv %s1886
        %v1888 = vmul.f32 %v1684, %v1887
        %v1889 = vmul.f32 %v1685, %v1887
        %v1890 = vadd.f32 %v1533, %v1888
        %v1891 = vadd.f32 %v1534, %v1889
        %s1892 = sld [smem:[#allocation7 + $0x5a]]
        %v1893 = vstv %s1892
        %v1894 = vmul.f32 %v1684, %v1893
        %v1895 = vmul.f32 %v1685, %v1893
        %v1896 = vadd.f32 %v1539, %v1894
        %v1897 = vadd.f32 %v1540, %v1895
        %s1898 = sld [smem:[#allocation7 + $0x7e]]
        %v1899 = vstv %s1898
        %v1900 = vmul.f32 %v1684, %v1899
        %v1901 = vmul.f32 %v1685, %v1899
        %v1902 = vadd.f32 %v1545, %v1900
        %v1903 = vadd.f32 %v1546, %v1901
        %s1904 = sld [smem:[#allocation7 + $0x13]]
        %v1905 = vstv %s1904
        %v1906 = vmul.f32 %v1764, %v1905
        %v1907 = vmul.f32 %v1765, %v1905
        %v1908 = vadd.f32 %v1884, %v1906
        %v1909 = vadd.f32 %v1885, %v1907
        %s1910 = sld [smem:[#allocation7 + $0x37]]
        %v1911 = vstv %s1910
        %v1912 = vmul.f32 %v1764, %v1911
        %v1913 = vmul.f32 %v1765, %v1911
        %v1914 = vadd.f32 %v1890, %v1912
        %v1915 = vadd.f32 %v1891, %v1913
        %s1916 = sld [smem:[#allocation7 + $0x5b]]
        %v1917 = vstv %s1916
        %v1918 = vmul.f32 %v1764, %v1917
        %v1919 = vmul.f32 %v1765, %v1917
        %v1920 = vadd.f32 %v1896, %v1918
        %v1921 = vadd.f32 %v1897, %v1919
        %s1922 = sld [smem:[#allocation7 + $0x7f]]
        %v1923 = vstv %s1922
        %v1924 = vmul.f32 %v1764, %v1923
        %v1925 = vmul.f32 %v1765, %v1923
        %v1926 = vadd.f32 %v1902, %v1924
        %v1927 = vadd.f32 %v1903, %v1925
        %s1928 = sld [smem:[#allocation7 + $0x14]]
        %v1929 = vstv %s1928
        %v1930 = vmul.f32 %v1844, %v1929
        %v1931 = vmul.f32 %v1845, %v1929
        %v1932 = vadd.f32 %v1908, %v1930
        %v1933 = vadd.f32 %v1909, %v1931
        %s1934 = sld [smem:[#allocation7 + $0x38]]
        %v1935 = vstv %s1934
        %v1936 = vmul.f32 %v1844, %v1935
        %v1937 = vmul.f32 %v1845, %v1935
        %v1938 = vadd.f32 %v1914, %v1936
        %v1939 = vadd.f32 %v1915, %v1937
        %s1940 = sld [smem:[#allocation7 + $0x5c]]
        %v1941 = vstv %s1940
        %v1942 = vmul.f32 %v1844, %v1941
        %v1943 = vmul.f32 %v1845, %v1941
        %v1944 = vadd.f32 %v1920, %v1942
        %v1945 = vadd.f32 %v1921, %v1943
        %s1946 = sld [smem:[#allocation7 + $0x80]]
        %v1947 = vstv %s1946
        %v1948 = vmul.f32 %v1844, %v1947
        %v1949 = vmul.f32 %v1845, %v1947
        %v1950 = vadd.f32 %v1926, %v1948
        %v1951 = vadd.f32 %v1927, %v1949
        %s1952 = sld [smem:[#allocation7 + $0x15]]
        %v1953 = vstv %s1952
        %v1954 = vmul.f32 %v1604, %v1953
        %v1955 = vmul.f32 %v1605, %v1953
        %v1956 = vadd.f32 %v1932, %v1954
        %v1957 = vadd.f32 %v1933, %v1955
        %s1958 = sld [smem:[#allocation7 + $0x39]]
        %v1959 = vstv %s1958
        %v1960 = vmul.f32 %v1604, %v1959
        %v1961 = vmul.f32 %v1605, %v1959
        %v1962 = vadd.f32 %v1938, %v1960
        %v1963 = vadd.f32 %v1939, %v1961
        %s1964 = sld [smem:[#allocation7 + $0x5d]]
        %v1965 = vstv %s1964
        %v1966 = vmul.f32 %v1604, %v1965
        %v1967 = vmul.f32 %v1605, %v1965
        %v1968 = vadd.f32 %v1944, %v1966
        %v1969 = vadd.f32 %v1945, %v1967
        %s1970 = sld [smem:[#allocation7 + $0x81]]
        %v1971 = vstv %s1970
        %v1972 = vmul.f32 %v1604, %v1971
        %v1973 = vmul.f32 %v1605, %v1971
        %v1974 = vadd.f32 %v1950, %v1972
        %v1975 = vadd.f32 %v1951, %v1973
        %s1976 = sld [smem:[#allocation7 + $0x16]]
        %v1977 = vstv %s1976
        %v1978 = vmul.f32 %v1548, %v1977
        %v1980 = vlaneseq
        %v1981 = vshrl.u32 %v1980, 7
        %v1982 = vsub.s32 0, %v1981
        %v1983 = vrot.slane %v1978, %v1982
        %v1984 = vlaneseq
        %v1985 = vshrl.u32 %v1984, 7
        %v1986 = vsub.s32 1, %v1985
        %v1987 = vrot.slane %v1978, %v1986
        %v1990 = vadd.f32 %v1956, %v1983
        %v1991 = vadd.f32 %v1957, %v1987
        %s1992 = sld [smem:[#allocation7 + $0x3a]]
        %v1993 = vstv %s1992
        %v1994 = vmul.f32 %v1548, %v1993
        %v1996 = vlaneseq
        %v1997 = vshrl.u32 %v1996, 7
        %v1998 = vsub.s32 0, %v1997
        %v1999 = vrot.slane %v1994, %v1998
        %v2000 = vlaneseq
        %v2001 = vshrl.u32 %v2000, 7
        %v2002 = vsub.s32 1, %v2001
        %v2003 = vrot.slane %v1994, %v2002
        %v2006 = vadd.f32 %v1962, %v1999
        %v2007 = vadd.f32 %v1963, %v2003
        %s2008 = sld [smem:[#allocation7 + $0x5e]]
        %v2009 = vstv %s2008
        %v2010 = vmul.f32 %v1548, %v2009
        %v2012 = vlaneseq
        %v2013 = vshrl.u32 %v2012, 7
        %v2014 = vsub.s32 0, %v2013
        %v2015 = vrot.slane %v2010, %v2014
        %v2016 = vlaneseq
        %v2017 = vshrl.u32 %v2016, 7
        %v2018 = vsub.s32 1, %v2017
        %v2019 = vrot.slane %v2010, %v2018
        %v2022 = vadd.f32 %v1968, %v2015
        %v2023 = vadd.f32 %v1969, %v2019
        %s2024 = sld [smem:[#allocation7 + $0x82]]
        %v2025 = vstv %s2024
        %v2026 = vmul.f32 %v1548, %v2025
        %v2028 = vlaneseq
        %v2029 = vshrl.u32 %v2028, 7
        %v2030 = vsub.s32 0, %v2029
        %v2031 = vrot.slane %v2026, %v2030
        %v2032 = vlaneseq
        %v2033 = vshrl.u32 %v2032, 7
        %v2034 = vsub.s32 1, %v2033
        %v2035 = vrot.slane %v2026, %v2034
        %v2038 = vadd.f32 %v1974, %v2031
        %v2039 = vadd.f32 %v1975, %v2035
        %s2040 = sld [smem:[#allocation7 + $0x17]]
        %v2041 = vstv %s2040
        %v2042 = vmul.f32 %v1638, %v2041
        %v2043 = vmul.f32 %v1639, %v2041
        %v2044 = vadd.f32 %v1990, %v2042
        %v2045 = vadd.f32 %v1991, %v2043
        %s2046 = sld [smem:[#allocation7 + $0x3b]]
        %v2047 = vstv %s2046
        %v2048 = vmul.f32 %v1638, %v2047
        %v2049 = vmul.f32 %v1639, %v2047
        %v2050 = vadd.f32 %v2006, %v2048
        %v2051 = vadd.f32 %v2007, %v2049
        %s2052 = sld [smem:[#allocation7 + $0x5f]]
        %v2053 = vstv %s2052
        %v2054 = vmul.f32 %v1638, %v2053
        %v2055 = vmul.f32 %v1639, %v2053
        %v2056 = vadd.f32 %v2022, %v2054
        %v2057 = vadd.f32 %v2023, %v2055
        %s2058 = sld [smem:[#allocation7 + $0x83]]
        %v2059 = vstv %s2058
        %v2060 = vmul.f32 %v1638, %v2059
        %v2061 = vmul.f32 %v1639, %v2059
        %v2062 = vadd.f32 %v2038, %v2060
        %v2063 = vadd.f32 %v2039, %v2061
        %s2064 = sld [smem:[#allocation7 + $0x18]]
        %v2065 = vstv %s2064
        %v2066 = vmul.f32 %v1718, %v2065
        %v2067 = vmul.f32 %v1719, %v2065
        %v2068 = vadd.f32 %v2044, %v2066
        %v2069 = vadd.f32 %v2045, %v2067
        %s2070 = sld [smem:[#allocation7 + $0x3c]]
        %v2071 = vstv %s2070
        %v2072 = vmul.f32 %v1718, %v2071
        %v2073 = vmul.f32 %v1719, %v2071
        %v2074 = vadd.f32 %v2050, %v2072
        %v2075 = vadd.f32 %v2051, %v2073
        %s2076 = sld [smem:[#allocation7 + $0x60]]
        %v2077 = vstv %s2076
        %v2078 = vmul.f32 %v1718, %v2077
        %v2079 = vmul.f32 %v1719, %v2077
        %v2080 = vadd.f32 %v2056, %v2078
        %v2081 = vadd.f32 %v2057, %v2079
        %s2082 = sld [smem:[#allocation7 + $0x84]]
        %v2083 = vstv %s2082
        %v2084 = vmul.f32 %v1718, %v2083
        %v2085 = vmul.f32 %v1719, %v2083
        %v2086 = vadd.f32 %v2062, %v2084
        %v2087 = vadd.f32 %v2063, %v2085
        %s2088 = sld [smem:[#allocation7 + $0x19]]
        %v2089 = vstv %s2088
        %v2090 = vmul.f32 %v1798, %v2089
        %v2091 = vmul.f32 %v1799, %v2089
        %v2092 = vadd.f32 %v2068, %v2090
        %v2093 = vadd.f32 %v2069, %v2091
        %s2094 = sld [smem:[#allocation7 + $0x3d]]
        %v2095 = vstv %s2094
        %v2096 = vmul.f32 %v1798, %v2095
        %v2097 = vmul.f32 %v1799, %v2095
        %v2098 = vadd.f32 %v2074, %v2096
        %v2099 = vadd.f32 %v2075, %v2097
        %s2100 = sld [smem:[#allocation7 + $0x61]]
        %v2101 = vstv %s2100
        %v2102 = vmul.f32 %v1798, %v2101
        %v2103 = vmul.f32 %v1799, %v2101
        %v2104 = vadd.f32 %v2080, %v2102
        %v2105 = vadd.f32 %v2081, %v2103
        %s2106 = sld [smem:[#allocation7 + $0x85]]
        %v2107 = vstv %s2106
        %v2108 = vmul.f32 %v1798, %v2107
        %v2109 = vmul.f32 %v1799, %v2107
        %v2110 = vadd.f32 %v2086, %v2108
        %v2111 = vadd.f32 %v2087, %v2109
        %s2112 = sld [smem:[#allocation7 + $0x1a]]
        %v2113 = vstv %s2112
        %v2114 = vmul.f32 %v1878, %v2113
        %v2115 = vmul.f32 %v1879, %v2113
        %v2116 = vadd.f32 %v2092, %v2114
        %v2117 = vadd.f32 %v2093, %v2115
        %s2118 = sld [smem:[#allocation7 + $0x3e]]
        %v2119 = vstv %s2118
        %v2120 = vmul.f32 %v1878, %v2119
        %v2121 = vmul.f32 %v1879, %v2119
        %v2122 = vadd.f32 %v2098, %v2120
        %v2123 = vadd.f32 %v2099, %v2121
        %s2124 = sld [smem:[#allocation7 + $0x62]]
        %v2125 = vstv %s2124
        %v2126 = vmul.f32 %v1878, %v2125
        %v2127 = vmul.f32 %v1879, %v2125
        %v2128 = vadd.f32 %v2104, %v2126
        %v2129 = vadd.f32 %v2105, %v2127
        %s2130 = sld [smem:[#allocation7 + $0x86]]
        %v2131 = vstv %s2130
        %v2132 = vmul.f32 %v1878, %v2131
        %v2133 = vmul.f32 %v1879, %v2131
        %v2134 = vadd.f32 %v2110, %v2132
        %v2135 = vadd.f32 %v2111, %v2133
        %s2136 = scalar_lea.vmem %s300, 3 [#allocation3]
        %v2137 = vld [vmem:[%s2136] ss:$4 sm:$0x3]
        %v2139 = vlaneseq
        %v2140 = vshrl.u32 %v2139, 7
        %v2141 = vsub.s32 0, %v2140
        %v2142 = vrot.slane %v2137, %v2141
        %v2143 = vlaneseq
        %v2144 = vshrl.u32 %v2143, 7
        %v2145 = vsub.s32 1, %v2144
        %v2146 = vrot.slane %v2137, %v2145
        %2149 = vrot.lane.b32.xlu0 %v2142, 1
        %v2150 = vpop.permute.xlu0 %2149
        %2151 = vrot.lane.b32.xlu0 %v2146, 1
        %v2152 = vpop.permute.xlu0 %2151
        %v2153 = vsel %vm382, %v2150, %v2152
        %v2154 = vsel %vm382, %v2152, %v2150
        %2155 = vrot.lane.b32.xlu0 %v2142, 127
        %v2156 = vpop.permute.xlu0 %2155
        %2157 = vrot.lane.b32.xlu0 %v2146, 127
        %v2158 = vpop.permute.xlu0 %2157
        %v2159 = vsel %vm389, %v2156, %v2158
        %v2160 = vsel %vm389, %v2158, %v2156
        %v2161 = vsub.f32 %v2159, %v2154
        %v2162 = vsub.f32 %v2160, %v2153
        %v2165 = vcombine.low %v2161, %v2162
        %v2167 = vunpack.c.l.s4 1966171168
        %v2168 = vunpack.c.0.s8 %v2167
        %v2169 = vlaneseq
        %v2170 = vshrl.u32 %v2169, 7
        %v2171 = vsub.s32 %v2168, %v2170
        %v2172 = vrot.slane %v2165, %v2171
        %v2174 = vunpack.c.l.s4 1966171168
        %v2175 = vunpack.c.0.s8 %v2174
        %v2176 = vlaneseq
        %v2177 = vshrl.u32 %v2176, 7
        %v2178 = vsub.s32 %v2175, %v2177
        %v2179 = vrot.slane %v2172, %v2178
        %v2181 = vmul.f32 %v348, %v2179
        %v2183 = vlaneseq
        %v2184 = vshrl.u32 %v2183, 7
        %v2185 = vsub.s32 0, %v2184
        %v2186 = vrot.slane %v2181, %v2185
        %v2187 = vlaneseq
        %v2188 = vshrl.u32 %v2187, 7
        %v2189 = vsub.s32 1, %v2188
        %v2190 = vrot.slane %v2181, %v2189
        %v2193 = vadd.f32 %v2154, %v2186
        %v2194 = vadd.f32 %v2153, %v2190
        %v2195 = vsub.f32 %v2154, %v2159
        %v2196 = vsub.f32 %v2153, %v2160
        %v2199 = vcombine.low %v2195, %v2196
        %v2201 = vunpack.c.l.s4 1966171168
        %v2202 = vunpack.c.0.s8 %v2201
        %v2203 = vlaneseq
        %v2204 = vshrl.u32 %v2203, 7
        %v2205 = vsub.s32 %v2202, %v2204
        %v2206 = vrot.slane %v2199, %v2205
        %v2208 = vunpack.c.l.s4 1966171168
        %v2209 = vunpack.c.0.s8 %v2208
        %v2210 = vlaneseq
        %v2211 = vshrl.u32 %v2210, 7
        %v2212 = vsub.s32 %v2209, %v2211
        %v2213 = vrot.slane %v2206, %v2212
        %v2215 = vmul.f32 %v350, %v2213
        %v2217 = vlaneseq
        %v2218 = vshrl.u32 %v2217, 7
        %v2219 = vsub.s32 0, %v2218
        %v2220 = vrot.slane %v2215, %v2219
        %v2221 = vlaneseq
        %v2222 = vshrl.u32 %v2221, 7
        %v2223 = vsub.s32 1, %v2222
        %v2224 = vrot.slane %v2215, %v2223
        %v2227 = vadd.f32 %v2159, %v2220
        %v2228 = vadd.f32 %v2160, %v2224
        %2229 = vrot.lane.b32.xlu0 %v2193, 16
        %v2230 = vpop.permute.xlu0 %2229
        %2231 = vrot.lane.b32.xlu0 %v2194, 16
        %v2232 = vpop.permute.xlu0 %2231
        %v2233 = vsel %vm464, %v2230, %v2232
        %v2234 = vsel %vm464, %v2232, %v2230
        %2235 = vrot.lane.b32.xlu0 %v2193, 112
        %v2236 = vpop.permute.xlu0 %2235
        %2237 = vrot.lane.b32.xlu0 %v2194, 112
        %v2238 = vpop.permute.xlu0 %2237
        %v2239 = vsel %vm471, %v2236, %v2238
        %v2240 = vsel %vm471, %v2238, %v2236
        %v2241 = vsub.f32 %v2239, %v2234
        %v2242 = vsub.f32 %v2240, %v2233
        %v2245 = vcombine.low %v2241, %v2242
        %v2247 = vunpack.c.l.s4 1966171168
        %v2248 = vunpack.c.0.s8 %v2247
        %v2249 = vlaneseq
        %v2250 = vshrl.u32 %v2249, 7
        %v2251 = vsub.s32 %v2248, %v2250
        %v2252 = vrot.slane %v2245, %v2251
        %v2254 = vunpack.c.l.s4 1966171168
        %v2255 = vunpack.c.0.s8 %v2254
        %v2256 = vlaneseq
        %v2257 = vshrl.u32 %v2256, 7
        %v2258 = vsub.s32 %v2255, %v2257
        %v2259 = vrot.slane %v2252, %v2258
        %v2261 = vmul.f32 %v352, %v2259
        %v2263 = vlaneseq
        %v2264 = vshrl.u32 %v2263, 7
        %v2265 = vsub.s32 0, %v2264
        %v2266 = vrot.slane %v2261, %v2265
        %v2267 = vlaneseq
        %v2268 = vshrl.u32 %v2267, 7
        %v2269 = vsub.s32 1, %v2268
        %v2270 = vrot.slane %v2261, %v2269
        %v2273 = vadd.f32 %v2234, %v2266
        %v2274 = vadd.f32 %v2233, %v2270
        %v2275 = vsub.f32 %v2234, %v2239
        %v2276 = vsub.f32 %v2233, %v2240
        %v2279 = vcombine.low %v2275, %v2276
        %v2281 = vunpack.c.l.s4 1966171168
        %v2282 = vunpack.c.0.s8 %v2281
        %v2283 = vlaneseq
        %v2284 = vshrl.u32 %v2283, 7
        %v2285 = vsub.s32 %v2282, %v2284
        %v2286 = vrot.slane %v2279, %v2285
        %v2288 = vunpack.c.l.s4 1966171168
        %v2289 = vunpack.c.0.s8 %v2288
        %v2290 = vlaneseq
        %v2291 = vshrl.u32 %v2290, 7
        %v2292 = vsub.s32 %v2289, %v2291
        %v2293 = vrot.slane %v2286, %v2292
        %v2295 = vmul.f32 %v354, %v2293
        %v2297 = vlaneseq
        %v2298 = vshrl.u32 %v2297, 7
        %v2299 = vsub.s32 0, %v2298
        %v2300 = vrot.slane %v2295, %v2299
        %v2301 = vlaneseq
        %v2302 = vshrl.u32 %v2301, 7
        %v2303 = vsub.s32 1, %v2302
        %v2304 = vrot.slane %v2295, %v2303
        %v2307 = vadd.f32 %v2239, %v2300
        %v2308 = vadd.f32 %v2240, %v2304
        %2309 = vrot.lane.b32.xlu0 %v2142, 16
        %v2310 = vpop.permute.xlu0 %2309
        %2311 = vrot.lane.b32.xlu0 %v2146, 16
        %v2312 = vpop.permute.xlu0 %2311
        %v2313 = vsel %vm464, %v2310, %v2312
        %v2314 = vsel %vm464, %v2312, %v2310
        %2315 = vrot.lane.b32.xlu0 %v2142, 112
        %v2316 = vpop.permute.xlu0 %2315
        %2317 = vrot.lane.b32.xlu0 %v2146, 112
        %v2318 = vpop.permute.xlu0 %2317
        %v2319 = vsel %vm471, %v2316, %v2318
        %v2320 = vsel %vm471, %v2318, %v2316
        %v2321 = vsub.f32 %v2319, %v2314
        %v2322 = vsub.f32 %v2320, %v2313
        %v2325 = vcombine.low %v2321, %v2322
        %v2327 = vunpack.c.l.s4 1966171168
        %v2328 = vunpack.c.0.s8 %v2327
        %v2329 = vlaneseq
        %v2330 = vshrl.u32 %v2329, 7
        %v2331 = vsub.s32 %v2328, %v2330
        %v2332 = vrot.slane %v2325, %v2331
        %v2334 = vunpack.c.l.s4 1966171168
        %v2335 = vunpack.c.0.s8 %v2334
        %v2336 = vlaneseq
        %v2337 = vshrl.u32 %v2336, 7
        %v2338 = vsub.s32 %v2335, %v2337
        %v2339 = vrot.slane %v2332, %v2338
        %v2341 = vmul.f32 %v352, %v2339
        %v2343 = vlaneseq
        %v2344 = vshrl.u32 %v2343, 7
        %v2345 = vsub.s32 0, %v2344
        %v2346 = vrot.slane %v2341, %v2345
        %v2347 = vlaneseq
        %v2348 = vshrl.u32 %v2347, 7
        %v2349 = vsub.s32 1, %v2348
        %v2350 = vrot.slane %v2341, %v2349
        %v2353 = vadd.f32 %v2314, %v2346
        %v2354 = vadd.f32 %v2313, %v2350
        %v2355 = vsub.f32 %v2314, %v2319
        %v2356 = vsub.f32 %v2313, %v2320
        %v2359 = vcombine.low %v2355, %v2356
        %v2361 = vunpack.c.l.s4 1966171168
        %v2362 = vunpack.c.0.s8 %v2361
        %v2363 = vlaneseq
        %v2364 = vshrl.u32 %v2363, 7
        %v2365 = vsub.s32 %v2362, %v2364
        %v2366 = vrot.slane %v2359, %v2365
        %v2368 = vunpack.c.l.s4 1966171168
        %v2369 = vunpack.c.0.s8 %v2368
        %v2370 = vlaneseq
        %v2371 = vshrl.u32 %v2370, 7
        %v2372 = vsub.s32 %v2369, %v2371
        %v2373 = vrot.slane %v2366, %v2372
        %v2375 = vmul.f32 %v354, %v2373
        %v2377 = vlaneseq
        %v2378 = vshrl.u32 %v2377, 7
        %v2379 = vsub.s32 0, %v2378
        %v2380 = vrot.slane %v2375, %v2379
        %v2381 = vlaneseq
        %v2382 = vshrl.u32 %v2381, 7
        %v2383 = vsub.s32 1, %v2382
        %v2384 = vrot.slane %v2375, %v2383
        %v2387 = vadd.f32 %v2319, %v2380
        %v2388 = vadd.f32 %v2320, %v2384
        %2389 = vrot.lane.b32.xlu0 %v2227, 16
        %v2390 = vpop.permute.xlu0 %2389
        %2391 = vrot.lane.b32.xlu0 %v2228, 16
        %v2392 = vpop.permute.xlu0 %2391
        %v2393 = vsel %vm464, %v2390, %v2392
        %v2394 = vsel %vm464, %v2392, %v2390
        %2395 = vrot.lane.b32.xlu0 %v2227, 112
        %v2396 = vpop.permute.xlu0 %2395
        %2397 = vrot.lane.b32.xlu0 %v2228, 112
        %v2398 = vpop.permute.xlu0 %2397
        %v2399 = vsel %vm471, %v2396, %v2398
        %v2400 = vsel %vm471, %v2398, %v2396
        %v2401 = vsub.f32 %v2399, %v2394
        %v2402 = vsub.f32 %v2400, %v2393
        %v2405 = vcombine.low %v2401, %v2402
        %v2407 = vunpack.c.l.s4 1966171168
        %v2408 = vunpack.c.0.s8 %v2407
        %v2409 = vlaneseq
        %v2410 = vshrl.u32 %v2409, 7
        %v2411 = vsub.s32 %v2408, %v2410
        %v2412 = vrot.slane %v2405, %v2411
        %v2414 = vunpack.c.l.s4 1966171168
        %v2415 = vunpack.c.0.s8 %v2414
        %v2416 = vlaneseq
        %v2417 = vshrl.u32 %v2416, 7
        %v2418 = vsub.s32 %v2415, %v2417
        %v2419 = vrot.slane %v2412, %v2418
        %v2421 = vmul.f32 %v352, %v2419
        %v2423 = vlaneseq
        %v2424 = vshrl.u32 %v2423, 7
        %v2425 = vsub.s32 0, %v2424
        %v2426 = vrot.slane %v2421, %v2425
        %v2427 = vlaneseq
        %v2428 = vshrl.u32 %v2427, 7
        %v2429 = vsub.s32 1, %v2428
        %v2430 = vrot.slane %v2421, %v2429
        %v2433 = vadd.f32 %v2394, %v2426
        %v2434 = vadd.f32 %v2393, %v2430
        %v2435 = vsub.f32 %v2394, %v2399
        %v2436 = vsub.f32 %v2393, %v2400
        %v2439 = vcombine.low %v2435, %v2436
        %v2441 = vunpack.c.l.s4 1966171168
        %v2442 = vunpack.c.0.s8 %v2441
        %v2443 = vlaneseq
        %v2444 = vshrl.u32 %v2443, 7
        %v2445 = vsub.s32 %v2442, %v2444
        %v2446 = vrot.slane %v2439, %v2445
        %v2448 = vunpack.c.l.s4 1966171168
        %v2449 = vunpack.c.0.s8 %v2448
        %v2450 = vlaneseq
        %v2451 = vshrl.u32 %v2450, 7
        %v2452 = vsub.s32 %v2449, %v2451
        %v2453 = vrot.slane %v2446, %v2452
        %v2455 = vmul.f32 %v354, %v2453
        %v2457 = vlaneseq
        %v2458 = vshrl.u32 %v2457, 7
        %v2459 = vsub.s32 0, %v2458
        %v2460 = vrot.slane %v2455, %v2459
        %v2461 = vlaneseq
        %v2462 = vshrl.u32 %v2461, 7
        %v2463 = vsub.s32 1, %v2462
        %v2464 = vrot.slane %v2455, %v2463
        %v2467 = vadd.f32 %v2399, %v2460
        %v2468 = vadd.f32 %v2400, %v2464
        %s2469 = sld [smem:[#allocation7 + $0x1b]]
        %v2470 = vstv %s2469
        %v2471 = vmul.f32 %v2273, %v2470
        %v2472 = vmul.f32 %v2274, %v2470
        %v2473 = vadd.f32 %v2116, %v2471
        %v2474 = vadd.f32 %v2117, %v2472
        %s2475 = sld [smem:[#allocation7 + $0x3f]]
        %v2476 = vstv %s2475
        %v2477 = vmul.f32 %v2273, %v2476
        %v2478 = vmul.f32 %v2274, %v2476
        %v2479 = vadd.f32 %v2122, %v2477
        %v2480 = vadd.f32 %v2123, %v2478
        %s2481 = sld [smem:[#allocation7 + $0x63]]
        %v2482 = vstv %s2481
        %v2483 = vmul.f32 %v2273, %v2482
        %v2484 = vmul.f32 %v2274, %v2482
        %v2485 = vadd.f32 %v2128, %v2483
        %v2486 = vadd.f32 %v2129, %v2484
        %s2487 = sld [smem:[#allocation7 + $0x87]]
        %v2488 = vstv %s2487
        %v2489 = vmul.f32 %v2273, %v2488
        %v2490 = vmul.f32 %v2274, %v2488
        %v2491 = vadd.f32 %v2134, %v2489
        %v2492 = vadd.f32 %v2135, %v2490
        %s2493 = sld [smem:[#allocation7 + $0x1c]]
        %v2494 = vstv %s2493
        %v2495 = vmul.f32 %v2353, %v2494
        %v2496 = vmul.f32 %v2354, %v2494
        %v2497 = vadd.f32 %v2473, %v2495
        %v2498 = vadd.f32 %v2474, %v2496
        %s2499 = sld [smem:[#allocation7 + $0x40]]
        %v2500 = vstv %s2499
        %v2501 = vmul.f32 %v2353, %v2500
        %v2502 = vmul.f32 %v2354, %v2500
        %v2503 = vadd.f32 %v2479, %v2501
        %v2504 = vadd.f32 %v2480, %v2502
        %s2505 = sld [smem:[#allocation7 + $0x64]]
        %v2506 = vstv %s2505
        %v2507 = vmul.f32 %v2353, %v2506
        %v2508 = vmul.f32 %v2354, %v2506
        %v2509 = vadd.f32 %v2485, %v2507
        %v2510 = vadd.f32 %v2486, %v2508
        %s2511 = sld [smem:[#allocation7 + $0x88]]
        %v2512 = vstv %s2511
        %v2513 = vmul.f32 %v2353, %v2512
        %v2514 = vmul.f32 %v2354, %v2512
        %v2515 = vadd.f32 %v2491, %v2513
        %v2516 = vadd.f32 %v2492, %v2514
        %s2517 = sld [smem:[#allocation7 + $0x1d]]
        %v2518 = vstv %s2517
        %v2519 = vmul.f32 %v2433, %v2518
        %v2520 = vmul.f32 %v2434, %v2518
        %v2521 = vadd.f32 %v2497, %v2519
        %v2522 = vadd.f32 %v2498, %v2520
        %s2523 = sld [smem:[#allocation7 + $0x41]]
        %v2524 = vstv %s2523
        %v2525 = vmul.f32 %v2433, %v2524
        %v2526 = vmul.f32 %v2434, %v2524
        %v2527 = vadd.f32 %v2503, %v2525
        %v2528 = vadd.f32 %v2504, %v2526
        %s2529 = sld [smem:[#allocation7 + $0x65]]
        %v2530 = vstv %s2529
        %v2531 = vmul.f32 %v2433, %v2530
        %v2532 = vmul.f32 %v2434, %v2530
        %v2533 = vadd.f32 %v2509, %v2531
        %v2534 = vadd.f32 %v2510, %v2532
        %s2535 = sld [smem:[#allocation7 + $0x89]]
        %v2536 = vstv %s2535
        %v2537 = vmul.f32 %v2433, %v2536
        %v2538 = vmul.f32 %v2434, %v2536
        %v2539 = vadd.f32 %v2515, %v2537
        %v2540 = vadd.f32 %v2516, %v2538
        %s2541 = sld [smem:[#allocation7 + $0x1e]]
        %v2542 = vstv %s2541
        %v2543 = vmul.f32 %v2193, %v2542
        %v2544 = vmul.f32 %v2194, %v2542
        %v2545 = vadd.f32 %v2521, %v2543
        %v2546 = vadd.f32 %v2522, %v2544
        %s2547 = sld [smem:[#allocation7 + $0x42]]
        %v2548 = vstv %s2547
        %v2549 = vmul.f32 %v2193, %v2548
        %v2550 = vmul.f32 %v2194, %v2548
        %v2551 = vadd.f32 %v2527, %v2549
        %v2552 = vadd.f32 %v2528, %v2550
        %s2553 = sld [smem:[#allocation7 + $0x66]]
        %v2554 = vstv %s2553
        %v2555 = vmul.f32 %v2193, %v2554
        %v2556 = vmul.f32 %v2194, %v2554
        %v2557 = vadd.f32 %v2533, %v2555
        %v2558 = vadd.f32 %v2534, %v2556
        %s2559 = sld [smem:[#allocation7 + $0x8a]]
        %v2560 = vstv %s2559
        %v2561 = vmul.f32 %v2193, %v2560
        %v2562 = vmul.f32 %v2194, %v2560
        %v2563 = vadd.f32 %v2539, %v2561
        %v2564 = vadd.f32 %v2540, %v2562
        %s2565 = sld [smem:[#allocation7 + $0x1f]]
        %v2566 = vstv %s2565
        %v2567 = vmul.f32 %v2137, %v2566
        %v2569 = vlaneseq
        %v2570 = vshrl.u32 %v2569, 7
        %v2571 = vsub.s32 0, %v2570
        %v2572 = vrot.slane %v2567, %v2571
        %v2573 = vlaneseq
        %v2574 = vshrl.u32 %v2573, 7
        %v2575 = vsub.s32 1, %v2574
        %v2576 = vrot.slane %v2567, %v2575
        %v2579 = vadd.f32 %v2545, %v2572
        %v2580 = vadd.f32 %v2546, %v2576
        %s2581 = sld [smem:[#allocation7 + $0x43]]
        %v2582 = vstv %s2581
        %v2583 = vmul.f32 %v2137, %v2582
        %v2585 = vlaneseq
        %v2586 = vshrl.u32 %v2585, 7
        %v2587 = vsub.s32 0, %v2586
        %v2588 = vrot.slane %v2583, %v2587
        %v2589 = vlaneseq
        %v2590 = vshrl.u32 %v2589, 7
        %v2591 = vsub.s32 1, %v2590
        %v2592 = vrot.slane %v2583, %v2591
        %v2595 = vadd.f32 %v2551, %v2588
        %v2596 = vadd.f32 %v2552, %v2592
        %s2597 = sld [smem:[#allocation7 + $0x67]]
        %v2598 = vstv %s2597
        %v2599 = vmul.f32 %v2137, %v2598
        %v2601 = vlaneseq
        %v2602 = vshrl.u32 %v2601, 7
        %v2603 = vsub.s32 0, %v2602
        %v2604 = vrot.slane %v2599, %v2603
        %v2605 = vlaneseq
        %v2606 = vshrl.u32 %v2605, 7
        %v2607 = vsub.s32 1, %v2606
        %v2608 = vrot.slane %v2599, %v2607
        %v2611 = vadd.f32 %v2557, %v2604
        %v2612 = vadd.f32 %v2558, %v2608
        %s2613 = sld [smem:[#allocation7 + $0x8b]]
        %v2614 = vstv %s2613
        %v2615 = vmul.f32 %v2137, %v2614
        %v2617 = vlaneseq
        %v2618 = vshrl.u32 %v2617, 7
        %v2619 = vsub.s32 0, %v2618
        %v2620 = vrot.slane %v2615, %v2619
        %v2621 = vlaneseq
        %v2622 = vshrl.u32 %v2621, 7
        %v2623 = vsub.s32 1, %v2622
        %v2624 = vrot.slane %v2615, %v2623
        %v2627 = vadd.f32 %v2563, %v2620
        %v2628 = vadd.f32 %v2564, %v2624
        %s2629 = sld [smem:[#allocation7 + $0x20]]
        %v2630 = vstv %s2629
        %v2631 = vmul.f32 %v2227, %v2630
        %v2632 = vmul.f32 %v2228, %v2630
        %v2633 = vadd.f32 %v2579, %v2631
        %v2634 = vadd.f32 %v2580, %v2632
        %s2635 = sld [smem:[#allocation7 + $0x44]]
        %v2636 = vstv %s2635
        %v2637 = vmul.f32 %v2227, %v2636
        %v2638 = vmul.f32 %v2228, %v2636
        %v2639 = vadd.f32 %v2595, %v2637
        %v2640 = vadd.f32 %v2596, %v2638
        %s2641 = sld [smem:[#allocation7 + $0x68]]
        %v2642 = vstv %s2641
        %v2643 = vmul.f32 %v2227, %v2642
        %v2644 = vmul.f32 %v2228, %v2642
        %v2645 = vadd.f32 %v2611, %v2643
        %v2646 = vadd.f32 %v2612, %v2644
        %s2647 = sld [smem:[#allocation7 + $0x8c]]
        %v2648 = vstv %s2647
        %v2649 = vmul.f32 %v2227, %v2648
        %v2650 = vmul.f32 %v2228, %v2648
        %v2651 = vadd.f32 %v2627, %v2649
        %v2652 = vadd.f32 %v2628, %v2650
        %s2653 = sld [smem:[#allocation7 + $0x21]]
        %v2654 = vstv %s2653
        %v2655 = vmul.f32 %v2307, %v2654
        %v2656 = vmul.f32 %v2308, %v2654
        %v2657 = vadd.f32 %v2633, %v2655
        %v2658 = vadd.f32 %v2634, %v2656
        %s2659 = sld [smem:[#allocation7 + $0x45]]
        %v2660 = vstv %s2659
        %v2661 = vmul.f32 %v2307, %v2660
        %v2662 = vmul.f32 %v2308, %v2660
        %v2663 = vadd.f32 %v2639, %v2661
        %v2664 = vadd.f32 %v2640, %v2662
        %s2665 = sld [smem:[#allocation7 + $0x69]]
        %v2666 = vstv %s2665
        %v2667 = vmul.f32 %v2307, %v2666
        %v2668 = vmul.f32 %v2308, %v2666
        %v2669 = vadd.f32 %v2645, %v2667
        %v2670 = vadd.f32 %v2646, %v2668
        %s2671 = sld [smem:[#allocation7 + $0x8d]]
        %v2672 = vstv %s2671
        %v2673 = vmul.f32 %v2307, %v2672
        %v2674 = vmul.f32 %v2308, %v2672
        %v2675 = vadd.f32 %v2651, %v2673
        %v2676 = vadd.f32 %v2652, %v2674
        %s2677 = sld [smem:[#allocation7 + $0x22]]
        %v2678 = vstv %s2677
        %v2679 = vmul.f32 %v2387, %v2678
        %v2680 = vmul.f32 %v2388, %v2678
        %v2681 = vadd.f32 %v2657, %v2679
        %v2682 = vadd.f32 %v2658, %v2680
        %s2683 = sld [smem:[#allocation7 + $0x46]]
        %v2684 = vstv %s2683
        %v2685 = vmul.f32 %v2387, %v2684
        %v2686 = vmul.f32 %v2388, %v2684
        %v2687 = vadd.f32 %v2663, %v2685
        %v2688 = vadd.f32 %v2664, %v2686
        %s2689 = sld [smem:[#allocation7 + $0x6a]]
        %v2690 = vstv %s2689
        %v2691 = vmul.f32 %v2387, %v2690
        %v2692 = vmul.f32 %v2388, %v2690
        %v2693 = vadd.f32 %v2669, %v2691
        %v2694 = vadd.f32 %v2670, %v2692
        %s2695 = sld [smem:[#allocation7 + $0x8e]]
        %v2696 = vstv %s2695
        %v2697 = vmul.f32 %v2387, %v2696
        %v2698 = vmul.f32 %v2388, %v2696
        %v2699 = vadd.f32 %v2675, %v2697
        %v2700 = vadd.f32 %v2676, %v2698
        %s2701 = sld [smem:[#allocation7 + $0x23]]
        %v2702 = vstv %s2701
        %v2703 = vmul.f32 %v2467, %v2702
        %v2704 = vmul.f32 %v2468, %v2702
        %v2705 = vadd.f32 %v2681, %v2703
        %v2706 = vadd.f32 %v2682, %v2704
        %s2707 = sld [smem:[#allocation7 + $0x47]]
        %v2708 = vstv %s2707
        %v2709 = vmul.f32 %v2467, %v2708
        %v2710 = vmul.f32 %v2468, %v2708
        %v2711 = vadd.f32 %v2687, %v2709
        %v2712 = vadd.f32 %v2688, %v2710
        %s2713 = sld [smem:[#allocation7 + $0x6b]]
        %v2714 = vstv %s2713
        %v2715 = vmul.f32 %v2467, %v2714
        %v2716 = vmul.f32 %v2468, %v2714
        %v2717 = vadd.f32 %v2693, %v2715
        %v2718 = vadd.f32 %v2694, %v2716
        %s2719 = sld [smem:[#allocation7 + $0x8f]]
        %v2720 = vstv %s2719
        %v2721 = vmul.f32 %v2467, %v2720
        %v2722 = vmul.f32 %v2468, %v2720
        %v2723 = vadd.f32 %v2699, %v2721
        %v2724 = vadd.f32 %v2700, %v2722
        %vm2725 = vcmp.gt.f32.partialorder %v2705, 0.0
        %vm2726 = vcmp.gt.f32.partialorder %v2706, 0.0
        %v2727 = vstv %s355
        %v2728 = vmul.f32 %v2727, %v2705
        %v2729 = vmul.f32 %v2727, %v2706
        %v2730 = vsel %vm2725, %v2705, %v2728
        %v2731 = vsel %vm2726, %v2706, %v2729
        %vm2732 = vcmp.gt.f32.partialorder %v2711, 0.0
        %vm2733 = vcmp.gt.f32.partialorder %v2712, 0.0
        %v2734 = vmul.f32 %v2727, %v2711
        %v2735 = vmul.f32 %v2727, %v2712
        %v2736 = vsel %vm2732, %v2711, %v2734
        %v2737 = vsel %vm2733, %v2712, %v2735
        %vm2738 = vcmp.gt.f32.partialorder %v2717, 0.0
        %vm2739 = vcmp.gt.f32.partialorder %v2718, 0.0
        %v2740 = vmul.f32 %v2727, %v2717
        %v2741 = vmul.f32 %v2727, %v2718
        %v2742 = vsel %vm2738, %v2717, %v2740
        %v2743 = vsel %vm2739, %v2718, %v2741
        %vm2744 = vcmp.gt.f32.partialorder %v2723, 0.0
        %vm2745 = vcmp.gt.f32.partialorder %v2724, 0.0
        %v2746 = vmul.f32 %v2727, %v2723
        %v2747 = vmul.f32 %v2727, %v2724
        %v2748 = vsel %vm2744, %v2723, %v2746
        %v2749 = vsel %vm2745, %v2724, %v2747
        %s2750 = sld [smem:[#allocation11]]
        %v2751 = vstv %s2750
        %s2752 = sld [smem:[#allocation11 + $0x1]]
        %v2753 = vstv %s2752
        %s2754 = sld [smem:[#allocation11 + $0x2]]
        %v2755 = vstv %s2754
        %s2756 = sld [smem:[#allocation11 + $0x3]]
        %v2757 = vstv %s2756
        %2758 = vrot.lane.b32.xlu0 %v2730, 1
        %v2759 = vpop.permute.xlu0 %2758
        %2760 = vrot.lane.b32.xlu0 %v2731, 1
        %v2761 = vpop.permute.xlu0 %2760
        %v2762 = vsel %vm382, %v2759, %v2761
        %v2763 = vsel %vm382, %v2761, %v2759
        %2764 = vrot.lane.b32.xlu0 %v2730, 127
        %v2765 = vpop.permute.xlu0 %2764
        %2766 = vrot.lane.b32.xlu0 %v2731, 127
        %v2767 = vpop.permute.xlu0 %2766
        %v2768 = vsel %vm389, %v2765, %v2767
        %v2769 = vsel %vm389, %v2767, %v2765
        %v2770 = vsub.f32 %v2768, %v2763
        %v2771 = vsub.f32 %v2769, %v2762
        %v2774 = vcombine.low %v2770, %v2771
        %v2776 = vunpack.c.l.s4 1966171168
        %v2777 = vunpack.c.0.s8 %v2776
        %v2778 = vlaneseq
        %v2779 = vshrl.u32 %v2778, 7
        %v2780 = vsub.s32 %v2777, %v2779
        %v2781 = vrot.slane %v2774, %v2780
        %v2783 = vunpack.c.l.s4 1966171168
        %v2784 = vunpack.c.0.s8 %v2783
        %v2785 = vlaneseq
        %v2786 = vshrl.u32 %v2785, 7
        %v2787 = vsub.s32 %v2784, %v2786
        %v2788 = vrot.slane %v2781, %v2787
        %v2790 = vmul.f32 %v348, %v2788
        %v2792 = vlaneseq
        %v2793 = vshrl.u32 %v2792, 7
        %v2794 = vsub.s32 0, %v2793
        %v2795 = vrot.slane %v2790, %v2794
        %v2796 = vlaneseq
        %v2797 = vshrl.u32 %v2796, 7
        %v2798 = vsub.s32 1, %v2797
        %v2799 = vrot.slane %v2790, %v2798
        %v2802 = vadd.f32 %v2763, %v2795
        %v2803 = vadd.f32 %v2762, %v2799
        %v2804 = vsub.f32 %v2763, %v2768
        %v2805 = vsub.f32 %v2762, %v2769
        %v2808 = vcombine.low %v2804, %v2805
        %v2810 = vunpack.c.l.s4 1966171168
        %v2811 = vunpack.c.0.s8 %v2810
        %v2812 = vlaneseq
        %v2813 = vshrl.u32 %v2812, 7
        %v2814 = vsub.s32 %v2811, %v2813
        %v2815 = vrot.slane %v2808, %v2814
        %v2817 = vunpack.c.l.s4 1966171168
        %v2818 = vunpack.c.0.s8 %v2817
        %v2819 = vlaneseq
        %v2820 = vshrl.u32 %v2819, 7
        %v2821 = vsub.s32 %v2818, %v2820
        %v2822 = vrot.slane %v2815, %v2821
        %v2824 = vmul.f32 %v350, %v2822
        %v2826 = vlaneseq
        %v2827 = vshrl.u32 %v2826, 7
        %v2828 = vsub.s32 0, %v2827
        %v2829 = vrot.slane %v2824, %v2828
        %v2830 = vlaneseq
        %v2831 = vshrl.u32 %v2830, 7
        %v2832 = vsub.s32 1, %v2831
        %v2833 = vrot.slane %v2824, %v2832
        %v2836 = vadd.f32 %v2768, %v2829
        %v2837 = vadd.f32 %v2769, %v2833
        %2838 = vrot.lane.b32.xlu0 %v2802, 16
        %v2839 = vpop.permute.xlu0 %2838
        %2840 = vrot.lane.b32.xlu0 %v2803, 16
        %v2841 = vpop.permute.xlu0 %2840
        %v2842 = vsel %vm464, %v2839, %v2841
        %v2843 = vsel %vm464, %v2841, %v2839
        %2844 = vrot.lane.b32.xlu0 %v2802, 112
        %v2845 = vpop.permute.xlu0 %2844
        %2846 = vrot.lane.b32.xlu0 %v2803, 112
        %v2847 = vpop.permute.xlu0 %2846
        %v2848 = vsel %vm471, %v2845, %v2847
        %v2849 = vsel %vm471, %v2847, %v2845
        %v2850 = vsub.f32 %v2848, %v2843
        %v2851 = vsub.f32 %v2849, %v2842
        %v2854 = vcombine.low %v2850, %v2851
        %v2856 = vunpack.c.l.s4 1966171168
        %v2857 = vunpack.c.0.s8 %v2856
        %v2858 = vlaneseq
        %v2859 = vshrl.u32 %v2858, 7
        %v2860 = vsub.s32 %v2857, %v2859
        %v2861 = vrot.slane %v2854, %v2860
        %v2863 = vunpack.c.l.s4 1966171168
        %v2864 = vunpack.c.0.s8 %v2863
        %v2865 = vlaneseq
        %v2866 = vshrl.u32 %v2865, 7
        %v2867 = vsub.s32 %v2864, %v2866
        %v2868 = vrot.slane %v2861, %v2867
        %v2870 = vmul.f32 %v352, %v2868
        %v2872 = vlaneseq
        %v2873 = vshrl.u32 %v2872, 7
        %v2874 = vsub.s32 0, %v2873
        %v2875 = vrot.slane %v2870, %v2874
        %v2876 = vlaneseq
        %v2877 = vshrl.u32 %v2876, 7
        %v2878 = vsub.s32 1, %v2877
        %v2879 = vrot.slane %v2870, %v2878
        %v2882 = vadd.f32 %v2843, %v2875
        %v2883 = vadd.f32 %v2842, %v2879
        %v2884 = vsub.f32 %v2843, %v2848
        %v2885 = vsub.f32 %v2842, %v2849
        %v2888 = vcombine.low %v2884, %v2885
        %v2890 = vunpack.c.l.s4 1966171168
        %v2891 = vunpack.c.0.s8 %v2890
        %v2892 = vlaneseq
        %v2893 = vshrl.u32 %v2892, 7
        %v2894 = vsub.s32 %v2891, %v2893
        %v2895 = vrot.slane %v2888, %v2894
        %v2897 = vunpack.c.l.s4 1966171168
        %v2898 = vunpack.c.0.s8 %v2897
        %v2899 = vlaneseq
        %v2900 = vshrl.u32 %v2899, 7
        %v2901 = vsub.s32 %v2898, %v2900
        %v2902 = vrot.slane %v2895, %v2901
        %v2904 = vmul.f32 %v354, %v2902
        %v2906 = vlaneseq
        %v2907 = vshrl.u32 %v2906, 7
        %v2908 = vsub.s32 0, %v2907
        %v2909 = vrot.slane %v2904, %v2908
        %v2910 = vlaneseq
        %v2911 = vshrl.u32 %v2910, 7
        %v2912 = vsub.s32 1, %v2911
        %v2913 = vrot.slane %v2904, %v2912
        %v2916 = vadd.f32 %v2848, %v2909
        %v2917 = vadd.f32 %v2849, %v2913
        %2918 = vrot.lane.b32.xlu0 %v2730, 16
        %v2919 = vpop.permute.xlu0 %2918
        %2920 = vrot.lane.b32.xlu0 %v2731, 16
        %v2921 = vpop.permute.xlu0 %2920
        %v2922 = vsel %vm464, %v2919, %v2921
        %v2923 = vsel %vm464, %v2921, %v2919
        %2924 = vrot.lane.b32.xlu0 %v2730, 112
        %v2925 = vpop.permute.xlu0 %2924
        %2926 = vrot.lane.b32.xlu0 %v2731, 112
        %v2927 = vpop.permute.xlu0 %2926
        %v2928 = vsel %vm471, %v2925, %v2927
        %v2929 = vsel %vm471, %v2927, %v2925
        %v2930 = vsub.f32 %v2928, %v2923
        %v2931 = vsub.f32 %v2929, %v2922
        %v2934 = vcombine.low %v2930, %v2931
        %v2936 = vunpack.c.l.s4 1966171168
        %v2937 = vunpack.c.0.s8 %v2936
        %v2938 = vlaneseq
        %v2939 = vshrl.u32 %v2938, 7
        %v2940 = vsub.s32 %v2937, %v2939
        %v2941 = vrot.slane %v2934, %v2940
        %v2943 = vunpack.c.l.s4 1966171168
        %v2944 = vunpack.c.0.s8 %v2943
        %v2945 = vlaneseq
        %v2946 = vshrl.u32 %v2945, 7
        %v2947 = vsub.s32 %v2944, %v2946
        %v2948 = vrot.slane %v2941, %v2947
        %v2950 = vmul.f32 %v352, %v2948
        %v2952 = vlaneseq
        %v2953 = vshrl.u32 %v2952, 7
        %v2954 = vsub.s32 0, %v2953
        %v2955 = vrot.slane %v2950, %v2954
        %v2956 = vlaneseq
        %v2957 = vshrl.u32 %v2956, 7
        %v2958 = vsub.s32 1, %v2957
        %v2959 = vrot.slane %v2950, %v2958
        %v2962 = vadd.f32 %v2923, %v2955
        %v2963 = vadd.f32 %v2922, %v2959
        %v2964 = vsub.f32 %v2923, %v2928
        %v2965 = vsub.f32 %v2922, %v2929
        %v2968 = vcombine.low %v2964, %v2965
        %v2970 = vunpack.c.l.s4 1966171168
        %v2971 = vunpack.c.0.s8 %v2970
        %v2972 = vlaneseq
        %v2973 = vshrl.u32 %v2972, 7
        %v2974 = vsub.s32 %v2971, %v2973
        %v2975 = vrot.slane %v2968, %v2974
        %v2977 = vunpack.c.l.s4 1966171168
        %v2978 = vunpack.c.0.s8 %v2977
        %v2979 = vlaneseq
        %v2980 = vshrl.u32 %v2979, 7
        %v2981 = vsub.s32 %v2978, %v2980
        %v2982 = vrot.slane %v2975, %v2981
        %v2984 = vmul.f32 %v354, %v2982
        %v2986 = vlaneseq
        %v2987 = vshrl.u32 %v2986, 7
        %v2988 = vsub.s32 0, %v2987
        %v2989 = vrot.slane %v2984, %v2988
        %v2990 = vlaneseq
        %v2991 = vshrl.u32 %v2990, 7
        %v2992 = vsub.s32 1, %v2991
        %v2993 = vrot.slane %v2984, %v2992
        %v2996 = vadd.f32 %v2928, %v2989
        %v2997 = vadd.f32 %v2929, %v2993
        %2998 = vrot.lane.b32.xlu0 %v2836, 16
        %v2999 = vpop.permute.xlu0 %2998
        %3000 = vrot.lane.b32.xlu0 %v2837, 16
        %v3001 = vpop.permute.xlu0 %3000
        %v3002 = vsel %vm464, %v2999, %v3001
        %v3003 = vsel %vm464, %v3001, %v2999
        %3004 = vrot.lane.b32.xlu0 %v2836, 112
        %v3005 = vpop.permute.xlu0 %3004
        %3006 = vrot.lane.b32.xlu0 %v2837, 112
        %v3007 = vpop.permute.xlu0 %3006
        %v3008 = vsel %vm471, %v3005, %v3007
        %v3009 = vsel %vm471, %v3007, %v3005
        %v3010 = vsub.f32 %v3008, %v3003
        %v3011 = vsub.f32 %v3009, %v3002
        %v3014 = vcombine.low %v3010, %v3011
        %v3016 = vunpack.c.l.s4 1966171168
        %v3017 = vunpack.c.0.s8 %v3016
        %v3018 = vlaneseq
        %v3019 = vshrl.u32 %v3018, 7
        %v3020 = vsub.s32 %v3017, %v3019
        %v3021 = vrot.slane %v3014, %v3020
        %v3023 = vunpack.c.l.s4 1966171168
        %v3024 = vunpack.c.0.s8 %v3023
        %v3025 = vlaneseq
        %v3026 = vshrl.u32 %v3025, 7
        %v3027 = vsub.s32 %v3024, %v3026
        %v3028 = vrot.slane %v3021, %v3027
        %v3030 = vmul.f32 %v352, %v3028
        %v3032 = vlaneseq
        %v3033 = vshrl.u32 %v3032, 7
        %v3034 = vsub.s32 0, %v3033
        %v3035 = vrot.slane %v3030, %v3034
        %v3036 = vlaneseq
        %v3037 = vshrl.u32 %v3036, 7
        %v3038 = vsub.s32 1, %v3037
        %v3039 = vrot.slane %v3030, %v3038
        %v3042 = vadd.f32 %v3003, %v3035
        %v3043 = vadd.f32 %v3002, %v3039
        %v3044 = vsub.f32 %v3003, %v3008
        %v3045 = vsub.f32 %v3002, %v3009
        %v3048 = vcombine.low %v3044, %v3045
        %v3050 = vunpack.c.l.s4 1966171168
        %v3051 = vunpack.c.0.s8 %v3050
        %v3052 = vlaneseq
        %v3053 = vshrl.u32 %v3052, 7
        %v3054 = vsub.s32 %v3051, %v3053
        %v3055 = vrot.slane %v3048, %v3054
        %v3057 = vunpack.c.l.s4 1966171168
        %v3058 = vunpack.c.0.s8 %v3057
        %v3059 = vlaneseq
        %v3060 = vshrl.u32 %v3059, 7
        %v3061 = vsub.s32 %v3058, %v3060
        %v3062 = vrot.slane %v3055, %v3061
        %v3064 = vmul.f32 %v354, %v3062
        %v3066 = vlaneseq
        %v3067 = vshrl.u32 %v3066, 7
        %v3068 = vsub.s32 0, %v3067
        %v3069 = vrot.slane %v3064, %v3068
        %v3070 = vlaneseq
        %v3071 = vshrl.u32 %v3070, 7
        %v3072 = vsub.s32 1, %v3071
        %v3073 = vrot.slane %v3064, %v3072
        %v3076 = vadd.f32 %v3008, %v3069
        %v3077 = vadd.f32 %v3009, %v3073
        %s3078 = sld [smem:[#allocation10]]
        %v3079 = vstv %s3078
        %v3080 = vmul.f32 %v2882, %v3079
        %v3081 = vmul.f32 %v2883, %v3079
        %v3082 = vadd.f32 %v2751, %v3080
        %v3083 = vadd.f32 %v2751, %v3081
        %s3084 = sld [smem:[#allocation10 + $0x24]]
        %v3085 = vstv %s3084
        %v3086 = vmul.f32 %v2882, %v3085
        %v3087 = vmul.f32 %v2883, %v3085
        %v3088 = vadd.f32 %v2753, %v3086
        %v3089 = vadd.f32 %v2753, %v3087
        %s3090 = sld [smem:[#allocation10 + $0x48]]
        %v3091 = vstv %s3090
        %v3092 = vmul.f32 %v2882, %v3091
        %v3093 = vmul.f32 %v2883, %v3091
        %v3094 = vadd.f32 %v2755, %v3092
        %v3095 = vadd.f32 %v2755, %v3093
        %s3096 = sld [smem:[#allocation10 + $0x6c]]
        %v3097 = vstv %s3096
        %v3098 = vmul.f32 %v2882, %v3097
        %v3099 = vmul.f32 %v2883, %v3097
        %v3100 = vadd.f32 %v2757, %v3098
        %v3101 = vadd.f32 %v2757, %v3099
        %s3102 = sld [smem:[#allocation10 + $0x1]]
        %v3103 = vstv %s3102
        %v3104 = vmul.f32 %v2962, %v3103
        %v3105 = vmul.f32 %v2963, %v3103
        %v3106 = vadd.f32 %v3082, %v3104
        %v3107 = vadd.f32 %v3083, %v3105
        %s3108 = sld [smem:[#allocation10 + $0x25]]
        %v3109 = vstv %s3108
        %v3110 = vmul.f32 %v2962, %v3109
        %v3111 = vmul.f32 %v2963, %v3109
        %v3112 = vadd.f32 %v3088, %v3110
        %v3113 = vadd.f32 %v3089, %v3111
        %s3114 = sld [smem:[#allocation10 + $0x49]]
        %v3115 = vstv %s3114
        %v3116 = vmul.f32 %v2962, %v3115
        %v3117 = vmul.f32 %v2963, %v3115
        %v3118 = vadd.f32 %v3094, %v3116
        %v3119 = vadd.f32 %v3095, %v3117
        %s3120 = sld [smem:[#allocation10 + $0x6d]]
        %v3121 = vstv %s3120
        %v3122 = vmul.f32 %v2962, %v3121
        %v3123 = vmul.f32 %v2963, %v3121
        %v3124 = vadd.f32 %v3100, %v3122
        %v3125 = vadd.f32 %v3101, %v3123
        %s3126 = sld [smem:[#allocation10 + $0x2]]
        %v3127 = vstv %s3126
        %v3128 = vmul.f32 %v3042, %v3127
        %v3129 = vmul.f32 %v3043, %v3127
        %v3130 = vadd.f32 %v3106, %v3128
        %v3131 = vadd.f32 %v3107, %v3129
        %s3132 = sld [smem:[#allocation10 + $0x26]]
        %v3133 = vstv %s3132
        %v3134 = vmul.f32 %v3042, %v3133
        %v3135 = vmul.f32 %v3043, %v3133
        %v3136 = vadd.f32 %v3112, %v3134
        %v3137 = vadd.f32 %v3113, %v3135
        %s3138 = sld [smem:[#allocation10 + $0x4a]]
        %v3139 = vstv %s3138
        %v3140 = vmul.f32 %v3042, %v3139
        %v3141 = vmul.f32 %v3043, %v3139
        %v3142 = vadd.f32 %v3118, %v3140
        %v3143 = vadd.f32 %v3119, %v3141
        %s3144 = sld [smem:[#allocation10 + $0x6e]]
        %v3145 = vstv %s3144
        %v3146 = vmul.f32 %v3042, %v3145
        %v3147 = vmul.f32 %v3043, %v3145
        %v3148 = vadd.f32 %v3124, %v3146
        %v3149 = vadd.f32 %v3125, %v3147
        %s3150 = sld [smem:[#allocation10 + $0x3]]
        %v3151 = vstv %s3150
        %v3152 = vmul.f32 %v2802, %v3151
        %v3153 = vmul.f32 %v2803, %v3151
        %v3154 = vadd.f32 %v3130, %v3152
        %v3155 = vadd.f32 %v3131, %v3153
        %s3156 = sld [smem:[#allocation10 + $0x27]]
        %v3157 = vstv %s3156
        %v3158 = vmul.f32 %v2802, %v3157
        %v3159 = vmul.f32 %v2803, %v3157
        %v3160 = vadd.f32 %v3136, %v3158
        %v3161 = vadd.f32 %v3137, %v3159
        %s3162 = sld [smem:[#allocation10 + $0x4b]]
        %v3163 = vstv %s3162
        %v3164 = vmul.f32 %v2802, %v3163
        %v3165 = vmul.f32 %v2803, %v3163
        %v3166 = vadd.f32 %v3142, %v3164
        %v3167 = vadd.f32 %v3143, %v3165
        %s3168 = sld [smem:[#allocation10 + $0x6f]]
        %v3169 = vstv %s3168
        %v3170 = vmul.f32 %v2802, %v3169
        %v3171 = vmul.f32 %v2803, %v3169
        %v3172 = vadd.f32 %v3148, %v3170
        %v3173 = vadd.f32 %v3149, %v3171
        %s3174 = sld [smem:[#allocation10 + $0x4]]
        %v3175 = vstv %s3174
        %v3176 = vmul.f32 %v2730, %v3175
        %v3177 = vmul.f32 %v2731, %v3175
        %v3178 = vadd.f32 %v3154, %v3176
        %v3179 = vadd.f32 %v3155, %v3177
        %s3180 = sld [smem:[#allocation10 + $0x28]]
        %v3181 = vstv %s3180
        %v3182 = vmul.f32 %v2730, %v3181
        %v3183 = vmul.f32 %v2731, %v3181
        %v3184 = vadd.f32 %v3160, %v3182
        %v3185 = vadd.f32 %v3161, %v3183
        %s3186 = sld [smem:[#allocation10 + $0x4c]]
        %v3187 = vstv %s3186
        %v3188 = vmul.f32 %v2730, %v3187
        %v3189 = vmul.f32 %v2731, %v3187
        %v3190 = vadd.f32 %v3166, %v3188
        %v3191 = vadd.f32 %v3167, %v3189
        %s3192 = sld [smem:[#allocation10 + $0x70]]
        %v3193 = vstv %s3192
        %v3194 = vmul.f32 %v2730, %v3193
        %v3195 = vmul.f32 %v2731, %v3193
        %v3196 = vadd.f32 %v3172, %v3194
        %v3197 = vadd.f32 %v3173, %v3195
        %s3198 = sld [smem:[#allocation10 + $0x5]]
        %v3199 = vstv %s3198
        %v3200 = vmul.f32 %v2836, %v3199
        %v3201 = vmul.f32 %v2837, %v3199
        %v3202 = vadd.f32 %v3178, %v3200
        %v3203 = vadd.f32 %v3179, %v3201
        %s3204 = sld [smem:[#allocation10 + $0x29]]
        %v3205 = vstv %s3204
        %v3206 = vmul.f32 %v2836, %v3205
        %v3207 = vmul.f32 %v2837, %v3205
        %v3208 = vadd.f32 %v3184, %v3206
        %v3209 = vadd.f32 %v3185, %v3207
        %s3210 = sld [smem:[#allocation10 + $0x4d]]
        %v3211 = vstv %s3210
        %v3212 = vmul.f32 %v2836, %v3211
        %v3213 = vmul.f32 %v2837, %v3211
        %v3214 = vadd.f32 %v3190, %v3212
        %v3215 = vadd.f32 %v3191, %v3213
        %s3216 = sld [smem:[#allocation10 + $0x71]]
        %v3217 = vstv %s3216
        %v3218 = vmul.f32 %v2836, %v3217
        %v3219 = vmul.f32 %v2837, %v3217
        %v3220 = vadd.f32 %v3196, %v3218
        %v3221 = vadd.f32 %v3197, %v3219
        %s3222 = sld [smem:[#allocation10 + $0x6]]
        %v3223 = vstv %s3222
        %v3224 = vmul.f32 %v2916, %v3223
        %v3225 = vmul.f32 %v2917, %v3223
        %v3226 = vadd.f32 %v3202, %v3224
        %v3227 = vadd.f32 %v3203, %v3225
        %s3228 = sld [smem:[#allocation10 + $0x2a]]
        %v3229 = vstv %s3228
        %v3230 = vmul.f32 %v2916, %v3229
        %v3231 = vmul.f32 %v2917, %v3229
        %v3232 = vadd.f32 %v3208, %v3230
        %v3233 = vadd.f32 %v3209, %v3231
        %s3234 = sld [smem:[#allocation10 + $0x4e]]
        %v3235 = vstv %s3234
        %v3236 = vmul.f32 %v2916, %v3235
        %v3237 = vmul.f32 %v2917, %v3235
        %v3238 = vadd.f32 %v3214, %v3236
        %v3239 = vadd.f32 %v3215, %v3237
        %s3240 = sld [smem:[#allocation10 + $0x72]]
        %v3241 = vstv %s3240
        %v3242 = vmul.f32 %v2916, %v3241
        %v3243 = vmul.f32 %v2917, %v3241
        %v3244 = vadd.f32 %v3220, %v3242
        %v3245 = vadd.f32 %v3221, %v3243
        %s3246 = sld [smem:[#allocation10 + $0x7]]
        %v3247 = vstv %s3246
        %v3248 = vmul.f32 %v2996, %v3247
        %v3249 = vmul.f32 %v2997, %v3247
        %v3250 = vadd.f32 %v3226, %v3248
        %v3251 = vadd.f32 %v3227, %v3249
        %s3252 = sld [smem:[#allocation10 + $0x2b]]
        %v3253 = vstv %s3252
        %v3254 = vmul.f32 %v2996, %v3253
        %v3255 = vmul.f32 %v2997, %v3253
        %v3256 = vadd.f32 %v3232, %v3254
        %v3257 = vadd.f32 %v3233, %v3255
        %s3258 = sld [smem:[#allocation10 + $0x4f]]
        %v3259 = vstv %s3258
        %v3260 = vmul.f32 %v2996, %v3259
        %v3261 = vmul.f32 %v2997, %v3259
        %v3262 = vadd.f32 %v3238, %v3260
        %v3263 = vadd.f32 %v3239, %v3261
        %s3264 = sld [smem:[#allocation10 + $0x73]]
        %v3265 = vstv %s3264
        %v3266 = vmul.f32 %v2996, %v3265
        %v3267 = vmul.f32 %v2997, %v3265
        %v3268 = vadd.f32 %v3244, %v3266
        %v3269 = vadd.f32 %v3245, %v3267
        %s3270 = sld [smem:[#allocation10 + $0x8]]
        %v3271 = vstv %s3270
        %v3272 = vmul.f32 %v3076, %v3271
        %v3273 = vmul.f32 %v3077, %v3271
        %v3274 = vadd.f32 %v3250, %v3272
        %v3275 = vadd.f32 %v3251, %v3273
        %s3276 = sld [smem:[#allocation10 + $0x2c]]
        %v3277 = vstv %s3276
        %v3278 = vmul.f32 %v3076, %v3277
        %v3279 = vmul.f32 %v3077, %v3277
        %v3280 = vadd.f32 %v3256, %v3278
        %v3281 = vadd.f32 %v3257, %v3279
        %s3282 = sld [smem:[#allocation10 + $0x50]]
        %v3283 = vstv %s3282
        %v3284 = vmul.f32 %v3076, %v3283
        %v3285 = vmul.f32 %v3077, %v3283
        %v3286 = vadd.f32 %v3262, %v3284
        %v3287 = vadd.f32 %v3263, %v3285
        %s3288 = sld [smem:[#allocation10 + $0x74]]
        %v3289 = vstv %s3288
        %v3290 = vmul.f32 %v3076, %v3289
        %v3291 = vmul.f32 %v3077, %v3289
        %v3292 = vadd.f32 %v3268, %v3290
        %v3293 = vadd.f32 %v3269, %v3291
        %3294 = vrot.lane.b32.xlu0 %v2736, 1
        %v3295 = vpop.permute.xlu0 %3294
        %3296 = vrot.lane.b32.xlu0 %v2737, 1
        %v3297 = vpop.permute.xlu0 %3296
        %v3298 = vsel %vm382, %v3295, %v3297
        %v3299 = vsel %vm382, %v3297, %v3295
        %3300 = vrot.lane.b32.xlu0 %v2736, 127
        %v3301 = vpop.permute.xlu0 %3300
        %3302 = vrot.lane.b32.xlu0 %v2737, 127
        %v3303 = vpop.permute.xlu0 %3302
        %v3304 = vsel %vm389, %v3301, %v3303
        %v3305 = vsel %vm389, %v3303, %v3301
        %v3306 = vsub.f32 %v3304, %v3299
        %v3307 = vsub.f32 %v3305, %v3298
        %v3310 = vcombine.low %v3306, %v3307
        %v3312 = vunpack.c.l.s4 1966171168
        %v3313 = vunpack.c.0.s8 %v3312
        %v3314 = vlaneseq
        %v3315 = vshrl.u32 %v3314, 7
        %v3316 = vsub.s32 %v3313, %v3315
        %v3317 = vrot.slane %v3310, %v3316
        %v3319 = vunpack.c.l.s4 1966171168
        %v3320 = vunpack.c.0.s8 %v3319
        %v3321 = vlaneseq
        %v3322 = vshrl.u32 %v3321, 7
        %v3323 = vsub.s32 %v3320, %v3322
        %v3324 = vrot.slane %v3317, %v3323
        %v3326 = vmul.f32 %v348, %v3324
        %v3328 = vlaneseq
        %v3329 = vshrl.u32 %v3328, 7
        %v3330 = vsub.s32 0, %v3329
        %v3331 = vrot.slane %v3326, %v3330
        %v3332 = vlaneseq
        %v3333 = vshrl.u32 %v3332, 7
        %v3334 = vsub.s32 1, %v3333
        %v3335 = vrot.slane %v3326, %v3334
        %v3338 = vadd.f32 %v3299, %v3331
        %v3339 = vadd.f32 %v3298, %v3335
        %v3340 = vsub.f32 %v3299, %v3304
        %v3341 = vsub.f32 %v3298, %v3305
        %v3344 = vcombine.low %v3340, %v3341
        %v3346 = vunpack.c.l.s4 1966171168
        %v3347 = vunpack.c.0.s8 %v3346
        %v3348 = vlaneseq
        %v3349 = vshrl.u32 %v3348, 7
        %v3350 = vsub.s32 %v3347, %v3349
        %v3351 = vrot.slane %v3344, %v3350
        %v3353 = vunpack.c.l.s4 1966171168
        %v3354 = vunpack.c.0.s8 %v3353
        %v3355 = vlaneseq
        %v3356 = vshrl.u32 %v3355, 7
        %v3357 = vsub.s32 %v3354, %v3356
        %v3358 = vrot.slane %v3351, %v3357
        %v3360 = vmul.f32 %v350, %v3358
        %v3362 = vlaneseq
        %v3363 = vshrl.u32 %v3362, 7
        %v3364 = vsub.s32 0, %v3363
        %v3365 = vrot.slane %v3360, %v3364
        %v3366 = vlaneseq
        %v3367 = vshrl.u32 %v3366, 7
        %v3368 = vsub.s32 1, %v3367
        %v3369 = vrot.slane %v3360, %v3368
        %v3372 = vadd.f32 %v3304, %v3365
        %v3373 = vadd.f32 %v3305, %v3369
        %3374 = vrot.lane.b32.xlu0 %v3338, 16
        %v3375 = vpop.permute.xlu0 %3374
        %3376 = vrot.lane.b32.xlu0 %v3339, 16
        %v3377 = vpop.permute.xlu0 %3376
        %v3378 = vsel %vm464, %v3375, %v3377
        %v3379 = vsel %vm464, %v3377, %v3375
        %3380 = vrot.lane.b32.xlu0 %v3338, 112
        %v3381 = vpop.permute.xlu0 %3380
        %3382 = vrot.lane.b32.xlu0 %v3339, 112
        %v3383 = vpop.permute.xlu0 %3382
        %v3384 = vsel %vm471, %v3381, %v3383
        %v3385 = vsel %vm471, %v3383, %v3381
        %v3386 = vsub.f32 %v3384, %v3379
        %v3387 = vsub.f32 %v3385, %v3378
        %v3390 = vcombine.low %v3386, %v3387
        %v3392 = vunpack.c.l.s4 1966171168
        %v3393 = vunpack.c.0.s8 %v3392
        %v3394 = vlaneseq
        %v3395 = vshrl.u32 %v3394, 7
        %v3396 = vsub.s32 %v3393, %v3395
        %v3397 = vrot.slane %v3390, %v3396
        %v3399 = vunpack.c.l.s4 1966171168
        %v3400 = vunpack.c.0.s8 %v3399
        %v3401 = vlaneseq
        %v3402 = vshrl.u32 %v3401, 7
        %v3403 = vsub.s32 %v3400, %v3402
        %v3404 = vrot.slane %v3397, %v3403
        %v3406 = vmul.f32 %v352, %v3404
        %v3408 = vlaneseq
        %v3409 = vshrl.u32 %v3408, 7
        %v3410 = vsub.s32 0, %v3409
        %v3411 = vrot.slane %v3406, %v3410
        %v3412 = vlaneseq
        %v3413 = vshrl.u32 %v3412, 7
        %v3414 = vsub.s32 1, %v3413
        %v3415 = vrot.slane %v3406, %v3414
        %v3418 = vadd.f32 %v3379, %v3411
        %v3419 = vadd.f32 %v3378, %v3415
        %v3420 = vsub.f32 %v3379, %v3384
        %v3421 = vsub.f32 %v3378, %v3385
        %v3424 = vcombine.low %v3420, %v3421
        %v3426 = vunpack.c.l.s4 1966171168
        %v3427 = vunpack.c.0.s8 %v3426
        %v3428 = vlaneseq
        %v3429 = vshrl.u32 %v3428, 7
        %v3430 = vsub.s32 %v3427, %v3429
        %v3431 = vrot.slane %v3424, %v3430
        %v3433 = vunpack.c.l.s4 1966171168
        %v3434 = vunpack.c.0.s8 %v3433
        %v3435 = vlaneseq
        %v3436 = vshrl.u32 %v3435, 7
        %v3437 = vsub.s32 %v3434, %v3436
        %v3438 = vrot.slane %v3431, %v3437
        %v3440 = vmul.f32 %v354, %v3438
        %v3442 = vlaneseq
        %v3443 = vshrl.u32 %v3442, 7
        %v3444 = vsub.s32 0, %v3443
        %v3445 = vrot.slane %v3440, %v3444
        %v3446 = vlaneseq
        %v3447 = vshrl.u32 %v3446, 7
        %v3448 = vsub.s32 1, %v3447
        %v3449 = vrot.slane %v3440, %v3448
        %v3452 = vadd.f32 %v3384, %v3445
        %v3453 = vadd.f32 %v3385, %v3449
        %3454 = vrot.lane.b32.xlu0 %v2736, 16
        %v3455 = vpop.permute.xlu0 %3454
        %3456 = vrot.lane.b32.xlu0 %v2737, 16
        %v3457 = vpop.permute.xlu0 %3456
        %v3458 = vsel %vm464, %v3455, %v3457
        %v3459 = vsel %vm464, %v3457, %v3455
        %3460 = vrot.lane.b32.xlu0 %v2736, 112
        %v3461 = vpop.permute.xlu0 %3460
        %3462 = vrot.lane.b32.xlu0 %v2737, 112
        %v3463 = vpop.permute.xlu0 %3462
        %v3464 = vsel %vm471, %v3461, %v3463
        %v3465 = vsel %vm471, %v3463, %v3461
        %v3466 = vsub.f32 %v3464, %v3459
        %v3467 = vsub.f32 %v3465, %v3458
        %v3470 = vcombine.low %v3466, %v3467
        %v3472 = vunpack.c.l.s4 1966171168
        %v3473 = vunpack.c.0.s8 %v3472
        %v3474 = vlaneseq
        %v3475 = vshrl.u32 %v3474, 7
        %v3476 = vsub.s32 %v3473, %v3475
        %v3477 = vrot.slane %v3470, %v3476
        %v3479 = vunpack.c.l.s4 1966171168
        %v3480 = vunpack.c.0.s8 %v3479
        %v3481 = vlaneseq
        %v3482 = vshrl.u32 %v3481, 7
        %v3483 = vsub.s32 %v3480, %v3482
        %v3484 = vrot.slane %v3477, %v3483
        %v3486 = vmul.f32 %v352, %v3484
        %v3488 = vlaneseq
        %v3489 = vshrl.u32 %v3488, 7
        %v3490 = vsub.s32 0, %v3489
        %v3491 = vrot.slane %v3486, %v3490
        %v3492 = vlaneseq
        %v3493 = vshrl.u32 %v3492, 7
        %v3494 = vsub.s32 1, %v3493
        %v3495 = vrot.slane %v3486, %v3494
        %v3498 = vadd.f32 %v3459, %v3491
        %v3499 = vadd.f32 %v3458, %v3495
        %v3500 = vsub.f32 %v3459, %v3464
        %v3501 = vsub.f32 %v3458, %v3465
        %v3504 = vcombine.low %v3500, %v3501
        %v3506 = vunpack.c.l.s4 1966171168
        %v3507 = vunpack.c.0.s8 %v3506
        %v3508 = vlaneseq
        %v3509 = vshrl.u32 %v3508, 7
        %v3510 = vsub.s32 %v3507, %v3509
        %v3511 = vrot.slane %v3504, %v3510
        %v3513 = vunpack.c.l.s4 1966171168
        %v3514 = vunpack.c.0.s8 %v3513
        %v3515 = vlaneseq
        %v3516 = vshrl.u32 %v3515, 7
        %v3517 = vsub.s32 %v3514, %v3516
        %v3518 = vrot.slane %v3511, %v3517
        %v3520 = vmul.f32 %v354, %v3518
        %v3522 = vlaneseq
        %v3523 = vshrl.u32 %v3522, 7
        %v3524 = vsub.s32 0, %v3523
        %v3525 = vrot.slane %v3520, %v3524
        %v3526 = vlaneseq
        %v3527 = vshrl.u32 %v3526, 7
        %v3528 = vsub.s32 1, %v3527
        %v3529 = vrot.slane %v3520, %v3528
        %v3532 = vadd.f32 %v3464, %v3525
        %v3533 = vadd.f32 %v3465, %v3529
        %3534 = vrot.lane.b32.xlu0 %v3372, 16
        %v3535 = vpop.permute.xlu0 %3534
        %3536 = vrot.lane.b32.xlu0 %v3373, 16
        %v3537 = vpop.permute.xlu0 %3536
        %v3538 = vsel %vm464, %v3535, %v3537
        %v3539 = vsel %vm464, %v3537, %v3535
        %3540 = vrot.lane.b32.xlu0 %v3372, 112
        %v3541 = vpop.permute.xlu0 %3540
        %3542 = vrot.lane.b32.xlu0 %v3373, 112
        %v3543 = vpop.permute.xlu0 %3542
        %v3544 = vsel %vm471, %v3541, %v3543
        %v3545 = vsel %vm471, %v3543, %v3541
        %v3546 = vsub.f32 %v3544, %v3539
        %v3547 = vsub.f32 %v3545, %v3538
        %v3550 = vcombine.low %v3546, %v3547
        %v3552 = vunpack.c.l.s4 1966171168
        %v3553 = vunpack.c.0.s8 %v3552
        %v3554 = vlaneseq
        %v3555 = vshrl.u32 %v3554, 7
        %v3556 = vsub.s32 %v3553, %v3555
        %v3557 = vrot.slane %v3550, %v3556
        %v3559 = vunpack.c.l.s4 1966171168
        %v3560 = vunpack.c.0.s8 %v3559
        %v3561 = vlaneseq
        %v3562 = vshrl.u32 %v3561, 7
        %v3563 = vsub.s32 %v3560, %v3562
        %v3564 = vrot.slane %v3557, %v3563
        %v3566 = vmul.f32 %v352, %v3564
        %v3568 = vlaneseq
        %v3569 = vshrl.u32 %v3568, 7
        %v3570 = vsub.s32 0, %v3569
        %v3571 = vrot.slane %v3566, %v3570
        %v3572 = vlaneseq
        %v3573 = vshrl.u32 %v3572, 7
        %v3574 = vsub.s32 1, %v3573
        %v3575 = vrot.slane %v3566, %v3574
        %v3578 = vadd.f32 %v3539, %v3571
        %v3579 = vadd.f32 %v3538, %v3575
        %v3580 = vsub.f32 %v3539, %v3544
        %v3581 = vsub.f32 %v3538, %v3545
        %v3584 = vcombine.low %v3580, %v3581
        %v3586 = vunpack.c.l.s4 1966171168
        %v3587 = vunpack.c.0.s8 %v3586
        %v3588 = vlaneseq
        %v3589 = vshrl.u32 %v3588, 7
        %v3590 = vsub.s32 %v3587, %v3589
        %v3591 = vrot.slane %v3584, %v3590
        %v3593 = vunpack.c.l.s4 1966171168
        %v3594 = vunpack.c.0.s8 %v3593
        %v3595 = vlaneseq
        %v3596 = vshrl.u32 %v3595, 7
        %v3597 = vsub.s32 %v3594, %v3596
        %v3598 = vrot.slane %v3591, %v3597
        %v3600 = vmul.f32 %v354, %v3598
        %v3602 = vlaneseq
        %v3603 = vshrl.u32 %v3602, 7
        %v3604 = vsub.s32 0, %v3603
        %v3605 = vrot.slane %v3600, %v3604
        %v3606 = vlaneseq
        %v3607 = vshrl.u32 %v3606, 7
        %v3608 = vsub.s32 1, %v3607
        %v3609 = vrot.slane %v3600, %v3608
        %v3612 = vadd.f32 %v3544, %v3605
        %v3613 = vadd.f32 %v3545, %v3609
        %s3614 = sld [smem:[#allocation10 + $0x9]]
        %v3615 = vstv %s3614
        %v3616 = vmul.f32 %v3418, %v3615
        %v3617 = vmul.f32 %v3419, %v3615
        %v3618 = vadd.f32 %v3274, %v3616
        %v3619 = vadd.f32 %v3275, %v3617
        %s3620 = sld [smem:[#allocation10 + $0x2d]]
        %v3621 = vstv %s3620
        %v3622 = vmul.f32 %v3418, %v3621
        %v3623 = vmul.f32 %v3419, %v3621
        %v3624 = vadd.f32 %v3280, %v3622
        %v3625 = vadd.f32 %v3281, %v3623
        %s3626 = sld [smem:[#allocation10 + $0x51]]
        %v3627 = vstv %s3626
        %v3628 = vmul.f32 %v3418, %v3627
        %v3629 = vmul.f32 %v3419, %v3627
        %v3630 = vadd.f32 %v3286, %v3628
        %v3631 = vadd.f32 %v3287, %v3629
        %s3632 = sld [smem:[#allocation10 + $0x75]]
        %v3633 = vstv %s3632
        %v3634 = vmul.f32 %v3418, %v3633
        %v3635 = vmul.f32 %v3419, %v3633
        %v3636 = vadd.f32 %v3292, %v3634
        %v3637 = vadd.f32 %v3293, %v3635
        %s3638 = sld [smem:[#allocation10 + $0xa]]
        %v3639 = vstv %s3638
        %v3640 = vmul.f32 %v3498, %v3639
        %v3641 = vmul.f32 %v3499, %v3639
        %v3642 = vadd.f32 %v3618, %v3640
        %v3643 = vadd.f32 %v3619, %v3641
        %s3644 = sld [smem:[#allocation10 + $0x2e]]
        %v3645 = vstv %s3644
        %v3646 = vmul.f32 %v3498, %v3645
        %v3647 = vmul.f32 %v3499, %v3645
        %v3648 = vadd.f32 %v3624, %v3646
        %v3649 = vadd.f32 %v3625, %v3647
        %s3650 = sld [smem:[#allocation10 + $0x52]]
        %v3651 = vstv %s3650
        %v3652 = vmul.f32 %v3498, %v3651
        %v3653 = vmul.f32 %v3499, %v3651
        %v3654 = vadd.f32 %v3630, %v3652
        %v3655 = vadd.f32 %v3631, %v3653
        %s3656 = sld [smem:[#allocation10 + $0x76]]
        %v3657 = vstv %s3656
        %v3658 = vmul.f32 %v3498, %v3657
        %v3659 = vmul.f32 %v3499, %v3657
        %v3660 = vadd.f32 %v3636, %v3658
        %v3661 = vadd.f32 %v3637, %v3659
        %s3662 = sld [smem:[#allocation10 + $0xb]]
        %v3663 = vstv %s3662
        %v3664 = vmul.f32 %v3578, %v3663
        %v3665 = vmul.f32 %v3579, %v3663
        %v3666 = vadd.f32 %v3642, %v3664
        %v3667 = vadd.f32 %v3643, %v3665
        %s3668 = sld [smem:[#allocation10 + $0x2f]]
        %v3669 = vstv %s3668
        %v3670 = vmul.f32 %v3578, %v3669
        %v3671 = vmul.f32 %v3579, %v3669
        %v3672 = vadd.f32 %v3648, %v3670
        %v3673 = vadd.f32 %v3649, %v3671
        %s3674 = sld [smem:[#allocation10 + $0x53]]
        %v3675 = vstv %s3674
        %v3676 = vmul.f32 %v3578, %v3675
        %v3677 = vmul.f32 %v3579, %v3675
        %v3678 = vadd.f32 %v3654, %v3676
        %v3679 = vadd.f32 %v3655, %v3677
        %s3680 = sld [smem:[#allocation10 + $0x77]]
        %v3681 = vstv %s3680
        %v3682 = vmul.f32 %v3578, %v3681
        %v3683 = vmul.f32 %v3579, %v3681
        %v3684 = vadd.f32 %v3660, %v3682
        %v3685 = vadd.f32 %v3661, %v3683
        %s3686 = sld [smem:[#allocation10 + $0xc]]
        %v3687 = vstv %s3686
        %v3688 = vmul.f32 %v3338, %v3687
        %v3689 = vmul.f32 %v3339, %v3687
        %v3690 = vadd.f32 %v3666, %v3688
        %v3691 = vadd.f32 %v3667, %v3689
        %s3692 = sld [smem:[#allocation10 + $0x30]]
        %v3693 = vstv %s3692
        %v3694 = vmul.f32 %v3338, %v3693
        %v3695 = vmul.f32 %v3339, %v3693
        %v3696 = vadd.f32 %v3672, %v3694
        %v3697 = vadd.f32 %v3673, %v3695
        %s3698 = sld [smem:[#allocation10 + $0x54]]
        %v3699 = vstv %s3698
        %v3700 = vmul.f32 %v3338, %v3699
        %v3701 = vmul.f32 %v3339, %v3699
        %v3702 = vadd.f32 %v3678, %v3700
        %v3703 = vadd.f32 %v3679, %v3701
        %s3704 = sld [smem:[#allocation10 + $0x78]]
        %v3705 = vstv %s3704
        %v3706 = vmul.f32 %v3338, %v3705
        %v3707 = vmul.f32 %v3339, %v3705
        %v3708 = vadd.f32 %v3684, %v3706
        %v3709 = vadd.f32 %v3685, %v3707
        %s3710 = sld [smem:[#allocation10 + $0xd]]
        %v3711 = vstv %s3710
        %v3712 = vmul.f32 %v2736, %v3711
        %v3713 = vmul.f32 %v2737, %v3711
        %v3714 = vadd.f32 %v3690, %v3712
        %v3715 = vadd.f32 %v3691, %v3713
        %s3716 = sld [smem:[#allocation10 + $0x31]]
        %v3717 = vstv %s3716
        %v3718 = vmul.f32 %v2736, %v3717
        %v3719 = vmul.f32 %v2737, %v3717
        %v3720 = vadd.f32 %v3696, %v3718
        %v3721 = vadd.f32 %v3697, %v3719
        %s3722 = sld [smem:[#allocation10 + $0x55]]
        %v3723 = vstv %s3722
        %v3724 = vmul.f32 %v2736, %v3723
        %v3725 = vmul.f32 %v2737, %v3723
        %v3726 = vadd.f32 %v3702, %v3724
        %v3727 = vadd.f32 %v3703, %v3725
        %s3728 = sld [smem:[#allocation10 + $0x79]]
        %v3729 = vstv %s3728
        %v3730 = vmul.f32 %v2736, %v3729
        %v3731 = vmul.f32 %v2737, %v3729
        %v3732 = vadd.f32 %v3708, %v3730
        %v3733 = vadd.f32 %v3709, %v3731
        %s3734 = sld [smem:[#allocation10 + $0xe]]
        %v3735 = vstv %s3734
        %v3736 = vmul.f32 %v3372, %v3735
        %v3737 = vmul.f32 %v3373, %v3735
        %v3738 = vadd.f32 %v3714, %v3736
        %v3739 = vadd.f32 %v3715, %v3737
        %s3740 = sld [smem:[#allocation10 + $0x32]]
        %v3741 = vstv %s3740
        %v3742 = vmul.f32 %v3372, %v3741
        %v3743 = vmul.f32 %v3373, %v3741
        %v3744 = vadd.f32 %v3720, %v3742
        %v3745 = vadd.f32 %v3721, %v3743
        %s3746 = sld [smem:[#allocation10 + $0x56]]
        %v3747 = vstv %s3746
        %v3748 = vmul.f32 %v3372, %v3747
        %v3749 = vmul.f32 %v3373, %v3747
        %v3750 = vadd.f32 %v3726, %v3748
        %v3751 = vadd.f32 %v3727, %v3749
        %s3752 = sld [smem:[#allocation10 + $0x7a]]
        %v3753 = vstv %s3752
        %v3754 = vmul.f32 %v3372, %v3753
        %v3755 = vmul.f32 %v3373, %v3753
        %v3756 = vadd.f32 %v3732, %v3754
        %v3757 = vadd.f32 %v3733, %v3755
        %s3758 = sld [smem:[#allocation10 + $0xf]]
        %v3759 = vstv %s3758
        %v3760 = vmul.f32 %v3452, %v3759
        %v3761 = vmul.f32 %v3453, %v3759
        %v3762 = vadd.f32 %v3738, %v3760
        %v3763 = vadd.f32 %v3739, %v3761
        %s3764 = sld [smem:[#allocation10 + $0x33]]
        %v3765 = vstv %s3764
        %v3766 = vmul.f32 %v3452, %v3765
        %v3767 = vmul.f32 %v3453, %v3765
        %v3768 = vadd.f32 %v3744, %v3766
        %v3769 = vadd.f32 %v3745, %v3767
        %s3770 = sld [smem:[#allocation10 + $0x57]]
        %v3771 = vstv %s3770
        %v3772 = vmul.f32 %v3452, %v3771
        %v3773 = vmul.f32 %v3453, %v3771
        %v3774 = vadd.f32 %v3750, %v3772
        %v3775 = vadd.f32 %v3751, %v3773
        %s3776 = sld [smem:[#allocation10 + $0x7b]]
        %v3777 = vstv %s3776
        %v3778 = vmul.f32 %v3452, %v3777
        %v3779 = vmul.f32 %v3453, %v3777
        %v3780 = vadd.f32 %v3756, %v3778
        %v3781 = vadd.f32 %v3757, %v3779
        %s3782 = sld [smem:[#allocation10 + $0x10]]
        %v3783 = vstv %s3782
        %v3784 = vmul.f32 %v3532, %v3783
        %v3785 = vmul.f32 %v3533, %v3783
        %v3786 = vadd.f32 %v3762, %v3784
        %v3787 = vadd.f32 %v3763, %v3785
        %s3788 = sld [smem:[#allocation10 + $0x34]]
        %v3789 = vstv %s3788
        %v3790 = vmul.f32 %v3532, %v3789
        %v3791 = vmul.f32 %v3533, %v3789
        %v3792 = vadd.f32 %v3768, %v3790
        %v3793 = vadd.f32 %v3769, %v3791
        %s3794 = sld [smem:[#allocation10 + $0x58]]
        %v3795 = vstv %s3794
        %v3796 = vmul.f32 %v3532, %v3795
        %v3797 = vmul.f32 %v3533, %v3795
        %v3798 = vadd.f32 %v3774, %v3796
        %v3799 = vadd.f32 %v3775, %v3797
        %s3800 = sld [smem:[#allocation10 + $0x7c]]
        %v3801 = vstv %s3800
        %v3802 = vmul.f32 %v3532, %v3801
        %v3803 = vmul.f32 %v3533, %v3801
        %v3804 = vadd.f32 %v3780, %v3802
        %v3805 = vadd.f32 %v3781, %v3803
        %s3806 = sld [smem:[#allocation10 + $0x11]]
        %v3807 = vstv %s3806
        %v3808 = vmul.f32 %v3612, %v3807
        %v3809 = vmul.f32 %v3613, %v3807
        %v3810 = vadd.f32 %v3786, %v3808
        %v3811 = vadd.f32 %v3787, %v3809
        %s3812 = sld [smem:[#allocation10 + $0x35]]
        %v3813 = vstv %s3812
        %v3814 = vmul.f32 %v3612, %v3813
        %v3815 = vmul.f32 %v3613, %v3813
        %v3816 = vadd.f32 %v3792, %v3814
        %v3817 = vadd.f32 %v3793, %v3815
        %s3818 = sld [smem:[#allocation10 + $0x59]]
        %v3819 = vstv %s3818
        %v3820 = vmul.f32 %v3612, %v3819
        %v3821 = vmul.f32 %v3613, %v3819
        %v3822 = vadd.f32 %v3798, %v3820
        %v3823 = vadd.f32 %v3799, %v3821
        %s3824 = sld [smem:[#allocation10 + $0x7d]]
        %v3825 = vstv %s3824
        %v3826 = vmul.f32 %v3612, %v3825
        %v3827 = vmul.f32 %v3613, %v3825
        %v3828 = vadd.f32 %v3804, %v3826
        %v3829 = vadd.f32 %v3805, %v3827
        %3830 = vrot.lane.b32.xlu0 %v2742, 1
        %v3831 = vpop.permute.xlu0 %3830
        %3832 = vrot.lane.b32.xlu0 %v2743, 1
        %v3833 = vpop.permute.xlu0 %3832
        %v3834 = vsel %vm382, %v3831, %v3833
        %v3835 = vsel %vm382, %v3833, %v3831
        %3836 = vrot.lane.b32.xlu0 %v2742, 127
        %v3837 = vpop.permute.xlu0 %3836
        %3838 = vrot.lane.b32.xlu0 %v2743, 127
        %v3839 = vpop.permute.xlu0 %3838
        %v3840 = vsel %vm389, %v3837, %v3839
        %v3841 = vsel %vm389, %v3839, %v3837
        %v3842 = vsub.f32 %v3840, %v3835
        %v3843 = vsub.f32 %v3841, %v3834
        %v3846 = vcombine.low %v3842, %v3843
        %v3848 = vunpack.c.l.s4 1966171168
        %v3849 = vunpack.c.0.s8 %v3848
        %v3850 = vlaneseq
        %v3851 = vshrl.u32 %v3850, 7
        %v3852 = vsub.s32 %v3849, %v3851
        %v3853 = vrot.slane %v3846, %v3852
        %v3855 = vunpack.c.l.s4 1966171168
        %v3856 = vunpack.c.0.s8 %v3855
        %v3857 = vlaneseq
        %v3858 = vshrl.u32 %v3857, 7
        %v3859 = vsub.s32 %v3856, %v3858
        %v3860 = vrot.slane %v3853, %v3859
        %v3862 = vmul.f32 %v348, %v3860
        %v3864 = vlaneseq
        %v3865 = vshrl.u32 %v3864, 7
        %v3866 = vsub.s32 0, %v3865
        %v3867 = vrot.slane %v3862, %v3866
        %v3868 = vlaneseq
        %v3869 = vshrl.u32 %v3868, 7
        %v3870 = vsub.s32 1, %v3869
        %v3871 = vrot.slane %v3862, %v3870
        %v3874 = vadd.f32 %v3835, %v3867
        %v3875 = vadd.f32 %v3834, %v3871
        %v3876 = vsub.f32 %v3835, %v3840
        %v3877 = vsub.f32 %v3834, %v3841
        %v3880 = vcombine.low %v3876, %v3877
        %v3882 = vunpack.c.l.s4 1966171168
        %v3883 = vunpack.c.0.s8 %v3882
        %v3884 = vlaneseq
        %v3885 = vshrl.u32 %v3884, 7
        %v3886 = vsub.s32 %v3883, %v3885
        %v3887 = vrot.slane %v3880, %v3886
        %v3889 = vunpack.c.l.s4 1966171168
        %v3890 = vunpack.c.0.s8 %v3889
        %v3891 = vlaneseq
        %v3892 = vshrl.u32 %v3891, 7
        %v3893 = vsub.s32 %v3890, %v3892
        %v3894 = vrot.slane %v3887, %v3893
        %v3896 = vmul.f32 %v350, %v3894
        %v3898 = vlaneseq
        %v3899 = vshrl.u32 %v3898, 7
        %v3900 = vsub.s32 0, %v3899
        %v3901 = vrot.slane %v3896, %v3900
        %v3902 = vlaneseq
        %v3903 = vshrl.u32 %v3902, 7
        %v3904 = vsub.s32 1, %v3903
        %v3905 = vrot.slane %v3896, %v3904
        %v3908 = vadd.f32 %v3840, %v3901
        %v3909 = vadd.f32 %v3841, %v3905
        %3910 = vrot.lane.b32.xlu0 %v3874, 16
        %v3911 = vpop.permute.xlu0 %3910
        %3912 = vrot.lane.b32.xlu0 %v3875, 16
        %v3913 = vpop.permute.xlu0 %3912
        %v3914 = vsel %vm464, %v3911, %v3913
        %v3915 = vsel %vm464, %v3913, %v3911
        %3916 = vrot.lane.b32.xlu0 %v3874, 112
        %v3917 = vpop.permute.xlu0 %3916
        %3918 = vrot.lane.b32.xlu0 %v3875, 112
        %v3919 = vpop.permute.xlu0 %3918
        %v3920 = vsel %vm471, %v3917, %v3919
        %v3921 = vsel %vm471, %v3919, %v3917
        %v3922 = vsub.f32 %v3920, %v3915
        %v3923 = vsub.f32 %v3921, %v3914
        %v3926 = vcombine.low %v3922, %v3923
        %v3928 = vunpack.c.l.s4 1966171168
        %v3929 = vunpack.c.0.s8 %v3928
        %v3930 = vlaneseq
        %v3931 = vshrl.u32 %v3930, 7
        %v3932 = vsub.s32 %v3929, %v3931
        %v3933 = vrot.slane %v3926, %v3932
        %v3935 = vunpack.c.l.s4 1966171168
        %v3936 = vunpack.c.0.s8 %v3935
        %v3937 = vlaneseq
        %v3938 = vshrl.u32 %v3937, 7
        %v3939 = vsub.s32 %v3936, %v3938
        %v3940 = vrot.slane %v3933, %v3939
        %v3942 = vmul.f32 %v352, %v3940
        %v3944 = vlaneseq
        %v3945 = vshrl.u32 %v3944, 7
        %v3946 = vsub.s32 0, %v3945
        %v3947 = vrot.slane %v3942, %v3946
        %v3948 = vlaneseq
        %v3949 = vshrl.u32 %v3948, 7
        %v3950 = vsub.s32 1, %v3949
        %v3951 = vrot.slane %v3942, %v3950
        %v3954 = vadd.f32 %v3915, %v3947
        %v3955 = vadd.f32 %v3914, %v3951
        %v3956 = vsub.f32 %v3915, %v3920
        %v3957 = vsub.f32 %v3914, %v3921
        %v3960 = vcombine.low %v3956, %v3957
        %v3962 = vunpack.c.l.s4 1966171168
        %v3963 = vunpack.c.0.s8 %v3962
        %v3964 = vlaneseq
        %v3965 = vshrl.u32 %v3964, 7
        %v3966 = vsub.s32 %v3963, %v3965
        %v3967 = vrot.slane %v3960, %v3966
        %v3969 = vunpack.c.l.s4 1966171168
        %v3970 = vunpack.c.0.s8 %v3969
        %v3971 = vlaneseq
        %v3972 = vshrl.u32 %v3971, 7
        %v3973 = vsub.s32 %v3970, %v3972
        %v3974 = vrot.slane %v3967, %v3973
        %v3976 = vmul.f32 %v354, %v3974
        %v3978 = vlaneseq
        %v3979 = vshrl.u32 %v3978, 7
        %v3980 = vsub.s32 0, %v3979
        %v3981 = vrot.slane %v3976, %v3980
        %v3982 = vlaneseq
        %v3983 = vshrl.u32 %v3982, 7
        %v3984 = vsub.s32 1, %v3983
        %v3985 = vrot.slane %v3976, %v3984
        %v3988 = vadd.f32 %v3920, %v3981
        %v3989 = vadd.f32 %v3921, %v3985
        %3990 = vrot.lane.b32.xlu0 %v2742, 16
        %v3991 = vpop.permute.xlu0 %3990
        %3992 = vrot.lane.b32.xlu0 %v2743, 16
        %v3993 = vpop.permute.xlu0 %3992
        %v3994 = vsel %vm464, %v3991, %v3993
        %v3995 = vsel %vm464, %v3993, %v3991
        %3996 = vrot.lane.b32.xlu0 %v2742, 112
        %v3997 = vpop.permute.xlu0 %3996
        %3998 = vrot.lane.b32.xlu0 %v2743, 112
        %v3999 = vpop.permute.xlu0 %3998
        %v4000 = vsel %vm471, %v3997, %v3999
        %v4001 = vsel %vm471, %v3999, %v3997
        %v4002 = vsub.f32 %v4000, %v3995
        %v4003 = vsub.f32 %v4001, %v3994
        %v4006 = vcombine.low %v4002, %v4003
        %v4008 = vunpack.c.l.s4 1966171168
        %v4009 = vunpack.c.0.s8 %v4008
        %v4010 = vlaneseq
        %v4011 = vshrl.u32 %v4010, 7
        %v4012 = vsub.s32 %v4009, %v4011
        %v4013 = vrot.slane %v4006, %v4012
        %v4015 = vunpack.c.l.s4 1966171168
        %v4016 = vunpack.c.0.s8 %v4015
        %v4017 = vlaneseq
        %v4018 = vshrl.u32 %v4017, 7
        %v4019 = vsub.s32 %v4016, %v4018
        %v4020 = vrot.slane %v4013, %v4019
        %v4022 = vmul.f32 %v352, %v4020
        %v4024 = vlaneseq
        %v4025 = vshrl.u32 %v4024, 7
        %v4026 = vsub.s32 0, %v4025
        %v4027 = vrot.slane %v4022, %v4026
        %v4028 = vlaneseq
        %v4029 = vshrl.u32 %v4028, 7
        %v4030 = vsub.s32 1, %v4029
        %v4031 = vrot.slane %v4022, %v4030
        %v4034 = vadd.f32 %v3995, %v4027
        %v4035 = vadd.f32 %v3994, %v4031
        %v4036 = vsub.f32 %v3995, %v4000
        %v4037 = vsub.f32 %v3994, %v4001
        %v4040 = vcombine.low %v4036, %v4037
        %v4042 = vunpack.c.l.s4 1966171168
        %v4043 = vunpack.c.0.s8 %v4042
        %v4044 = vlaneseq
        %v4045 = vshrl.u32 %v4044, 7
        %v4046 = vsub.s32 %v4043, %v4045
        %v4047 = vrot.slane %v4040, %v4046
        %v4049 = vunpack.c.l.s4 1966171168
        %v4050 = vunpack.c.0.s8 %v4049
        %v4051 = vlaneseq
        %v4052 = vshrl.u32 %v4051, 7
        %v4053 = vsub.s32 %v4050, %v4052
        %v4054 = vrot.slane %v4047, %v4053
        %v4056 = vmul.f32 %v354, %v4054
        %v4058 = vlaneseq
        %v4059 = vshrl.u32 %v4058, 7
        %v4060 = vsub.s32 0, %v4059
        %v4061 = vrot.slane %v4056, %v4060
        %v4062 = vlaneseq
        %v4063 = vshrl.u32 %v4062, 7
        %v4064 = vsub.s32 1, %v4063
        %v4065 = vrot.slane %v4056, %v4064
        %v4068 = vadd.f32 %v4000, %v4061
        %v4069 = vadd.f32 %v4001, %v4065
        %4070 = vrot.lane.b32.xlu0 %v3908, 16
        %v4071 = vpop.permute.xlu0 %4070
        %4072 = vrot.lane.b32.xlu0 %v3909, 16
        %v4073 = vpop.permute.xlu0 %4072
        %v4074 = vsel %vm464, %v4071, %v4073
        %v4075 = vsel %vm464, %v4073, %v4071
        %4076 = vrot.lane.b32.xlu0 %v3908, 112
        %v4077 = vpop.permute.xlu0 %4076
        %4078 = vrot.lane.b32.xlu0 %v3909, 112
        %v4079 = vpop.permute.xlu0 %4078
        %v4080 = vsel %vm471, %v4077, %v4079
        %v4081 = vsel %vm471, %v4079, %v4077
        %v4082 = vsub.f32 %v4080, %v4075
        %v4083 = vsub.f32 %v4081, %v4074
        %v4086 = vcombine.low %v4082, %v4083
        %v4088 = vunpack.c.l.s4 1966171168
        %v4089 = vunpack.c.0.s8 %v4088
        %v4090 = vlaneseq
        %v4091 = vshrl.u32 %v4090, 7
        %v4092 = vsub.s32 %v4089, %v4091
        %v4093 = vrot.slane %v4086, %v4092
        %v4095 = vunpack.c.l.s4 1966171168
        %v4096 = vunpack.c.0.s8 %v4095
        %v4097 = vlaneseq
        %v4098 = vshrl.u32 %v4097, 7
        %v4099 = vsub.s32 %v4096, %v4098
        %v4100 = vrot.slane %v4093, %v4099
        %v4102 = vmul.f32 %v352, %v4100
        %v4104 = vlaneseq
        %v4105 = vshrl.u32 %v4104, 7
        %v4106 = vsub.s32 0, %v4105
        %v4107 = vrot.slane %v4102, %v4106
        %v4108 = vlaneseq
        %v4109 = vshrl.u32 %v4108, 7
        %v4110 = vsub.s32 1, %v4109
        %v4111 = vrot.slane %v4102, %v4110
        %v4114 = vadd.f32 %v4075, %v4107
        %v4115 = vadd.f32 %v4074, %v4111
        %v4116 = vsub.f32 %v4075, %v4080
        %v4117 = vsub.f32 %v4074, %v4081
        %v4120 = vcombine.low %v4116, %v4117
        %v4122 = vunpack.c.l.s4 1966171168
        %v4123 = vunpack.c.0.s8 %v4122
        %v4124 = vlaneseq
        %v4125 = vshrl.u32 %v4124, 7
        %v4126 = vsub.s32 %v4123, %v4125
        %v4127 = vrot.slane %v4120, %v4126
        %v4129 = vunpack.c.l.s4 1966171168
        %v4130 = vunpack.c.0.s8 %v4129
        %v4131 = vlaneseq
        %v4132 = vshrl.u32 %v4131, 7
        %v4133 = vsub.s32 %v4130, %v4132
        %v4134 = vrot.slane %v4127, %v4133
        %v4136 = vmul.f32 %v354, %v4134
        %v4138 = vlaneseq
        %v4139 = vshrl.u32 %v4138, 7
        %v4140 = vsub.s32 0, %v4139
        %v4141 = vrot.slane %v4136, %v4140
        %v4142 = vlaneseq
        %v4143 = vshrl.u32 %v4142, 7
        %v4144 = vsub.s32 1, %v4143
        %v4145 = vrot.slane %v4136, %v4144
        %v4148 = vadd.f32 %v4080, %v4141
        %v4149 = vadd.f32 %v4081, %v4145
        %s4150 = sld [smem:[#allocation10 + $0x12]]
        %v4151 = vstv %s4150
        %v4152 = vmul.f32 %v3954, %v4151
        %v4153 = vmul.f32 %v3955, %v4151
        %v4154 = vadd.f32 %v3810, %v4152
        %v4155 = vadd.f32 %v3811, %v4153
        %s4156 = sld [smem:[#allocation10 + $0x36]]
        %v4157 = vstv %s4156
        %v4158 = vmul.f32 %v3954, %v4157
        %v4159 = vmul.f32 %v3955, %v4157
        %v4160 = vadd.f32 %v3816, %v4158
        %v4161 = vadd.f32 %v3817, %v4159
        %s4162 = sld [smem:[#allocation10 + $0x5a]]
        %v4163 = vstv %s4162
        %v4164 = vmul.f32 %v3954, %v4163
        %v4165 = vmul.f32 %v3955, %v4163
        %v4166 = vadd.f32 %v3822, %v4164
        %v4167 = vadd.f32 %v3823, %v4165
        %s4168 = sld [smem:[#allocation10 + $0x7e]]
        %v4169 = vstv %s4168
        %v4170 = vmul.f32 %v3954, %v4169
        %v4171 = vmul.f32 %v3955, %v4169
        %v4172 = vadd.f32 %v3828, %v4170
        %v4173 = vadd.f32 %v3829, %v4171
        %s4174 = sld [smem:[#allocation10 + $0x13]]
        %v4175 = vstv %s4174
        %v4176 = vmul.f32 %v4034, %v4175
        %v4177 = vmul.f32 %v4035, %v4175
        %v4178 = vadd.f32 %v4154, %v4176
        %v4179 = vadd.f32 %v4155, %v4177
        %s4180 = sld [smem:[#allocation10 + $0x37]]
        %v4181 = vstv %s4180
        %v4182 = vmul.f32 %v4034, %v4181
        %v4183 = vmul.f32 %v4035, %v4181
        %v4184 = vadd.f32 %v4160, %v4182
        %v4185 = vadd.f32 %v4161, %v4183
        %s4186 = sld [smem:[#allocation10 + $0x5b]]
        %v4187 = vstv %s4186
        %v4188 = vmul.f32 %v4034, %v4187
        %v4189 = vmul.f32 %v4035, %v4187
        %v4190 = vadd.f32 %v4166, %v4188
        %v4191 = vadd.f32 %v4167, %v4189
        %s4192 = sld [smem:[#allocation10 + $0x7f]]
        %v4193 = vstv %s4192
        %v4194 = vmul.f32 %v4034, %v4193
        %v4195 = vmul.f32 %v4035, %v4193
        %v4196 = vadd.f32 %v4172, %v4194
        %v4197 = vadd.f32 %v4173, %v4195
        %s4198 = sld [smem:[#allocation10 + $0x14]]
        %v4199 = vstv %s4198
        %v4200 = vmul.f32 %v4114, %v4199
        %v4201 = vmul.f32 %v4115, %v4199
        %v4202 = vadd.f32 %v4178, %v4200
        %v4203 = vadd.f32 %v4179, %v4201
        %s4204 = sld [smem:[#allocation10 + $0x38]]
        %v4205 = vstv %s4204
        %v4206 = vmul.f32 %v4114, %v4205
        %v4207 = vmul.f32 %v4115, %v4205
        %v4208 = vadd.f32 %v4184, %v4206
        %v4209 = vadd.f32 %v4185, %v4207
        %s4210 = sld [smem:[#allocation10 + $0x5c]]
        %v4211 = vstv %s4210
        %v4212 = vmul.f32 %v4114, %v4211
        %v4213 = vmul.f32 %v4115, %v4211
        %v4214 = vadd.f32 %v4190, %v4212
        %v4215 = vadd.f32 %v4191, %v4213
        %s4216 = sld [smem:[#allocation10 + $0x80]]
        %v4217 = vstv %s4216
        %v4218 = vmul.f32 %v4114, %v4217
        %v4219 = vmul.f32 %v4115, %v4217
        %v4220 = vadd.f32 %v4196, %v4218
        %v4221 = vadd.f32 %v4197, %v4219
        %s4222 = sld [smem:[#allocation10 + $0x15]]
        %v4223 = vstv %s4222
        %v4224 = vmul.f32 %v3874, %v4223
        %v4225 = vmul.f32 %v3875, %v4223
        %v4226 = vadd.f32 %v4202, %v4224
        %v4227 = vadd.f32 %v4203, %v4225
        %s4228 = sld [smem:[#allocation10 + $0x39]]
        %v4229 = vstv %s4228
        %v4230 = vmul.f32 %v3874, %v4229
        %v4231 = vmul.f32 %v3875, %v4229
        %v4232 = vadd.f32 %v4208, %v4230
        %v4233 = vadd.f32 %v4209, %v4231
        %s4234 = sld [smem:[#allocation10 + $0x5d]]
        %v4235 = vstv %s4234
        %v4236 = vmul.f32 %v3874, %v4235
        %v4237 = vmul.f32 %v3875, %v4235
        %v4238 = vadd.f32 %v4214, %v4236
        %v4239 = vadd.f32 %v4215, %v4237
        %s4240 = sld [smem:[#allocation10 + $0x81]]
        %v4241 = vstv %s4240
        %v4242 = vmul.f32 %v3874, %v4241
        %v4243 = vmul.f32 %v3875, %v4241
        %v4244 = vadd.f32 %v4220, %v4242
        %v4245 = vadd.f32 %v4221, %v4243
        %s4246 = sld [smem:[#allocation10 + $0x16]]
        %v4247 = vstv %s4246
        %v4248 = vmul.f32 %v2742, %v4247
        %v4249 = vmul.f32 %v2743, %v4247
        %v4250 = vadd.f32 %v4226, %v4248
        %v4251 = vadd.f32 %v4227, %v4249
        %s4252 = sld [smem:[#allocation10 + $0x3a]]
        %v4253 = vstv %s4252
        %v4254 = vmul.f32 %v2742, %v4253
        %v4255 = vmul.f32 %v2743, %v4253
        %v4256 = vadd.f32 %v4232, %v4254
        %v4257 = vadd.f32 %v4233, %v4255
        %s4258 = sld [smem:[#allocation10 + $0x5e]]
        %v4259 = vstv %s4258
        %v4260 = vmul.f32 %v2742, %v4259
        %v4261 = vmul.f32 %v2743, %v4259
        %v4262 = vadd.f32 %v4238, %v4260
        %v4263 = vadd.f32 %v4239, %v4261
        %s4264 = sld [smem:[#allocation10 + $0x82]]
        %v4265 = vstv %s4264
        %v4266 = vmul.f32 %v2742, %v4265
        %v4267 = vmul.f32 %v2743, %v4265
        %v4268 = vadd.f32 %v4244, %v4266
        %v4269 = vadd.f32 %v4245, %v4267
        %s4270 = sld [smem:[#allocation10 + $0x17]]
        %v4271 = vstv %s4270
        %v4272 = vmul.f32 %v3908, %v4271
        %v4273 = vmul.f32 %v3909, %v4271
        %v4274 = vadd.f32 %v4250, %v4272
        %v4275 = vadd.f32 %v4251, %v4273
        %s4276 = sld [smem:[#allocation10 + $0x3b]]
        %v4277 = vstv %s4276
        %v4278 = vmul.f32 %v3908, %v4277
        %v4279 = vmul.f32 %v3909, %v4277
        %v4280 = vadd.f32 %v4256, %v4278
        %v4281 = vadd.f32 %v4257, %v4279
        %s4282 = sld [smem:[#allocation10 + $0x5f]]
        %v4283 = vstv %s4282
        %v4284 = vmul.f32 %v3908, %v4283
        %v4285 = vmul.f32 %v3909, %v4283
        %v4286 = vadd.f32 %v4262, %v4284
        %v4287 = vadd.f32 %v4263, %v4285
        %s4288 = sld [smem:[#allocation10 + $0x83]]
        %v4289 = vstv %s4288
        %v4290 = vmul.f32 %v3908, %v4289
        %v4291 = vmul.f32 %v3909, %v4289
        %v4292 = vadd.f32 %v4268, %v4290
        %v4293 = vadd.f32 %v4269, %v4291
        %s4294 = sld [smem:[#allocation10 + $0x18]]
        %v4295 = vstv %s4294
        %v4296 = vmul.f32 %v3988, %v4295
        %v4297 = vmul.f32 %v3989, %v4295
        %v4298 = vadd.f32 %v4274, %v4296
        %v4299 = vadd.f32 %v4275, %v4297
        %s4300 = sld [smem:[#allocation10 + $0x3c]]
        %v4301 = vstv %s4300
        %v4302 = vmul.f32 %v3988, %v4301
        %v4303 = vmul.f32 %v3989, %v4301
        %v4304 = vadd.f32 %v4280, %v4302
        %v4305 = vadd.f32 %v4281, %v4303
        %s4306 = sld [smem:[#allocation10 + $0x60]]
        %v4307 = vstv %s4306
        %v4308 = vmul.f32 %v3988, %v4307
        %v4309 = vmul.f32 %v3989, %v4307
        %v4310 = vadd.f32 %v4286, %v4308
        %v4311 = vadd.f32 %v4287, %v4309
        %s4312 = sld [smem:[#allocation10 + $0x84]]
        %v4313 = vstv %s4312
        %v4314 = vmul.f32 %v3988, %v4313
        %v4315 = vmul.f32 %v3989, %v4313
        %v4316 = vadd.f32 %v4292, %v4314
        %v4317 = vadd.f32 %v4293, %v4315
        %s4318 = sld [smem:[#allocation10 + $0x19]]
        %v4319 = vstv %s4318
        %v4320 = vmul.f32 %v4068, %v4319
        %v4321 = vmul.f32 %v4069, %v4319
        %v4322 = vadd.f32 %v4298, %v4320
        %v4323 = vadd.f32 %v4299, %v4321
        %s4324 = sld [smem:[#allocation10 + $0x3d]]
        %v4325 = vstv %s4324
        %v4326 = vmul.f32 %v4068, %v4325
        %v4327 = vmul.f32 %v4069, %v4325
        %v4328 = vadd.f32 %v4304, %v4326
        %v4329 = vadd.f32 %v4305, %v4327
        %s4330 = sld [smem:[#allocation10 + $0x61]]
        %v4331 = vstv %s4330
        %v4332 = vmul.f32 %v4068, %v4331
        %v4333 = vmul.f32 %v4069, %v4331
        %v4334 = vadd.f32 %v4310, %v4332
        %v4335 = vadd.f32 %v4311, %v4333
        %s4336 = sld [smem:[#allocation10 + $0x85]]
        %v4337 = vstv %s4336
        %v4338 = vmul.f32 %v4068, %v4337
        %v4339 = vmul.f32 %v4069, %v4337
        %v4340 = vadd.f32 %v4316, %v4338
        %v4341 = vadd.f32 %v4317, %v4339
        %s4342 = sld [smem:[#allocation10 + $0x1a]]
        %v4343 = vstv %s4342
        %v4344 = vmul.f32 %v4148, %v4343
        %v4345 = vmul.f32 %v4149, %v4343
        %v4346 = vadd.f32 %v4322, %v4344
        %v4347 = vadd.f32 %v4323, %v4345
        %s4348 = sld [smem:[#allocation10 + $0x3e]]
        %v4349 = vstv %s4348
        %v4350 = vmul.f32 %v4148, %v4349
        %v4351 = vmul.f32 %v4149, %v4349
        %v4352 = vadd.f32 %v4328, %v4350
        %v4353 = vadd.f32 %v4329, %v4351
        %s4354 = sld [smem:[#allocation10 + $0x62]]
        %v4355 = vstv %s4354
        %v4356 = vmul.f32 %v4148, %v4355
        %v4357 = vmul.f32 %v4149, %v4355
        %v4358 = vadd.f32 %v4334, %v4356
        %v4359 = vadd.f32 %v4335, %v4357
        %s4360 = sld [smem:[#allocation10 + $0x86]]
        %v4361 = vstv %s4360
        %v4362 = vmul.f32 %v4148, %v4361
        %v4363 = vmul.f32 %v4149, %v4361
        %v4364 = vadd.f32 %v4340, %v4362
        %v4365 = vadd.f32 %v4341, %v4363
        %4366 = vrot.lane.b32.xlu0 %v2748, 1
        %v4367 = vpop.permute.xlu0 %4366
        %4368 = vrot.lane.b32.xlu0 %v2749, 1
        %v4369 = vpop.permute.xlu0 %4368
        %v4370 = vsel %vm382, %v4367, %v4369
        %v4371 = vsel %vm382, %v4369, %v4367
        %4372 = vrot.lane.b32.xlu0 %v2748, 127
        %v4373 = vpop.permute.xlu0 %4372
        %4374 = vrot.lane.b32.xlu0 %v2749, 127
        %v4375 = vpop.permute.xlu0 %4374
        %v4376 = vsel %vm389, %v4373, %v4375
        %v4377 = vsel %vm389, %v4375, %v4373
        %v4378 = vsub.f32 %v4376, %v4371
        %v4379 = vsub.f32 %v4377, %v4370
        %v4382 = vcombine.low %v4378, %v4379
        %v4384 = vunpack.c.l.s4 1966171168
        %v4385 = vunpack.c.0.s8 %v4384
        %v4386 = vlaneseq
        %v4387 = vshrl.u32 %v4386, 7
        %v4388 = vsub.s32 %v4385, %v4387
        %v4389 = vrot.slane %v4382, %v4388
        %v4391 = vunpack.c.l.s4 1966171168
        %v4392 = vunpack.c.0.s8 %v4391
        %v4393 = vlaneseq
        %v4394 = vshrl.u32 %v4393, 7
        %v4395 = vsub.s32 %v4392, %v4394
        %v4396 = vrot.slane %v4389, %v4395
        %v4398 = vmul.f32 %v348, %v4396
        %v4400 = vlaneseq
        %v4401 = vshrl.u32 %v4400, 7
        %v4402 = vsub.s32 0, %v4401
        %v4403 = vrot.slane %v4398, %v4402
        %v4404 = vlaneseq
        %v4405 = vshrl.u32 %v4404, 7
        %v4406 = vsub.s32 1, %v4405
        %v4407 = vrot.slane %v4398, %v4406
        %v4410 = vadd.f32 %v4371, %v4403
        %v4411 = vadd.f32 %v4370, %v4407
        %v4412 = vsub.f32 %v4371, %v4376
        %v4413 = vsub.f32 %v4370, %v4377
        %v4416 = vcombine.low %v4412, %v4413
        %v4418 = vunpack.c.l.s4 1966171168
        %v4419 = vunpack.c.0.s8 %v4418
        %v4420 = vlaneseq
        %v4421 = vshrl.u32 %v4420, 7
        %v4422 = vsub.s32 %v4419, %v4421
        %v4423 = vrot.slane %v4416, %v4422
        %v4425 = vunpack.c.l.s4 1966171168
        %v4426 = vunpack.c.0.s8 %v4425
        %v4427 = vlaneseq
        %v4428 = vshrl.u32 %v4427, 7
        %v4429 = vsub.s32 %v4426, %v4428
        %v4430 = vrot.slane %v4423, %v4429
        %v4432 = vmul.f32 %v350, %v4430
        %v4434 = vlaneseq
        %v4435 = vshrl.u32 %v4434, 7
        %v4436 = vsub.s32 0, %v4435
        %v4437 = vrot.slane %v4432, %v4436
        %v4438 = vlaneseq
        %v4439 = vshrl.u32 %v4438, 7
        %v4440 = vsub.s32 1, %v4439
        %v4441 = vrot.slane %v4432, %v4440
        %v4444 = vadd.f32 %v4376, %v4437
        %v4445 = vadd.f32 %v4377, %v4441
        %4446 = vrot.lane.b32.xlu0 %v4410, 16
        %v4447 = vpop.permute.xlu0 %4446
        %4448 = vrot.lane.b32.xlu0 %v4411, 16
        %v4449 = vpop.permute.xlu0 %4448
        %v4450 = vsel %vm464, %v4447, %v4449
        %v4451 = vsel %vm464, %v4449, %v4447
        %4452 = vrot.lane.b32.xlu0 %v4410, 112
        %v4453 = vpop.permute.xlu0 %4452
        %4454 = vrot.lane.b32.xlu0 %v4411, 112
        %v4455 = vpop.permute.xlu0 %4454
        %v4456 = vsel %vm471, %v4453, %v4455
        %v4457 = vsel %vm471, %v4455, %v4453
        %v4458 = vsub.f32 %v4456, %v4451
        %v4459 = vsub.f32 %v4457, %v4450
        %v4462 = vcombine.low %v4458, %v4459
        %v4464 = vunpack.c.l.s4 1966171168
        %v4465 = vunpack.c.0.s8 %v4464
        %v4466 = vlaneseq
        %v4467 = vshrl.u32 %v4466, 7
        %v4468 = vsub.s32 %v4465, %v4467
        %v4469 = vrot.slane %v4462, %v4468
        %v4471 = vunpack.c.l.s4 1966171168
        %v4472 = vunpack.c.0.s8 %v4471
        %v4473 = vlaneseq
        %v4474 = vshrl.u32 %v4473, 7
        %v4475 = vsub.s32 %v4472, %v4474
        %v4476 = vrot.slane %v4469, %v4475
        %v4478 = vmul.f32 %v352, %v4476
        %v4480 = vlaneseq
        %v4481 = vshrl.u32 %v4480, 7
        %v4482 = vsub.s32 0, %v4481
        %v4483 = vrot.slane %v4478, %v4482
        %v4484 = vlaneseq
        %v4485 = vshrl.u32 %v4484, 7
        %v4486 = vsub.s32 1, %v4485
        %v4487 = vrot.slane %v4478, %v4486
        %v4490 = vadd.f32 %v4451, %v4483
        %v4491 = vadd.f32 %v4450, %v4487
        %v4492 = vsub.f32 %v4451, %v4456
        %v4493 = vsub.f32 %v4450, %v4457
        %v4496 = vcombine.low %v4492, %v4493
        %v4498 = vunpack.c.l.s4 1966171168
        %v4499 = vunpack.c.0.s8 %v4498
        %v4500 = vlaneseq
        %v4501 = vshrl.u32 %v4500, 7
        %v4502 = vsub.s32 %v4499, %v4501
        %v4503 = vrot.slane %v4496, %v4502
        %v4505 = vunpack.c.l.s4 1966171168
        %v4506 = vunpack.c.0.s8 %v4505
        %v4507 = vlaneseq
        %v4508 = vshrl.u32 %v4507, 7
        %v4509 = vsub.s32 %v4506, %v4508
        %v4510 = vrot.slane %v4503, %v4509
        %v4512 = vmul.f32 %v354, %v4510
        %v4514 = vlaneseq
        %v4515 = vshrl.u32 %v4514, 7
        %v4516 = vsub.s32 0, %v4515
        %v4517 = vrot.slane %v4512, %v4516
        %v4518 = vlaneseq
        %v4519 = vshrl.u32 %v4518, 7
        %v4520 = vsub.s32 1, %v4519
        %v4521 = vrot.slane %v4512, %v4520
        %v4524 = vadd.f32 %v4456, %v4517
        %v4525 = vadd.f32 %v4457, %v4521
        %4526 = vrot.lane.b32.xlu0 %v2748, 16
        %v4527 = vpop.permute.xlu0 %4526
        %4528 = vrot.lane.b32.xlu0 %v2749, 16
        %v4529 = vpop.permute.xlu0 %4528
        %v4530 = vsel %vm464, %v4527, %v4529
        %v4531 = vsel %vm464, %v4529, %v4527
        %4532 = vrot.lane.b32.xlu0 %v2748, 112
        %v4533 = vpop.permute.xlu0 %4532
        %4534 = vrot.lane.b32.xlu0 %v2749, 112
        %v4535 = vpop.permute.xlu0 %4534
        %v4536 = vsel %vm471, %v4533, %v4535
        %v4537 = vsel %vm471, %v4535, %v4533
        %v4538 = vsub.f32 %v4536, %v4531
        %v4539 = vsub.f32 %v4537, %v4530
        %v4542 = vcombine.low %v4538, %v4539
        %v4544 = vunpack.c.l.s4 1966171168
        %v4545 = vunpack.c.0.s8 %v4544
        %v4546 = vlaneseq
        %v4547 = vshrl.u32 %v4546, 7
        %v4548 = vsub.s32 %v4545, %v4547
        %v4549 = vrot.slane %v4542, %v4548
        %v4551 = vunpack.c.l.s4 1966171168
        %v4552 = vunpack.c.0.s8 %v4551
        %v4553 = vlaneseq
        %v4554 = vshrl.u32 %v4553, 7
        %v4555 = vsub.s32 %v4552, %v4554
        %v4556 = vrot.slane %v4549, %v4555
        %v4558 = vmul.f32 %v352, %v4556
        %v4560 = vlaneseq
        %v4561 = vshrl.u32 %v4560, 7
        %v4562 = vsub.s32 0, %v4561
        %v4563 = vrot.slane %v4558, %v4562
        %v4564 = vlaneseq
        %v4565 = vshrl.u32 %v4564, 7
        %v4566 = vsub.s32 1, %v4565
        %v4567 = vrot.slane %v4558, %v4566
        %v4570 = vadd.f32 %v4531, %v4563
        %v4571 = vadd.f32 %v4530, %v4567
        %v4572 = vsub.f32 %v4531, %v4536
        %v4573 = vsub.f32 %v4530, %v4537
        %v4576 = vcombine.low %v4572, %v4573
        %v4578 = vunpack.c.l.s4 1966171168
        %v4579 = vunpack.c.0.s8 %v4578
        %v4580 = vlaneseq
        %v4581 = vshrl.u32 %v4580, 7
        %v4582 = vsub.s32 %v4579, %v4581
        %v4583 = vrot.slane %v4576, %v4582
        %v4585 = vunpack.c.l.s4 1966171168
        %v4586 = vunpack.c.0.s8 %v4585
        %v4587 = vlaneseq
        %v4588 = vshrl.u32 %v4587, 7
        %v4589 = vsub.s32 %v4586, %v4588
        %v4590 = vrot.slane %v4583, %v4589
        %v4592 = vmul.f32 %v354, %v4590
        %v4594 = vlaneseq
        %v4595 = vshrl.u32 %v4594, 7
        %v4596 = vsub.s32 0, %v4595
        %v4597 = vrot.slane %v4592, %v4596
        %v4598 = vlaneseq
        %v4599 = vshrl.u32 %v4598, 7
        %v4600 = vsub.s32 1, %v4599
        %v4601 = vrot.slane %v4592, %v4600
        %v4604 = vadd.f32 %v4536, %v4597
        %v4605 = vadd.f32 %v4537, %v4601
        %4606 = vrot.lane.b32.xlu0 %v4444, 16
        %v4607 = vpop.permute.xlu0 %4606
        %4608 = vrot.lane.b32.xlu0 %v4445, 16
        %v4609 = vpop.permute.xlu0 %4608
        %v4610 = vsel %vm464, %v4607, %v4609
        %v4611 = vsel %vm464, %v4609, %v4607
        %4612 = vrot.lane.b32.xlu0 %v4444, 112
        %v4613 = vpop.permute.xlu0 %4612
        %4614 = vrot.lane.b32.xlu0 %v4445, 112
        %v4615 = vpop.permute.xlu0 %4614
        %v4616 = vsel %vm471, %v4613, %v4615
        %v4617 = vsel %vm471, %v4615, %v4613
        %v4618 = vsub.f32 %v4616, %v4611
        %v4619 = vsub.f32 %v4617, %v4610
        %v4622 = vcombine.low %v4618, %v4619
        %v4624 = vunpack.c.l.s4 1966171168
        %v4625 = vunpack.c.0.s8 %v4624
        %v4626 = vlaneseq
        %v4627 = vshrl.u32 %v4626, 7
        %v4628 = vsub.s32 %v4625, %v4627
        %v4629 = vrot.slane %v4622, %v4628
        %v4631 = vunpack.c.l.s4 1966171168
        %v4632 = vunpack.c.0.s8 %v4631
        %v4633 = vlaneseq
        %v4634 = vshrl.u32 %v4633, 7
        %v4635 = vsub.s32 %v4632, %v4634
        %v4636 = vrot.slane %v4629, %v4635
        %v4638 = vmul.f32 %v352, %v4636
        %v4640 = vlaneseq
        %v4641 = vshrl.u32 %v4640, 7
        %v4642 = vsub.s32 0, %v4641
        %v4643 = vrot.slane %v4638, %v4642
        %v4644 = vlaneseq
        %v4645 = vshrl.u32 %v4644, 7
        %v4646 = vsub.s32 1, %v4645
        %v4647 = vrot.slane %v4638, %v4646
        %v4650 = vadd.f32 %v4611, %v4643
        %v4651 = vadd.f32 %v4610, %v4647
        %v4652 = vsub.f32 %v4611, %v4616
        %v4653 = vsub.f32 %v4610, %v4617
        %v4656 = vcombine.low %v4652, %v4653
        %v4658 = vunpack.c.l.s4 1966171168
        %v4659 = vunpack.c.0.s8 %v4658
        %v4660 = vlaneseq
        %v4661 = vshrl.u32 %v4660, 7
        %v4662 = vsub.s32 %v4659, %v4661
        %v4663 = vrot.slane %v4656, %v4662
        %v4665 = vunpack.c.l.s4 1966171168
        %v4666 = vunpack.c.0.s8 %v4665
        %v4667 = vlaneseq
        %v4668 = vshrl.u32 %v4667, 7
        %v4669 = vsub.s32 %v4666, %v4668
        %v4670 = vrot.slane %v4663, %v4669
        %v4672 = vmul.f32 %v354, %v4670
        %v4674 = vlaneseq
        %v4675 = vshrl.u32 %v4674, 7
        %v4676 = vsub.s32 0, %v4675
        %v4677 = vrot.slane %v4672, %v4676
        %v4678 = vlaneseq
        %v4679 = vshrl.u32 %v4678, 7
        %v4680 = vsub.s32 1, %v4679
        %v4681 = vrot.slane %v4672, %v4680
        %v4684 = vadd.f32 %v4616, %v4677
        %v4685 = vadd.f32 %v4617, %v4681
        %s4686 = sld [smem:[#allocation10 + $0x1b]]
        %v4687 = vstv %s4686
        %v4688 = vmul.f32 %v4490, %v4687
        %v4689 = vmul.f32 %v4491, %v4687
        %v4690 = vadd.f32 %v4346, %v4688
        %v4691 = vadd.f32 %v4347, %v4689
        %s4692 = sld [smem:[#allocation10 + $0x3f]]
        %v4693 = vstv %s4692
        %v4694 = vmul.f32 %v4490, %v4693
        %v4695 = vmul.f32 %v4491, %v4693
        %v4696 = vadd.f32 %v4352, %v4694
        %v4697 = vadd.f32 %v4353, %v4695
        %s4698 = sld [smem:[#allocation10 + $0x63]]
        %v4699 = vstv %s4698
        %v4700 = vmul.f32 %v4490, %v4699
        %v4701 = vmul.f32 %v4491, %v4699
        %v4702 = vadd.f32 %v4358, %v4700
        %v4703 = vadd.f32 %v4359, %v4701
        %s4704 = sld [smem:[#allocation10 + $0x87]]
        %v4705 = vstv %s4704
        %v4706 = vmul.f32 %v4490, %v4705
        %v4707 = vmul.f32 %v4491, %v4705
        %v4708 = vadd.f32 %v4364, %v4706
        %v4709 = vadd.f32 %v4365, %v4707
        %s4710 = sld [smem:[#allocation10 + $0x1c]]
        %v4711 = vstv %s4710
        %v4712 = vmul.f32 %v4570, %v4711
        %v4713 = vmul.f32 %v4571, %v4711
        %v4714 = vadd.f32 %v4690, %v4712
        %v4715 = vadd.f32 %v4691, %v4713
        %s4716 = sld [smem:[#allocation10 + $0x40]]
        %v4717 = vstv %s4716
        %v4718 = vmul.f32 %v4570, %v4717
        %v4719 = vmul.f32 %v4571, %v4717
        %v4720 = vadd.f32 %v4696, %v4718
        %v4721 = vadd.f32 %v4697, %v4719
        %s4722 = sld [smem:[#allocation10 + $0x64]]
        %v4723 = vstv %s4722
        %v4724 = vmul.f32 %v4570, %v4723
        %v4725 = vmul.f32 %v4571, %v4723
        %v4726 = vadd.f32 %v4702, %v4724
        %v4727 = vadd.f32 %v4703, %v4725
        %s4728 = sld [smem:[#allocation10 + $0x88]]
        %v4729 = vstv %s4728
        %v4730 = vmul.f32 %v4570, %v4729
        %v4731 = vmul.f32 %v4571, %v4729
        %v4732 = vadd.f32 %v4708, %v4730
        %v4733 = vadd.f32 %v4709, %v4731
        %s4734 = sld [smem:[#allocation10 + $0x1d]]
        %v4735 = vstv %s4734
        %v4736 = vmul.f32 %v4650, %v4735
        %v4737 = vmul.f32 %v4651, %v4735
        %v4738 = vadd.f32 %v4714, %v4736
        %v4739 = vadd.f32 %v4715, %v4737
        %s4740 = sld [smem:[#allocation10 + $0x41]]
        %v4741 = vstv %s4740
        %v4742 = vmul.f32 %v4650, %v4741
        %v4743 = vmul.f32 %v4651, %v4741
        %v4744 = vadd.f32 %v4720, %v4742
        %v4745 = vadd.f32 %v4721, %v4743
        %s4746 = sld [smem:[#allocation10 + $0x65]]
        %v4747 = vstv %s4746
        %v4748 = vmul.f32 %v4650, %v4747
        %v4749 = vmul.f32 %v4651, %v4747
        %v4750 = vadd.f32 %v4726, %v4748
        %v4751 = vadd.f32 %v4727, %v4749
        %s4752 = sld [smem:[#allocation10 + $0x89]]
        %v4753 = vstv %s4752
        %v4754 = vmul.f32 %v4650, %v4753
        %v4755 = vmul.f32 %v4651, %v4753
        %v4756 = vadd.f32 %v4732, %v4754
        %v4757 = vadd.f32 %v4733, %v4755
        %s4758 = sld [smem:[#allocation10 + $0x1e]]
        %v4759 = vstv %s4758
        %v4760 = vmul.f32 %v4410, %v4759
        %v4761 = vmul.f32 %v4411, %v4759
        %v4762 = vadd.f32 %v4738, %v4760
        %v4763 = vadd.f32 %v4739, %v4761
        %s4764 = sld [smem:[#allocation10 + $0x42]]
        %v4765 = vstv %s4764
        %v4766 = vmul.f32 %v4410, %v4765
        %v4767 = vmul.f32 %v4411, %v4765
        %v4768 = vadd.f32 %v4744, %v4766
        %v4769 = vadd.f32 %v4745, %v4767
        %s4770 = sld [smem:[#allocation10 + $0x66]]
        %v4771 = vstv %s4770
        %v4772 = vmul.f32 %v4410, %v4771
        %v4773 = vmul.f32 %v4411, %v4771
        %v4774 = vadd.f32 %v4750, %v4772
        %v4775 = vadd.f32 %v4751, %v4773
        %s4776 = sld [smem:[#allocation10 + $0x8a]]
        %v4777 = vstv %s4776
        %v4778 = vmul.f32 %v4410, %v4777
        %v4779 = vmul.f32 %v4411, %v4777
        %v4780 = vadd.f32 %v4756, %v4778
        %v4781 = vadd.f32 %v4757, %v4779
        %s4782 = sld [smem:[#allocation10 + $0x1f]]
        %v4783 = vstv %s4782
        %v4784 = vmul.f32 %v2748, %v4783
        %v4785 = vmul.f32 %v2749, %v4783
        %v4786 = vadd.f32 %v4762, %v4784
        %v4787 = vadd.f32 %v4763, %v4785
        %s4788 = sld [smem:[#allocation10 + $0x43]]
        %v4789 = vstv %s4788
        %v4790 = vmul.f32 %v2748, %v4789
        %v4791 = vmul.f32 %v2749, %v4789
        %v4792 = vadd.f32 %v4768, %v4790
        %v4793 = vadd.f32 %v4769, %v4791
        %s4794 = sld [smem:[#allocation10 + $0x67]]
        %v4795 = vstv %s4794
        %v4796 = vmul.f32 %v2748, %v4795
        %v4797 = vmul.f32 %v2749, %v4795
        %v4798 = vadd.f32 %v4774, %v4796
        %v4799 = vadd.f32 %v4775, %v4797
        %s4800 = sld [smem:[#allocation10 + $0x8b]]
        %v4801 = vstv %s4800
        %v4802 = vmul.f32 %v2748, %v4801
        %v4803 = vmul.f32 %v2749, %v4801
        %v4804 = vadd.f32 %v4780, %v4802
        %v4805 = vadd.f32 %v4781, %v4803
        %s4806 = sld [smem:[#allocation10 + $0x20]]
        %v4807 = vstv %s4806
        %v4808 = vmul.f32 %v4444, %v4807
        %v4809 = vmul.f32 %v4445, %v4807
        %v4810 = vadd.f32 %v4786, %v4808
        %v4811 = vadd.f32 %v4787, %v4809
        %s4812 = sld [smem:[#allocation10 + $0x44]]
        %v4813 = vstv %s4812
        %v4814 = vmul.f32 %v4444, %v4813
        %v4815 = vmul.f32 %v4445, %v4813
        %v4816 = vadd.f32 %v4792, %v4814
        %v4817 = vadd.f32 %v4793, %v4815
        %s4818 = sld [smem:[#allocation10 + $0x68]]
        %v4819 = vstv %s4818
        %v4820 = vmul.f32 %v4444, %v4819
        %v4821 = vmul.f32 %v4445, %v4819
        %v4822 = vadd.f32 %v4798, %v4820
        %v4823 = vadd.f32 %v4799, %v4821
        %s4824 = sld [smem:[#allocation10 + $0x8c]]
        %v4825 = vstv %s4824
        %v4826 = vmul.f32 %v4444, %v4825
        %v4827 = vmul.f32 %v4445, %v4825
        %v4828 = vadd.f32 %v4804, %v4826
        %v4829 = vadd.f32 %v4805, %v4827
        %s4830 = sld [smem:[#allocation10 + $0x21]]
        %v4831 = vstv %s4830
        %v4832 = vmul.f32 %v4524, %v4831
        %v4833 = vmul.f32 %v4525, %v4831
        %v4834 = vadd.f32 %v4810, %v4832
        %v4835 = vadd.f32 %v4811, %v4833
        %s4836 = sld [smem:[#allocation10 + $0x45]]
        %v4837 = vstv %s4836
        %v4838 = vmul.f32 %v4524, %v4837
        %v4839 = vmul.f32 %v4525, %v4837
        %v4840 = vadd.f32 %v4816, %v4838
        %v4841 = vadd.f32 %v4817, %v4839
        %s4842 = sld [smem:[#allocation10 + $0x69]]
        %v4843 = vstv %s4842
        %v4844 = vmul.f32 %v4524, %v4843
        %v4845 = vmul.f32 %v4525, %v4843
        %v4846 = vadd.f32 %v4822, %v4844
        %v4847 = vadd.f32 %v4823, %v4845
        %s4848 = sld [smem:[#allocation10 + $0x8d]]
        %v4849 = vstv %s4848
        %v4850 = vmul.f32 %v4524, %v4849
        %v4851 = vmul.f32 %v4525, %v4849
        %v4852 = vadd.f32 %v4828, %v4850
        %v4853 = vadd.f32 %v4829, %v4851
        %s4854 = sld [smem:[#allocation10 + $0x22]]
        %v4855 = vstv %s4854
        %v4856 = vmul.f32 %v4604, %v4855
        %v4857 = vmul.f32 %v4605, %v4855
        %v4858 = vadd.f32 %v4834, %v4856
        %v4859 = vadd.f32 %v4835, %v4857
        %s4860 = sld [smem:[#allocation10 + $0x46]]
        %v4861 = vstv %s4860
        %v4862 = vmul.f32 %v4604, %v4861
        %v4863 = vmul.f32 %v4605, %v4861
        %v4864 = vadd.f32 %v4840, %v4862
        %v4865 = vadd.f32 %v4841, %v4863
        %s4866 = sld [smem:[#allocation10 + $0x6a]]
        %v4867 = vstv %s4866
        %v4868 = vmul.f32 %v4604, %v4867
        %v4869 = vmul.f32 %v4605, %v4867
        %v4870 = vadd.f32 %v4846, %v4868
        %v4871 = vadd.f32 %v4847, %v4869
        %s4872 = sld [smem:[#allocation10 + $0x8e]]
        %v4873 = vstv %s4872
        %v4874 = vmul.f32 %v4604, %v4873
        %v4875 = vmul.f32 %v4605, %v4873
        %v4876 = vadd.f32 %v4852, %v4874
        %v4877 = vadd.f32 %v4853, %v4875
        %s4878 = sld [smem:[#allocation10 + $0x23]]
        %v4879 = vstv %s4878
        %v4880 = vmul.f32 %v4684, %v4879
        %v4881 = vmul.f32 %v4685, %v4879
        %v4882 = vadd.f32 %v4858, %v4880
        %v4883 = vadd.f32 %v4859, %v4881
        %s4884 = sld [smem:[#allocation10 + $0x47]]
        %v4885 = vstv %s4884
        %v4886 = vmul.f32 %v4684, %v4885
        %v4887 = vmul.f32 %v4685, %v4885
        %v4888 = vadd.f32 %v4864, %v4886
        %v4889 = vadd.f32 %v4865, %v4887
        %s4890 = sld [smem:[#allocation10 + $0x6b]]
        %v4891 = vstv %s4890
        %v4892 = vmul.f32 %v4684, %v4891
        %v4893 = vmul.f32 %v4685, %v4891
        %v4894 = vadd.f32 %v4870, %v4892
        %v4895 = vadd.f32 %v4871, %v4893
        %s4896 = sld [smem:[#allocation10 + $0x8f]]
        %v4897 = vstv %s4896
        %v4898 = vmul.f32 %v4684, %v4897
        %v4899 = vmul.f32 %v4685, %v4897
        %v4900 = vadd.f32 %v4876, %v4898
        %v4901 = vadd.f32 %v4877, %v4899
        %v4902 = vmul.f32 %v4882, 0.1
        %v4903 = vmul.f32 %v4883, 0.1
        %v4904 = vadd.f32 %v4902, %v369
        %v4905 = vadd.f32 %v4903, %v373
        %v4908 = vcombine.low %v4904, %v4905
        %v4910 = vunpack.c.l.s4 1966171168
        %v4911 = vunpack.c.0.s8 %v4910
        %v4912 = vlaneseq
        %v4913 = vshrl.u32 %v4912, 7
        %v4914 = vsub.s32 %v4911, %v4913
        %v4915 = vrot.slane %v4908, %v4914
        %v4917 = vunpack.c.l.s4 1966171168
        %v4918 = vunpack.c.0.s8 %v4917
        %v4919 = vlaneseq
        %v4920 = vshrl.u32 %v4919, 7
        %v4921 = vsub.s32 %v4918, %v4920
        %v4922 = vrot.slane %v4915, %v4921
        %v4924 = vlaneseq
        %vm4925 = vcmp.ge.s32.totalorder %v4924, 0
        %vm4926 = vcmp.lt.s32.totalorder %v4924, 256
        %vm4927 = vmand %vm4925, %vm4926
        %4928 = vst.msk [vmem:[%s347] ss:$4 sm:$0x3] %vm4927, %v4922
        %v4929 = vld [vmem:[%s958] ss:$4 sm:$0x3]
        %v4930 = vmul.f32 %v4888, 0.1
        %v4931 = vmul.f32 %v4889, 0.1
        %v4933 = vlaneseq
        %v4934 = vshrl.u32 %v4933, 7
        %v4935 = vsub.s32 0, %v4934
        %v4936 = vrot.slane %v4929, %v4935
        %v4937 = vlaneseq
        %v4938 = vshrl.u32 %v4937, 7
        %v4939 = vsub.s32 1, %v4938
        %v4940 = vrot.slane %v4929, %v4939
        %v4943 = vadd.f32 %v4930, %v4936
        %v4944 = vadd.f32 %v4931, %v4940
        %v4947 = vcombine.low %v4943, %v4944
        %v4949 = vunpack.c.l.s4 1966171168
        %v4950 = vunpack.c.0.s8 %v4949
        %v4951 = vlaneseq
        %v4952 = vshrl.u32 %v4951, 7
        %v4953 = vsub.s32 %v4950, %v4952
        %v4954 = vrot.slane %v4947, %v4953
        %v4956 = vunpack.c.l.s4 1966171168
        %v4957 = vunpack.c.0.s8 %v4956
        %v4958 = vlaneseq
        %v4959 = vshrl.u32 %v4958, 7
        %v4960 = vsub.s32 %v4957, %v4959
        %v4961 = vrot.slane %v4954, %v4960
        %s4963 = scalar_lea.vmem %s347, 1 [#allocation13]
        %4964 = vst.msk [vmem:[%s4963] ss:$4 sm:$0x3] %vm4927, %v4961
        %v4965 = vld [vmem:[%s1547] ss:$4 sm:$0x3]
        %v4966 = vmul.f32 %v4894, 0.1
        %v4967 = vmul.f32 %v4895, 0.1
        %v4969 = vlaneseq
        %v4970 = vshrl.u32 %v4969, 7
        %v4971 = vsub.s32 0, %v4970
        %v4972 = vrot.slane %v4965, %v4971
        %v4973 = vlaneseq
        %v4974 = vshrl.u32 %v4973, 7
        %v4975 = vsub.s32 1, %v4974
        %v4976 = vrot.slane %v4965, %v4975
        %v4979 = vadd.f32 %v4966, %v4972
        %v4980 = vadd.f32 %v4967, %v4976
        %v4983 = vcombine.low %v4979, %v4980
        %v4985 = vunpack.c.l.s4 1966171168
        %v4986 = vunpack.c.0.s8 %v4985
        %v4987 = vlaneseq
        %v4988 = vshrl.u32 %v4987, 7
        %v4989 = vsub.s32 %v4986, %v4988
        %v4990 = vrot.slane %v4983, %v4989
        %v4992 = vunpack.c.l.s4 1966171168
        %v4993 = vunpack.c.0.s8 %v4992
        %v4994 = vlaneseq
        %v4995 = vshrl.u32 %v4994, 7
        %v4996 = vsub.s32 %v4993, %v4995
        %v4997 = vrot.slane %v4990, %v4996
        %s4999 = scalar_lea.vmem %s347, 2 [#allocation13]
        %5000 = vst.msk [vmem:[%s4999] ss:$4 sm:$0x3] %vm4927, %v4997
        %v5001 = vld [vmem:[%s2136] ss:$4 sm:$0x3]
        %v5002 = vmul.f32 %v4900, 0.1
        %v5003 = vmul.f32 %v4901, 0.1
        %v5005 = vlaneseq
        %v5006 = vshrl.u32 %v5005, 7
        %v5007 = vsub.s32 0, %v5006
        %v5008 = vrot.slane %v5001, %v5007
        %v5009 = vlaneseq
        %v5010 = vshrl.u32 %v5009, 7
        %v5011 = vsub.s32 1, %v5010
        %v5012 = vrot.slane %v5001, %v5011
        %v5015 = vadd.f32 %v5002, %v5008
        %v5016 = vadd.f32 %v5003, %v5012
        %v5019 = vcombine.low %v5015, %v5016
        %v5021 = vunpack.c.l.s4 1966171168
        %v5022 = vunpack.c.0.s8 %v5021
        %v5023 = vlaneseq
        %v5024 = vshrl.u32 %v5023, 7
        %v5025 = vsub.s32 %v5022, %v5024
        %v5026 = vrot.slane %v5019, %v5025
        %v5028 = vunpack.c.l.s4 1966171168
        %v5029 = vunpack.c.0.s8 %v5028
        %v5030 = vlaneseq
        %v5031 = vshrl.u32 %v5030, 7
        %v5032 = vsub.s32 %v5029, %v5031
        %v5033 = vrot.slane %v5026, %v5032
        %s5035 = scalar_lea.vmem %s347, 3 [#allocation13]
        %5036 = vst.msk [vmem:[%s5035] ss:$4 sm:$0x3] %vm4927, %v5033
        %s5037 = sand.u32 %s188, 1
        %s5038 = scalar_lea.sflag [#allocation5], %s5037
        %s5039 = sand.u32 %s188, 1
        %s5040 = smul.addr %s5039, 8
        %s5041 = scalar_lea.vmem [#allocation13], %s5040
        // Predicated region
        $region69: #{tpu_custom_call.1} parent=47 // pred_check
          %p5042 = pneg %p198
        $region70: #{tpu_custom_call.1} parent=47 // pred_check_branch
          %5044 = sbr.rel (%p5042) target = $region72
        $region71: #{tpu_custom_call.1} parent=47 // pred_region
          %s5046 = ssub.s32 128, 128
          %5047 = vsyncadd %s5038, %s5046
          %s5048 = smul.addr %s28, 2
          %s5049 = smul.addr %s5048, 64
          %s5050 = scalar_lea.hbm %s7, %s5049
          %s5052 = sshll.u32 %s5041, 4
          %s5053 = int_to_ptr.vmem [resolvable:$true] %s5052
          %5055 = dma.vmem_to_hbm [thread:$0]  %s5053, 128, %s5050, %s5038
        $region72: #{tpu_custom_call.1} parent=47 // pred_fallthru
          _
      $region48: #{tpu_custom_call.1} parent=5 // pred_fallthru
        _
      %p5056 = scmp.le.s32.totalorder 2, %s23
      // Predicated region
      $region73: #{tpu_custom_call.1} parent=5 // pred_check
        %p5057 = pneg %p5056
      $region74: #{tpu_custom_call.1} parent=5 // pred_check_branch
        %5059 = sbr.rel (%p5057) target = $region76
      $region75: #{tpu_custom_call.1} parent=5 // pred_region
        %s5060 = ssub.s32 %s23, 2
        // Predicated region
        $region77: #{tpu_custom_call.1} parent=75 // pred_check
          %p5061 = pneg %p204
        $region78: #{tpu_custom_call.1} parent=75 // pred_check_branch
          %5063 = sbr.rel (%p5061) target = $region80
        $region79: #{tpu_custom_call.1} parent=75 // pred_region
          %s5064 = sand.u32 %s189, 1
          %s5065 = scalar_lea.sflag [#allocation5], %s5064
          %s5066 = sand.u32 %s189, 1
          %s5067 = smul.addr %s5066, 8
          %s5068 = scalar_lea.vmem [#allocation13], %s5067
          %5069 = dma.done %s5065, 128
        $region80: #{tpu_custom_call.1} parent=75 // pred_fallthru
          _
      $region76: #{tpu_custom_call.1} parent=5 // pred_fallthru
        _
    $region6: #{tpu_custom_call.1} parent=1 // loop_footer
      %s27 = sadd.s32 1, %s23
    $region7: #{tpu_custom_call.1} parent=1 // loop_footer_branch
      %22 = sbr.rel target = $region3
    $region8: #{tpu_custom_call.1} parent=1 // loop_exit
      _
    %5070 = vsyncpa [#allocation4], 1
    %s5071 = scalar_lea.sflag [#allocation4], 1
    %5072 = vsyncpa %s5071, 1
    %5073 = vsyncpa [#allocation5], 1
    %s5074 = scalar_lea.sflag [#allocation5], 1
    %5075 = vsyncpa %s5074, 1
    %5076 = vsyncpa [#allocation6], 1
    %s5077 = scalar_lea.sflag [#allocation6], 1
    %5078 = vsyncpa %s5077, 1
    %5079 = vsyncpa [#allocation9], 1
    %5080 = vsyncpa [#allocation12], 1

</llo_original>
